<compile_context>
chip_gen: v7x
topology: tpu7x:2x2x1
jax: 0.10.0
libtpu: 0.0.40
codegen_flags: <defaults>
</compile_context>

<pallas_src>
import functools
import math

import jax
import jax.numpy as jnp
from jax import lax
from jax.experimental import pallas as pl
from jax.experimental.pallas import tpu as pltpu

NEG_INF = -1.0e10      # matches torch.tensor(-1e10)
EPSILON = 1.0e-6       # matches torch.tensor(1e-6)


def _round_up(x, m):
    return ((x + m - 1) // m) * m


def _flash_v1_kernel(q_ref, k_ref, v_ref, o_ref, m_sc, l_sc, acc_sc,
                     *, scale, apply_scale, seq_len, kv_block, needs_mask):
    """One (batch*head, q_block) tile; grid axis 2 iterates over KV blocks."""
    kv = pl.program_id(2)
    num_kv = pl.num_programs(2)

    @pl.when(kv == 0)
    def _():
        m_sc[...] = jnp.full(m_sc.shape, NEG_INF, jnp.float32)   # running max
        l_sc[...] = jnp.zeros(l_sc.shape, jnp.float32)            # running denom
        acc_sc[...] = jnp.zeros(acc_sc.shape, jnp.float32)        # unnormalized O

    q = q_ref[...]                                     # (BQ, D), input dtype
    if apply_scale:                                    # compiled away when scale
        q = q * jnp.asarray(scale, q.dtype)            # is folded into wq/bq
    k = k_ref[...]                                     # (BKV, D)
    v = v_ref[...]                                     # (BKV, D)

    # S_ij = (Q / sqrt(d)) K^T — contract last dims, no explicit transpose,
    # operands stay in input dtype (full MXU rate), f32 accumulation.
    s = lax.dot_general(q, k, (((1,), (1,)), ((), ())),
                        preferred_element_type=jnp.float32)   # (BQ, BKV)

    if needs_mask:
        # Padding only ever lives in the last KV block — mask only there.
        def _mask(t):
            col = kv * kv_block + lax.broadcasted_iota(jnp.int32, t.shape, 1)
            return jnp.where(col < seq_len, t, NEG_INF)
        s = lax.cond(kv == num_kv - 1, _mask, lambda t: t, s)

    # m/l are stored broadcast across 128 lanes (lane-dense stores); compute on
    # the narrow (BQ, 1) column view.
    mi = m_sc[...][:, :1]                              # (BQ, 1)
    li = l_sc[...][:, :1]                              # (BQ, 1)

    m_blk = jnp.max(s, axis=-1, keepdims=True)         # (BQ, 1)
    mi_new = jnp.maximum(mi, m_blk)                     # (BQ, 1)
    alpha = jnp.exp(mi - mi_new)                        # (BQ, 1) rescale factor

    # Single full-tile exp; reused for both the l update and the PV matmul.
    p = jnp.exp(s - mi_new)                             # (BQ, BKV)

    # Matches the torch recurrence exactly:
    #   l_new = l*exp(mi-mi_new) + (sum(exp(s-m_blk)) + EPS) * exp(m_blk-mi_new)
    l_new = (li * alpha
             + jnp.sum(p, axis=-1, keepdims=True)
             + EPSILON * jnp.exp(m_blk - mi_new))

    pv = jnp.dot(p.astype(v.dtype), v, preferred_element_type=jnp.float32)
    acc_sc[...] = acc_sc[...] * alpha + pv              # FA2-style: defer /l
    m_sc[...] = jnp.broadcast_to(mi_new, m_sc.shape)    # lane-dense stores
    l_sc[...] = jnp.broadcast_to(l_new, l_sc.shape)

    @pl.when(kv == num_kv - 1)
    def _():
        inv_l = pl.reciprocal(l_sc[...][:, :1], approx=True)   # once per Q tile
        o_ref[...] = (acc_sc[...] * inv_l).astype(o_ref.dtype)


def flash_attention_v1(q, k, v, *, q_block=512, kv_block=256, scale=None):
    """q, k, v: (BH, S, D) -> softmax(q k^T * scale) v, FlashAttention-v1 recurrence.

    scale defaults to 1/sqrt(D). Pass scale=1.0 if it was folded into q already.
    The trailing head dim is blocked at its full extent (no padding); the
    sequence is padded to the tile size and masked in-kernel when needed.
    """
    BH, S, D = q.shape
    if scale is None:
        scale = 1.0 / (D ** 0.5)
    apply_scale = (scale != 1.0)

    # Minimum sublane tile depends on dtype width (8/16/32 for 4/2/1 bytes).
    sub = {4: 8, 2: 16, 1: 32}.get(jnp.dtype(q.dtype).itemsize, 8)
    blk_q = min(q_block, _round_up(S, sub))
    blk_kv = min(kv_block, _round_up(S, sub))
    # Keep the two block sizes commensurate so seq padding never blows up.
    if blk_q > blk_kv:
        blk_q = (blk_q // blk_kv) * blk_kv
    elif blk_kv > blk_q:
        blk_kv = (blk_kv // blk_q) * blk_q
    S_pad = _round_up(S, max(blk_q, blk_kv))

    if S_pad != S:
        pad = ((0, 0), (0, S_pad - S), (0, 0))
        q = jnp.pad(q, pad)
        k = jnp.pad(k, pad)
        v = jnp.pad(v, pad)

    grid = (BH, S_pad // blk_q, S_pad // blk_kv)
    kernel = functools.partial(
        _flash_v1_kernel,
        scale=scale,
        apply_scale=apply_scale,
        seq_len=S,
        kv_block=blk_kv,
        needs_mask=(S_pad != S),
    )

    out = pl.pallas_call(
        kernel,
        out_shape=jax.ShapeDtypeStruct((BH, S_pad, D), q.dtype),
        grid_spec=pltpu.PrefetchScalarGridSpec(
            num_scalar_prefetch=0,
            grid=grid,
            in_specs=[
                pl.BlockSpec((None, blk_q, D), lambda b, qi, ki: (b, qi, 0)),
                pl.BlockSpec((None, blk_kv, D), lambda b, qi, ki: (b, ki, 0)),
                pl.BlockSpec((None, blk_kv, D), lambda b, qi, ki: (b, ki, 0)),
            ],
            out_specs=pl.BlockSpec((None, blk_q, D), lambda b, qi, ki: (b, qi, 0)),
            scratch_shapes=[
                pltpu.VMEM((blk_q, 128), jnp.float32),   # M_i (running max, lane-bcast)
                pltpu.VMEM((blk_q, 128), jnp.float32),   # L_i (running denom, lane-bcast)
                pltpu.VMEM((blk_q, D), jnp.float32),     # unnormalized O accumulator
            ],
        ),
        compiler_params=pltpu.CompilerParams(
            dimension_semantics=("parallel", "parallel", "arbitrary")
        ),
    )(q, k, v)

    if S_pad != S:
        out = out[:, :S, :]
    return out


class FlashAttentionParams:
    """Deterministically initialized parameters mirroring the nn.Module shapes."""

    def __init__(self, embed_size, num_heads, key):
        self.embed_size = embed_size
        self.num_heads = num_heads
        self.head_dim = embed_size // num_heads
        ks = jax.random.split(key, 8)
        scale = 1.0 / (embed_size ** 0.5)
        # weights stored as (in, out) so y = x @ W + b
        self.wq = jax.random.normal(ks[0], (embed_size, embed_size), jnp.float32) * scale
        self.bq = jax.random.normal(ks[1], (embed_size,), jnp.float32) * 0.01
        self.wk = jax.random.normal(ks[2], (embed_size, embed_size), jnp.float32) * scale
        self.bk = jax.random.normal(ks[3], (embed_size,), jnp.float32) * 0.01
        self.wv = jax.random.normal(ks[4], (embed_size, embed_size), jnp.float32) * scale
        self.bv = jax.random.normal(ks[5], (embed_size,), jnp.float32) * 0.01
        self.wo = jax.random.normal(ks[6], (embed_size, embed_size), jnp.float32) * scale
        self.bo = jax.random.normal(ks[7], (embed_size,), jnp.float32) * 0.01


def flash_attention_forward(params, x, q_block=512, kv_block=256,
                            attn_dtype=jnp.bfloat16):
    """Forward pass equivalent to FlashAttention.forward(x, use_flash_attention='v1')."""
    B, S, E = x.shape
    H = params.num_heads
    D = params.head_dim
    qk_scale = 1.0 / (D ** 0.5)

    # Fold 1/sqrt(d) into the Q projection (free — fused into an existing matmul).
    wq = (params.wq * qk_scale).reshape(E, H, D)
    bq = (params.bq * qk_scale).reshape(H, D)
    wk = params.wk.reshape(E, H, D)
    bk = params.bk.reshape(H, D)
    wv = params.wv.reshape(E, H, D)
    bv = params.bv.reshape(H, D)

    # Projections emitted directly in per-head layout: the head split/transpose
    # is folded into the projection einsum (no standalone transpose pass).
    Qh = jnp.einsum("bse,ehd->bhsd", x, wq) + bq[None, :, None, :]
    Kh = jnp.einsum("bse,ehd->bhsd", x, wk) + bk[None, :, None, :]
    Vh = jnp.einsum("bse,ehd->bhsd", x, wv) + bv[None, :, None, :]

    # Attention runs in attn_dtype (bf16 by default): halves Q/K/V/O HBM bytes
    # and runs the MXU at full bf16 rate; accumulation stays f32 in-kernel.
    Qh = Qh.reshape(B * H, S, D).astype(attn_dtype)
    Kh = Kh.reshape(B * H, S, D).astype(attn_dtype)
    Vh = Vh.reshape(B * H, S, D).astype(attn_dtype)

    # Hot path: Pallas flash-attention kernel (scale already folded into Q).
    Oh = flash_attention_v1(Qh, Kh, Vh, q_block=q_block, kv_block=kv_block, scale=1.0)

    # Merge heads fused into the output projection.
    Oh = Oh.reshape(B, H, S, D).astype(jnp.float32)
    out = jnp.einsum("bhsd,hde->bse", Oh, params.wo.reshape(H, D, E)) + params.bo
    return out


def _reference_forward(params, x, q_block=16, kv_block=16):
    """Pure-JAX re-implementation of the exact torch v1 recurrence (block size 16)."""
    B, S, E = x.shape
    H, D = params.num_heads, params.head_dim
    Q = (x @ params.wq + params.bq).reshape(B, S, H, D).transpose(0, 2, 1, 3)
    K = (x @ params.wk + params.bk).reshape(B, S, H, D).transpose(0, 2, 1, 3)
    V = (x @ params.wv + params.bv).reshape(B, S, H, D).transpose(0, 2, 1, 3)
    O = jnp.zeros_like(Q)
    L = jnp.zeros(Q.shape[:-1] + (1,), jnp.float32)
    M = jnp.full(Q.shape[:-1] + (1,), NEG_INF, jnp.float32)
    scale = 1.0 / (D ** 0.5)
    for j in range(0, S, kv_block):
        Kj = K[:, :, j:j + kv_block]
        Vj = V[:, :, j:j + kv_block]
        for i in range(0, S, q_block):
            Qi = Q[:, :, i:i + q_block]
            Sij = jnp.einsum("bhqd,bhkd->bhqk", Qi, Kj) * scale
            m_blk = jnp.max(Sij, axis=-1, keepdims=True)
            l_blk = jnp.sum(jnp.exp(Sij - m_blk), axis=-1, keepdims=True) + EPSILON
            mi = M[:, :, i:i + q_block]
            li = L[:, :, i:i + q_block]
            mi_new = jnp.maximum(mi, m_blk)
            li_new = li * jnp.exp(mi - mi_new) + l_blk * jnp.exp(m_blk - mi_new)
            pv = jnp.einsum("bhqk,bhkd->bhqd", jnp.exp(Sij - mi_new), Vj)
            Oi = O[:, :, i:i + q_block] * (li / li_new) * jnp.exp(mi - mi_new) + pv / li_new
            O = O.at[:, :, i:i + q_block].set(Oi)
            L = L.at[:, :, i:i + q_block].set(li_new)
            M = M.at[:, :, i:i + q_block].set(mi_new)
    out = O.transpose(0, 2, 1, 3).reshape(B, S, E)
    return out @ params.wo + params.bo


if __name__ == "__main__":
    # Exact f32 matmuls for the numerical comparison only; the production path
    # feeds bf16 operands to the kernel, which this setting does not change.
    jax.config.update("jax_default_matmul_precision", "highest")

    key = jax.random.PRNGKey(0)
    kp, kx = jax.random.split(key)

    # Small but TPU-friendly demo shapes: seq=128 fills one tile, head_dim=64
    # is blocked at its full extent (no padding to 128).
    batch, seq_len, embed_size, num_heads = 2, 128, 128, 2
    params = FlashAttentionParams(embed_size, num_heads, kp)
    x = jax.random.normal(kx, (batch, seq_len, embed_size), jnp.float32)

    ref = _reference_forward(params, x)   # torch-style recurrence, block size 16

    # f32 attention path — tight check against the reference recurrence.
    out_f32 = flash_attention_forward(params, x, attn_dtype=jnp.float32)
    out_f32 = jax.block_until_ready(out_f32)
    assert out_f32.shape == (batch, seq_len, embed_size)
    assert jnp.allclose(out_f32, ref, atol=2e-3, rtol=2e-3), "f32 mismatch vs reference"

    # bf16 attention path (default, production config) — looser tolerance.
    out_bf16 = flash_attention_forward(params, x)
    out_bf16 = jax.block_until_ready(out_bf16)
    assert out_bf16.shape == (batch, seq_len, embed_size)
    assert jnp.allclose(out_bf16, ref, atol=5e-2, rtol=5e-2), "bf16 mismatch vs reference"

    print("KERNEL_OK")
</pallas_src>

<mosaic_0001>
module attributes {stable_mosaic.version = 11 : i64} {
  func.func @_flash_v1_kernel(%arg0: i32, %arg1: i32, %arg2: i32, %arg3: memref<1x128x64xf32, #tpu.memory_space<vmem>>, %arg4: memref<1x128x64xf32, #tpu.memory_space<vmem>>, %arg5: memref<1x128x64xf32, #tpu.memory_space<vmem>>, %arg6: memref<1x128x64xf32, #tpu.memory_space<vmem>>, %arg7: memref<128x128xf32, #tpu.memory_space<vmem>>, %arg8: memref<128x128xf32, #tpu.memory_space<vmem>>, %arg9: memref<128x64xf32, #tpu.memory_space<vmem>>) attributes {dimension_semantics = [#tpu.dimension_semantics<parallel>, #tpu.dimension_semantics<parallel>, #tpu.dimension_semantics<arbitrary>], iteration_bounds = array<i64: 4, 1, 1>, scalar_prefetch = 0 : i64, scratch_operands = 3 : i64, tpu.core_type = #tpu.core_type<tc>, window_params = [{transform_indices = @transform_0, window_bounds = array<i64: 1, 128, 64>}, {transform_indices = @transform_1, window_bounds = array<i64: 1, 128, 64>}, {transform_indices = @transform_2, window_bounds = array<i64: 1, 128, 64>}, {transform_indices = @transform_3, window_bounds = array<i64: 1, 128, 64>}]} {
    %c0_i32 = arith.constant 0 : i32
    %0 = arith.cmpi eq, %arg2, %c0_i32 : i32
    %1 = arith.extui %0 : i1 to i32
    %c0_i32_0 = arith.constant 0 : i32
    %2 = arith.cmpi ne, %1, %c0_i32_0 : i32
    scf.if %2 {
      %cst_27 = arith.constant -1.000000e+10 : f32
      %46 = vector.broadcast %cst_27 : f32 to vector<128x128xf32>
      %c0_28 = arith.constant 0 : index
      %c0_29 = arith.constant 0 : index
      %47 = vector.load %arg7[%c0_28, %c0_29] : memref<128x128xf32, #tpu.memory_space<vmem>>, vector<128x128xf32>
      tpu.vector_store %arg7[%c0_28, %c0_29], %46 {strides = array<i32>} : memref<128x128xf32, #tpu.memory_space<vmem>>, vector<128x128xf32>,
      %cst_30 = arith.constant 0.000000e+00 : f32
      %48 = vector.broadcast %cst_30 : f32 to vector<128x128xf32>
      %c0_31 = arith.constant 0 : index
      %c0_32 = arith.constant 0 : index
      %49 = vector.load %arg8[%c0_31, %c0_32] : memref<128x128xf32, #tpu.memory_space<vmem>>, vector<128x128xf32>
      tpu.vector_store %arg8[%c0_31, %c0_32], %48 {strides = array<i32>} : memref<128x128xf32, #tpu.memory_space<vmem>>, vector<128x128xf32>,
      %cst_33 = arith.constant 0.000000e+00 : f32
      %50 = vector.broadcast %cst_33 : f32 to vector<128x64xf32>
      %c0_34 = arith.constant 0 : index
      %c0_35 = arith.constant 0 : index
      %51 = vector.load %arg9[%c0_34, %c0_35] : memref<128x64xf32, #tpu.memory_space<vmem>>, vector<128x64xf32>
      tpu.vector_store %arg9[%c0_34, %c0_35], %50 {strides = array<i32>} : memref<128x64xf32, #tpu.memory_space<vmem>>, vector<128x64xf32>,
    } else {
    }
    %c0 = arith.constant 0 : index
    %c0_1 = arith.constant 0 : index
    %c0_2 = arith.constant 0 : index
    %3 = vector.load %arg3[%c0, %c0_1, %c0_2] : memref<1x128x64xf32, #tpu.memory_space<vmem>>, vector<1x128x64xf32>
    %4 = vector.shape_cast %3 : vector<1x128x64xf32> to vector<128x64xf32>
    %c0_3 = arith.constant 0 : index
    %c0_4 = arith.constant 0 : index
    %c0_5 = arith.constant 0 : index
    %5 = vector.load %arg4[%c0_3, %c0_4, %c0_5] : memref<1x128x64xf32, #tpu.memory_space<vmem>>, vector<1x128x64xf32>
    %6 = vector.shape_cast %5 : vector<1x128x64xf32> to vector<128x64xf32>
    %c0_6 = arith.constant 0 : index
    %c0_7 = arith.constant 0 : index
    %c0_8 = arith.constant 0 : index
    %7 = vector.load %arg5[%c0_6, %c0_7, %c0_8] : memref<1x128x64xf32, #tpu.memory_space<vmem>>, vector<1x128x64xf32>
    %8 = vector.shape_cast %7 : vector<1x128x64xf32> to vector<128x64xf32>
    %cst = arith.constant dense<0.000000e+00> : vector<128x128xf32>
    %9 = tpu.matmul %4, %6, %cst {dimension_numbers = #tpu.dot_dimension_numbers<[1], [1], [0], [0], [0, 0, 1, 0], [], []>, precision = #tpu.contract_precision<fp32>} : vector<128x64xf32>, vector<128x64xf32>, vector<128x128xf32> -> vector<128x128xf32>
    %c0_9 = arith.constant 0 : index
    %c0_10 = arith.constant 0 : index
    %10 = vector.load %arg7[%c0_9, %c0_10] : memref<128x128xf32, #tpu.memory_space<vmem>>, vector<128x128xf32>
    %11 = vector.extract_strided_slice %10 {offsets = [0, 0], sizes = [128, 1], strides = [1, 1]} : vector<128x128xf32> to vector<128x1xf32>
    %c0_11 = arith.constant 0 : index
    %c0_12 = arith.constant 0 : index
    %12 = vector.load %arg8[%c0_11, %c0_12] : memref<128x128xf32, #tpu.memory_space<vmem>>, vector<128x128xf32>
    %13 = vector.extract_strided_slice %12 {offsets = [0, 0], sizes = [128, 1], strides = [1, 1]} : vector<128x128xf32> to vector<128x1xf32>
    %cst_13 = arith.constant dense<0xFF800000> : vector<128xf32>
    %14 = vector.multi_reduction <maximumf>, %9, %cst_13 [1] : vector<128x128xf32> to vector<128xf32>
    %15 = vector.shape_cast %14 : vector<128xf32> to vector<128x1xf32>
    %16 = arith.maximumf %11, %15 : vector<128x1xf32>
    %17 = arith.subf %11, %16 : vector<128x1xf32>
    %18 = math.exp %17 : vector<128x1xf32>
    %19 = vector.broadcast %16 : vector<128x1xf32> to vector<128x128xf32>
    %20 = arith.subf %9, %19 : vector<128x128xf32>
    %21 = math.exp %20 : vector<128x128xf32>
    %22 = arith.mulf %13, %18 : vector<128x1xf32>
    %cst_14 = arith.constant dense<0.000000e+00> : vector<128xf32>
    %23 = vector.multi_reduction <add>, %21, %cst_14 [1] : vector<128x128xf32> to vector<128xf32>
    %24 = vector.shape_cast %23 : vector<128xf32> to vector<128x1xf32>
    %25 = arith.addf %22, %24 : vector<128x1xf32>
    %26 = arith.subf %15, %16 : vector<128x1xf32>
    %27 = math.exp %26 : vector<128x1xf32>
    %cst_15 = arith.constant 9.99999997E-7 : f32
    %28 = vector.broadcast %cst_15 : f32 to vector<128x1xf32>
    %29 = arith.mulf %28, %27 : vector<128x1xf32>
    %30 = arith.addf %25, %29 : vector<128x1xf32>
    %cst_16 = arith.constant dense<0.000000e+00> : vector<128x64xf32>
    %31 = tpu.matmul %21, %8, %cst_16 {dimension_numbers = #tpu.dot_dimension_numbers<[1], [0], [0], [1], [0, 0, 1, 1], [], []>, precision = #tpu.contract_precision<fp32>} : vector<128x128xf32>, vector<128x64xf32>, vector<128x64xf32> -> vector<128x64xf32>
    %c0_17 = arith.constant 0 : index
    %c0_18 = arith.constant 0 : index
    %32 = vector.load %arg9[%c0_17, %c0_18] : memref<128x64xf32, #tpu.memory_space<vmem>>, vector<128x64xf32>
    %33 = vector.broadcast %18 : vector<128x1xf32> to vector<128x64xf32>
    %34 = arith.mulf %32, %33 : vector<128x64xf32>
    %35 = arith.addf %34, %31 : vector<128x64xf32>
    %c0_19 = arith.constant 0 : index
    %c0_20 = arith.constant 0 : index
    %36 = vector.load %arg9[%c0_19, %c0_20] : memref<128x64xf32, #tpu.memory_space<vmem>>, vector<128x64xf32>
    tpu.vector_store %arg9[%c0_19, %c0_20], %35 {strides = array<i32>} : memref<128x64xf32, #tpu.memory_space<vmem>>, vector<128x64xf32>,
    %37 = vector.shape_cast %16 : vector<128x1xf32> to vector<128x1xf32>
    %38 = vector.broadcast %37 : vector<128x1xf32> to vector<128x128xf32>
    %c0_21 = arith.constant 0 : index
    %c0_22 = arith.constant 0 : index
    %39 = vector.load %arg7[%c0_21, %c0_22] : memref<128x128xf32, #tpu.memory_space<vmem>>, vector<128x128xf32>
    tpu.vector_store %arg7[%c0_21, %c0_22], %38 {strides = array<i32>} : memref<128x128xf32, #tpu.memory_space<vmem>>, vector<128x128xf32>,
    %40 = vector.shape_cast %30 : vector<128x1xf32> to vector<128x1xf32>
    %41 = vector.broadcast %40 : vector<128x1xf32> to vector<128x128xf32>
    %c0_23 = arith.constant 0 : index
    %c0_24 = arith.constant 0 : index
    %42 = vector.load %arg8[%c0_23, %c0_24] : memref<128x128xf32, #tpu.memory_space<vmem>>, vector<128x128xf32>
    tpu.vector_store %arg8[%c0_23, %c0_24], %41 {strides = array<i32>} : memref<128x128xf32, #tpu.memory_space<vmem>>, vector<128x128xf32>,
    %c0_i32_25 = arith.constant 0 : i32
    %43 = arith.cmpi eq, %arg2, %c0_i32_25 : i32
    %44 = arith.extui %43 : i1 to i32
    %c0_i32_26 = arith.constant 0 : i32
    %45 = arith.cmpi ne, %44, %c0_i32_26 : i32
    scf.if %45 {
      %c0_27 = arith.constant 0 : index
      %c0_28 = arith.constant 0 : index
      %46 = vector.load %arg8[%c0_27, %c0_28] : memref<128x128xf32, #tpu.memory_space<vmem>>, vector<128x128xf32>
      %47 = vector.extract_strided_slice %46 {offsets = [0, 0], sizes = [128, 1], strides = [1, 1]} : vector<128x128xf32> to vector<128x1xf32>
      %48 = tpu.reciprocal %47 {approx = true} : vector<128x1xf32> -> vector<128x1xf32>
      %c0_29 = arith.constant 0 : index
      %c0_30 = arith.constant 0 : index
      %49 = vector.load %arg9[%c0_29, %c0_30] : memref<128x64xf32, #tpu.memory_space<vmem>>, vector<128x64xf32>
      %50 = vector.broadcast %48 : vector<128x1xf32> to vector<128x64xf32>
      %51 = arith.mulf %49, %50 : vector<128x64xf32>
      %c0_31 = arith.constant 0 : index
      %c0_32 = arith.constant 0 : index
      %c0_33 = arith.constant 0 : index
      %52 = vector.load %arg6[%c0_31, %c0_32, %c0_33] : memref<1x128x64xf32, #tpu.memory_space<vmem>>, vector<1x128x64xf32>
      %53 = vector.shape_cast %52 : vector<1x128x64xf32> to vector<128x64xf32>
      %54 = vector.shape_cast %51 : vector<128x64xf32> to vector<1x128x64xf32>
      tpu.vector_store %arg6[%c0_31, %c0_32, %c0_33], %54 {strides = array<i32>} : memref<1x128x64xf32, #tpu.memory_space<vmem>>, vector<1x128x64xf32>,
    } else {
    }
    return
  }
  func.func @transform_0(%arg0: i32, %arg1: i32, %arg2: i32) -> (i32, i32, i32) {
    %c0_i32 = arith.constant 0 : i32
    %c0_i32_0 = arith.constant 0 : i32
    return %arg0, %arg1, %c0_i32 : i32, i32, i32
  }
  func.func @transform_1(%arg0: i32, %arg1: i32, %arg2: i32) -> (i32, i32, i32) {
    %c0_i32 = arith.constant 0 : i32
    %c0_i32_0 = arith.constant 0 : i32
    return %arg0, %arg2, %c0_i32 : i32, i32, i32
  }
  func.func @transform_2(%arg0: i32, %arg1: i32, %arg2: i32) -> (i32, i32, i32) {
    %c0_i32 = arith.constant 0 : i32
    %c0_i32_0 = arith.constant 0 : i32
    return %arg0, %arg2, %c0_i32 : i32, i32, i32
  }
  func.func @transform_3(%arg0: i32, %arg1: i32, %arg2: i32) -> (i32, i32, i32) {
    %c0_i32 = arith.constant 0 : i32
    %c0_i32_0 = arith.constant 0 : i32
    return %arg0, %arg1, %c0_i32 : i32, i32, i32
  }
}

</mosaic_0001>

<llo_original>
// kernel: tpu_custom_call.1
$region0: #{tpu_custom_call.1}
  #allocation0 [shape = 'u32[]', space=smem, size = 0x4, offset = 0x4, fixed_abs, tag = 'smem constant byte address 0x4 - core index']
  #allocation1 [shape = 'u32[144,128]{1,0:T(1,128)}', space=vmem, size = 0x12000, scoped, tag = 'internal scratch']
  #allocation2 [shape = 'f32[128,128]{1,0:T(8,128)}', space=vmem, size = 0x10000, scoped, tag = 'scratch operand']
  #allocation3 [shape = 'f32[128,128]{1,0:T(8,128)}', space=vmem, size = 0x10000, scoped, tag = 'scratch operand']
  #allocation4 [shape = 'f32[128,64]{1,0:T(8,128)}', space=vmem, size = 0x10000, scoped, tag = 'scratch operand']
  %s0 = inlined_call_operand.vmem [shape: f32[4,128,64], index: 0, kind: input, shape index: {}]
  %s1 = inlined_call_operand.vmem [shape: f32[4,128,64], index: 1, kind: input, shape index: {}]
  %s2 = inlined_call_operand.vmem [shape: f32[4,128,64], index: 2, kind: input, shape index: {}]
  %s3 = inlined_call_operand.vmem [shape: f32[4,128,64], index: 3, kind: output, shape index: {}]
  %s4 = sld [smem:[#allocation0]]
  $region53: #{tpu_custom_call.1} parent=0
    _
  %s6 = ssub.s32 1, %s4
  %s7 = scalar_select 0, %s6, %s4
  loop: start=0, step=1, limit=6
  $region2: #{tpu_custom_call.1} parent=0 // loop_pre_header
    _
  $region3: #{tpu_custom_call.1} parent=0 // loop_header
    %s9 = sphi 0, %s13
    %p10 = scmp.ge.s32.totalorder %s9, 6
    %s16 = sphi 0, %s35
    %s17 = sphi 0, %s31
    %s18 = sphi 0, %s27
    %s19 = sphi 0, %s16
    %s20 = sphi 0, %s17
    %s21 = sphi 0, %s18
    %s22 = sphi 0, %s19
    %s23 = sphi 0, %s20
    %s24 = sphi 0, %s21
    %s40 = sphi 0, %s42
    %s43 = sphi 0, %s40
    %s44 = sphi 0, %s43
    %s60 = sphi 0, %s44
    %s68 = sphi 0, %s70
    %s71 = sphi 0, %s68
    %s72 = sphi 0, %s71
    %s88 = sphi 0, %s72
    %s96 = sphi 0, %s98
    %s99 = sphi 0, %s96
    %s100 = sphi 0, %s99
    %s116 = sphi 0, %s100
    %s124 = sphi 0, %s126
    %s127 = sphi 0, %s124
    %s128 = sphi 0, %s127
    %s144 = sphi 0, %s128
  $region4: #{tpu_custom_call.1} parent=0 // loop_header_branch
    %12 = sbr.rel (%p10) target = $region8
  $region5: #{tpu_custom_call.1} parent=0 // loop_body
    %s14 = ssub.s32 %s9, 1
    %s15 = ssub.s32 %s9, 2
    %s25 = sadd.s32 1, %s18
    %p26 = scmp.ge.s32.totalorder %s25, 1
    %s27 = scalar_select %p26, 0, %s25
    %s28 = sadd.s32 1, %s17
    %s29 = scalar_select %p26, %s28, %s17
    %p30 = scmp.ge.s32.totalorder %s29, 1
    %s31 = scalar_select %p30, 0, %s29
    %s32 = sadd.s32 1, %s16
    %s33 = scalar_select %p30, %s32, %s16
    %p34 = scmp.ge.s32.totalorder %s33, 4
    %s35 = scalar_select %p34, 0, %s33
    %s36 = ssub.s32 %s16, %s35
    %s37 = ssub.s32 %s17, %s31
    %s38 = sor.u32 %s36, %s37
    %p39 = scmp.eq.s32.totalorder %s38, 0
    %s41 = sadd.s32 %s40, 1
    %s42 = scalar_select %p39, %s40, %s41
    %p45 = pneg %p39
    %p46 = scmp.eq.s32.totalorder %s9, 3
    %p47 = por %p45, %p46
    %p48 = scmp.ne.s32.totalorder %s40, %s43
    %p49 = scmp.eq.s32.totalorder %s9, 0
    %p50 = por %p48, %p49
    %p51 = scmp.ne.s32.totalorder %s40, %s43
    %p52 = scmp.eq.s32.totalorder %s14, 3
    %p53 = por %p51, %p52
    %p54 = scmp.ne.s32.totalorder %s43, %s44
    %p55 = scmp.eq.s32.totalorder %s14, 0
    %p56 = por %p54, %p55
    %p57 = scmp.ne.s32.totalorder %s43, %s44
    %p58 = scmp.eq.s32.totalorder %s15, 3
    %p59 = por %p57, %p58
    %p61 = scmp.ne.s32.totalorder %s44, %s60
    %p62 = scmp.eq.s32.totalorder %s15, 0
    %p63 = por %p61, %p62
    %s64 = ssub.s32 %s16, %s35
    %s65 = ssub.s32 %s18, %s27
    %s66 = sor.u32 %s64, %s65
    %p67 = scmp.eq.s32.totalorder %s66, 0
    %s69 = sadd.s32 %s68, 1
    %s70 = scalar_select %p67, %s68, %s69
    %p73 = pneg %p67
    %p74 = scmp.eq.s32.totalorder %s9, 3
    %p75 = por %p73, %p74
    %p76 = scmp.ne.s32.totalorder %s68, %s71
    %p77 = scmp.eq.s32.totalorder %s9, 0
    %p78 = por %p76, %p77
    %p79 = scmp.ne.s32.totalorder %s68, %s71
    %p80 = scmp.eq.s32.totalorder %s14, 3
    %p81 = por %p79, %p80
    %p82 = scmp.ne.s32.totalorder %s71, %s72
    %p83 = scmp.eq.s32.totalorder %s14, 0
    %p84 = por %p82, %p83
    %p85 = scmp.ne.s32.totalorder %s71, %s72
    %p86 = scmp.eq.s32.totalorder %s15, 3
    %p87 = por %p85, %p86
    %p89 = scmp.ne.s32.totalorder %s72, %s88
    %p90 = scmp.eq.s32.totalorder %s15, 0
    %p91 = por %p89, %p90
    %s92 = ssub.s32 %s16, %s35
    %s93 = ssub.s32 %s18, %s27
    %s94 = sor.u32 %s92, %s93
    %p95 = scmp.eq.s32.totalorder %s94, 0
    %s97 = sadd.s32 %s96, 1
    %s98 = scalar_select %p95, %s96, %s97
    %p101 = pneg %p95
    %p102 = scmp.eq.s32.totalorder %s9, 3
    %p103 = por %p101, %p102
    %p104 = scmp.ne.s32.totalorder %s96, %s99
    %p105 = scmp.eq.s32.totalorder %s9, 0
    %p106 = por %p104, %p105
    %p107 = scmp.ne.s32.totalorder %s96, %s99
    %p108 = scmp.eq.s32.totalorder %s14, 3
    %p109 = por %p107, %p108
    %p110 = scmp.ne.s32.totalorder %s99, %s100
    %p111 = scmp.eq.s32.totalorder %s14, 0
    %p112 = por %p110, %p111
    %p113 = scmp.ne.s32.totalorder %s99, %s100
    %p114 = scmp.eq.s32.totalorder %s15, 3
    %p115 = por %p113, %p114
    %p117 = scmp.ne.s32.totalorder %s100, %s116
    %p118 = scmp.eq.s32.totalorder %s15, 0
    %p119 = por %p117, %p118
    %s120 = ssub.s32 %s16, %s35
    %s121 = ssub.s32 %s17, %s31
    %s122 = sor.u32 %s120, %s121
    %p123 = scmp.eq.s32.totalorder %s122, 0
    %s125 = sadd.s32 %s124, 1
    %s126 = scalar_select %p123, %s124, %s125
    %p129 = pneg %p123
    %p130 = scmp.eq.s32.totalorder %s9, 3
    %p131 = por %p129, %p130
    %p132 = scmp.ne.s32.totalorder %s124, %s127
    %p133 = scmp.eq.s32.totalorder %s9, 0
    %p134 = por %p132, %p133
    %p135 = scmp.ne.s32.totalorder %s124, %s127
    %p136 = scmp.eq.s32.totalorder %s14, 3
    %p137 = por %p135, %p136
    %p138 = scmp.ne.s32.totalorder %s127, %s128
    %p139 = scmp.eq.s32.totalorder %s14, 0
    %p140 = por %p138, %p139
    %p141 = scmp.ne.s32.totalorder %s127, %s128
    %p142 = scmp.eq.s32.totalorder %s15, 3
    %p143 = por %p141, %p142
    %p145 = scmp.ne.s32.totalorder %s128, %s144
    %p146 = scmp.eq.s32.totalorder %s15, 0
    %p147 = por %p145, %p146
    %p148 = scmp.le.s32.totalorder 1, %s9
    %p149 = scmp.lt.s32.totalorder %s9, 5
    %p150 = pnand %p148, %p149
    %p151 = pneg %p150
    // Predicated region
    $region9: #{tpu_custom_call.1} parent=5 // pred_check
      _
    $region10: #{tpu_custom_call.1} parent=5 // pred_check_branch
      %153 = sbr.rel (%p150) target = $region12
    $region11: #{tpu_custom_call.1} parent=5 // pred_region
      %s154 = ssub.s32 %s9, 1
    $region12: #{tpu_custom_call.1} parent=5 // pred_fallthru
      _
    %p155 = scmp.lt.s32.totalorder %s9, 4
    // Predicated region
    $region13: #{tpu_custom_call.1} parent=5 // pred_check
      %p156 = pneg %p155
    $region14: #{tpu_custom_call.1} parent=5 // pred_check_branch
      %158 = sbr.rel (%p156) target = $region16
    $region15: #{tpu_custom_call.1} parent=5 // pred_region
      // Predicated region
      $region17: #{tpu_custom_call.1} parent=15 // pred_check
        %p159 = pneg %p50
      $region18: #{tpu_custom_call.1} parent=15 // pred_check_branch
        %161 = sbr.rel (%p159) target = $region20
      $region19: #{tpu_custom_call.1} parent=15 // pred_region
        %s162 = smul.u32 16, %s17
        %p163 = scmp.lt.s32.totalorder %s16, 3
        %s164 = scalar_select %p163, %s16, 3
        %p165 = scmp.lt.s32.totalorder %s162, 15
        %s166 = scalar_select %p165, %s162, 15
        %s167 = smul.addr %s164, 16
        %s168 = sadd.s32 %s166, %s167
        %s169 = smul.addr %s168, 8
        %s170 = scalar_lea.vmem %s0, %s169
        %s171 = smul.u32 16, %s17
      $region20: #{tpu_custom_call.1} parent=15 // pred_fallthru
        _
      // Predicated region
      $region21: #{tpu_custom_call.1} parent=15 // pred_check
        %p172 = pneg %p78
      $region22: #{tpu_custom_call.1} parent=15 // pred_check_branch
        %174 = sbr.rel (%p172) target = $region24
      $region23: #{tpu_custom_call.1} parent=15 // pred_region
        %s175 = smul.u32 16, %s18
        %p176 = scmp.lt.s32.totalorder %s16, 3
        %s177 = scalar_select %p176, %s16, 3
        %p178 = scmp.lt.s32.totalorder %s175, 15
        %s179 = scalar_select %p178, %s175, 15
        %s180 = smul.addr %s177, 16
        %s181 = sadd.s32 %s179, %s180
        %s182 = smul.addr %s181, 8
        %s183 = scalar_lea.vmem %s1, %s182
        %s184 = smul.u32 16, %s18
      $region24: #{tpu_custom_call.1} parent=15 // pred_fallthru
        _
      // Predicated region
      $region25: #{tpu_custom_call.1} parent=15 // pred_check
        %p185 = pneg %p106
      $region26: #{tpu_custom_call.1} parent=15 // pred_check_branch
        %187 = sbr.rel (%p185) target = $region28
      $region27: #{tpu_custom_call.1} parent=15 // pred_region
        %s188 = smul.u32 16, %s18
        %p189 = scmp.lt.s32.totalorder %s16, 3
        %s190 = scalar_select %p189, %s16, 3
        %p191 = scmp.lt.s32.totalorder %s188, 15
        %s192 = scalar_select %p191, %s188, 15
        %s193 = smul.addr %s190, 16
        %s194 = sadd.s32 %s192, %s193
        %s195 = smul.addr %s194, 8
        %s196 = scalar_lea.vmem %s2, %s195
        %s197 = smul.u32 16, %s18
      $region28: #{tpu_custom_call.1} parent=15 // pred_fallthru
        _
    $region16: #{tpu_custom_call.1} parent=5 // pred_fallthru
      _
    %p198 = scmp.le.s32.totalorder 1, %s9
    %p199 = scmp.lt.s32.totalorder %s9, 5
    %p200 = pnand %p198, %p199
    %p201 = pneg %p200
    // Predicated region
    $region29: #{tpu_custom_call.1} parent=5 // pred_check
      _
    $region30: #{tpu_custom_call.1} parent=5 // pred_check_branch
      %203 = sbr.rel (%p200) target = $region32
    $region31: #{tpu_custom_call.1} parent=5 // pred_region
      %s204 = ssub.s32 %s9, 1
      %s205 = smul.u32 16, %s20
      %p206 = scmp.lt.s32.totalorder %s19, 3
      %s207 = scalar_select %p206, %s19, 3
      %p208 = scmp.lt.s32.totalorder %s205, 15
      %s209 = scalar_select %p208, %s205, 15
      %s210 = smul.addr %s207, 16
      %s211 = sadd.s32 %s209, %s210
      %s212 = smul.addr %s211, 8
      %s213 = scalar_lea.vmem %s0, %s212
      %p214 = pneg %p56
      %p215 = pneg %p53
      %s216 = smul.u32 16, %s21
      %p217 = scmp.lt.s32.totalorder %s19, 3
      %s218 = scalar_select %p217, %s19, 3
      %p219 = scmp.lt.s32.totalorder %s216, 15
      %s220 = scalar_select %p219, %s216, 15
      %s221 = smul.addr %s218, 16
      %s222 = sadd.s32 %s220, %s221
      %s223 = smul.addr %s222, 8
      %s224 = scalar_lea.vmem %s1, %s223
      %p225 = pneg %p84
      %p226 = pneg %p81
      %s227 = smul.u32 16, %s21
      %p228 = scmp.lt.s32.totalorder %s19, 3
      %s229 = scalar_select %p228, %s19, 3
      %p230 = scmp.lt.s32.totalorder %s227, 15
      %s231 = scalar_select %p230, %s227, 15
      %s232 = smul.addr %s229, 16
      %s233 = sadd.s32 %s231, %s232
      %s234 = smul.addr %s233, 8
      %s235 = scalar_lea.vmem %s2, %s234
      %p236 = pneg %p112
      %p237 = pneg %p109
      %p238 = pneg %p140
      %p239 = pneg %p137
      %s240 = smul.u32 16, %s20
      %p241 = scmp.lt.s32.totalorder %s19, 3
      %s242 = scalar_select %p241, %s19, 3
      %p243 = scmp.lt.s32.totalorder %s240, 15
      %s244 = scalar_select %p243, %s240, 15
      %s245 = smul.addr %s242, 16
      %s246 = sadd.s32 %s244, %s245
      %s247 = smul.addr %s246, 8
      %s248 = scalar_lea.vmem %s3, %s247
      %s249 = smul.u32 16, %s20
      %p250 = scmp.lt.s32.totalorder %s19, 3
      %s251 = scalar_select %p250, %s19, 3
      %p252 = scmp.lt.s32.totalorder %s249, 15
      %s253 = scalar_select %p252, %s249, 15
      %s254 = smul.addr %s251, 16
      %s255 = sadd.s32 %s253, %s254
      %s256 = smul.addr %s255, 8
      %s257 = scalar_lea.vmem %s0, %s256
      %s258 = smul.u32 16, %s20
      %s259 = smul.u32 16, %s21
      %p260 = scmp.lt.s32.totalorder %s19, 3
      %s261 = scalar_select %p260, %s19, 3
      %p262 = scmp.lt.s32.totalorder %s259, 15
      %s263 = scalar_select %p262, %s259, 15
      %s264 = smul.addr %s261, 16
      %s265 = sadd.s32 %s263, %s264
      %s266 = smul.addr %s265, 8
      %s267 = scalar_lea.vmem %s1, %s266
      %s268 = smul.u32 16, %s21
      %s269 = smul.u32 16, %s21
      %p270 = scmp.lt.s32.totalorder %s19, 3
      %s271 = scalar_select %p270, %s19, 3
      %p272 = scmp.lt.s32.totalorder %s269, 15
      %s273 = scalar_select %p272, %s269, 15
      %s274 = smul.addr %s271, 16
      %s275 = sadd.s32 %s273, %s274
      %s276 = smul.addr %s275, 8
      %s277 = scalar_lea.vmem %s2, %s276
      %s278 = smul.u32 16, %s21
      %s279 = smul.u32 16, %s20
      %p280 = scmp.lt.s32.totalorder %s19, 3
      %s281 = scalar_select %p280, %s19, 3
      %p282 = scmp.lt.s32.totalorder %s279, 15
      %s283 = scalar_select %p282, %s279, 15
      %s284 = smul.addr %s281, 16
      %s285 = sadd.s32 %s283, %s284
      %s286 = smul.addr %s285, 8
      %s287 = scalar_lea.vmem %s3, %s286
      %s288 = smul.u32 16, %s20
      %p289 = scmp.eq.s32.totalorder %s21, 0
      // Predicated region
      $region33: #{tpu_custom_call.1} parent=31 // pred_check
        %p290 = pneg %p289
      $region34: #{tpu_custom_call.1} parent=31 // pred_check_branch
        %292 = sbr.rel (%p290) target = $region36
      $region35: #{tpu_custom_call.1} parent=31 // pred_region
        %293 = vst [vmem:[#allocation2] sm:$0xff] -1e+10
        %294 = vst [vmem:[#allocation2 + $0x8] sm:$0xff] -1e+10
        %295 = vst [vmem:[#allocation2 + $0x10] sm:$0xff] -1e+10
        %296 = vst [vmem:[#allocation2 + $0x18] sm:$0xff] -1e+10
        %297 = vst [vmem:[#allocation2 + $0x20] sm:$0xff] -1e+10
        %298 = vst [vmem:[#allocation2 + $0x28] sm:$0xff] -1e+10
        %299 = vst [vmem:[#allocation2 + $0x30] sm:$0xff] -1e+10
        %300 = vst [vmem:[#allocation2 + $0x38] sm:$0xff] -1e+10
        %301 = vst [vmem:[#allocation2 + $0x40] sm:$0xff] -1e+10
        %302 = vst [vmem:[#allocation2 + $0x48] sm:$0xff] -1e+10
        %303 = vst [vmem:[#allocation2 + $0x50] sm:$0xff] -1e+10
        %304 = vst [vmem:[#allocation2 + $0x58] sm:$0xff] -1e+10
        %305 = vst [vmem:[#allocation2 + $0x60] sm:$0xff] -1e+10
        %306 = vst [vmem:[#allocation2 + $0x68] sm:$0xff] -1e+10
        %307 = vst [vmem:[#allocation2 + $0x70] sm:$0xff] -1e+10
        %308 = vst [vmem:[#allocation2 + $0x78] sm:$0xff] -1e+10
        %309 = vst [vmem:[#allocation3] sm:$0xff] 0.0
        %310 = vst [vmem:[#allocation3 + $0x8] sm:$0xff] 0.0
        %311 = vst [vmem:[#allocation3 + $0x10] sm:$0xff] 0.0
        %312 = vst [vmem:[#allocation3 + $0x18] sm:$0xff] 0.0
        %313 = vst [vmem:[#allocation3 + $0x20] sm:$0xff] 0.0
        %314 = vst [vmem:[#allocation3 + $0x28] sm:$0xff] 0.0
        %315 = vst [vmem:[#allocation3 + $0x30] sm:$0xff] 0.0
        %316 = vst [vmem:[#allocation3 + $0x38] sm:$0xff] 0.0
        %317 = vst [vmem:[#allocation3 + $0x40] sm:$0xff] 0.0
        %318 = vst [vmem:[#allocation3 + $0x48] sm:$0xff] 0.0
        %319 = vst [vmem:[#allocation3 + $0x50] sm:$0xff] 0.0
        %320 = vst [vmem:[#allocation3 + $0x58] sm:$0xff] 0.0
        %321 = vst [vmem:[#allocation3 + $0x60] sm:$0xff] 0.0
        %322 = vst [vmem:[#allocation3 + $0x68] sm:$0xff] 0.0
        %323 = vst [vmem:[#allocation3 + $0x70] sm:$0xff] 0.0
        %324 = vst [vmem:[#allocation3 + $0x78] sm:$0xff] 0.0
        %vm325 = vcmask 523264
        %326 = vst.msk [vmem:[#allocation4] sm:$0xff] %vm325, 0.0
        %327 = vst.msk [vmem:[#allocation4 + $0x8] sm:$0xff] %vm325, 0.0
        %328 = vst.msk [vmem:[#allocation4 + $0x10] sm:$0xff] %vm325, 0.0
        %329 = vst.msk [vmem:[#allocation4 + $0x18] sm:$0xff] %vm325, 0.0
        %330 = vst.msk [vmem:[#allocation4 + $0x20] sm:$0xff] %vm325, 0.0
        %331 = vst.msk [vmem:[#allocation4 + $0x28] sm:$0xff] %vm325, 0.0
        %332 = vst.msk [vmem:[#allocation4 + $0x30] sm:$0xff] %vm325, 0.0
        %333 = vst.msk [vmem:[#allocation4 + $0x38] sm:$0xff] %vm325, 0.0
        %334 = vst.msk [vmem:[#allocation4 + $0x40] sm:$0xff] %vm325, 0.0
        %335 = vst.msk [vmem:[#allocation4 + $0x48] sm:$0xff] %vm325, 0.0
        %336 = vst.msk [vmem:[#allocation4 + $0x50] sm:$0xff] %vm325, 0.0
        %337 = vst.msk [vmem:[#allocation4 + $0x58] sm:$0xff] %vm325, 0.0
        %338 = vst.msk [vmem:[#allocation4 + $0x60] sm:$0xff] %vm325, 0.0
        %339 = vst.msk [vmem:[#allocation4 + $0x68] sm:$0xff] %vm325, 0.0
        %340 = vst.msk [vmem:[#allocation4 + $0x70] sm:$0xff] %vm325, 0.0
        %341 = vst.msk [vmem:[#allocation4 + $0x78] sm:$0xff] %vm325, 0.0
      $region36: #{tpu_custom_call.1} parent=31 // pred_fallthru
        _
      %v342 = vld [vmem:[%s257] sm:$0xff]
      %v343 = vld [vmem:[%s257 + $0x8] sm:$0xff]
      %v344 = vld [vmem:[%s257 + $0x10] sm:$0xff]
      %v345 = vld [vmem:[%s257 + $0x18] sm:$0xff]
      %v346 = vld [vmem:[%s257 + $0x20] sm:$0xff]
      %v347 = vld [vmem:[%s257 + $0x28] sm:$0xff]
      %v348 = vld [vmem:[%s257 + $0x30] sm:$0xff]
      %v349 = vld [vmem:[%s257 + $0x38] sm:$0xff]
      %v350 = vld [vmem:[%s257 + $0x40] sm:$0xff]
      %v351 = vld [vmem:[%s257 + $0x48] sm:$0xff]
      %v352 = vld [vmem:[%s257 + $0x50] sm:$0xff]
      %v353 = vld [vmem:[%s257 + $0x58] sm:$0xff]
      %v354 = vld [vmem:[%s257 + $0x60] sm:$0xff]
      %v355 = vld [vmem:[%s257 + $0x68] sm:$0xff]
      %v356 = vld [vmem:[%s257 + $0x70] sm:$0xff]
      %v357 = vld [vmem:[%s257 + $0x78] sm:$0xff]
      %v358 = vld [vmem:[%s267] sm:$0xff]
      %v359 = vld [vmem:[%s267 + $0x8] sm:$0xff]
      %v360 = vld [vmem:[%s267 + $0x10] sm:$0xff]
      %v361 = vld [vmem:[%s267 + $0x18] sm:$0xff]
      %v362 = vld [vmem:[%s267 + $0x20] sm:$0xff]
      %v363 = vld [vmem:[%s267 + $0x28] sm:$0xff]
      %v364 = vld [vmem:[%s267 + $0x30] sm:$0xff]
      %v365 = vld [vmem:[%s267 + $0x38] sm:$0xff]
      %v366 = vld [vmem:[%s267 + $0x40] sm:$0xff]
      %v367 = vld [vmem:[%s267 + $0x48] sm:$0xff]
      %v368 = vld [vmem:[%s267 + $0x50] sm:$0xff]
      %v369 = vld [vmem:[%s267 + $0x58] sm:$0xff]
      %v370 = vld [vmem:[%s267 + $0x60] sm:$0xff]
      %v371 = vld [vmem:[%s267 + $0x68] sm:$0xff]
      %v372 = vld [vmem:[%s267 + $0x70] sm:$0xff]
      %v373 = vld [vmem:[%s267 + $0x78] sm:$0xff]
      %v374 = vld [vmem:[%s277] sm:$0xff]
      %v375 = vld [vmem:[%s277 + $0x8] sm:$0xff]
      %v376 = vld [vmem:[%s277 + $0x10] sm:$0xff]
      %v377 = vld [vmem:[%s277 + $0x18] sm:$0xff]
      %v378 = vld [vmem:[%s277 + $0x20] sm:$0xff]
      %v379 = vld [vmem:[%s277 + $0x28] sm:$0xff]
      %v380 = vld [vmem:[%s277 + $0x30] sm:$0xff]
      %v381 = vld [vmem:[%s277 + $0x38] sm:$0xff]
      %v382 = vld [vmem:[%s277 + $0x40] sm:$0xff]
      %v383 = vld [vmem:[%s277 + $0x48] sm:$0xff]
      %v384 = vld [vmem:[%s277 + $0x50] sm:$0xff]
      %v385 = vld [vmem:[%s277 + $0x58] sm:$0xff]
      %v386 = vld [vmem:[%s277 + $0x60] sm:$0xff]
      %v387 = vld [vmem:[%s277 + $0x68] sm:$0xff]
      %v388 = vld [vmem:[%s277 + $0x70] sm:$0xff]
      %v389 = vld [vmem:[%s277 + $0x78] sm:$0xff]
      %vm390 = vcmask 523264
      %v392 = vsel %vm390, %v342, 0
      %v395 = vsel %vm390, %v343, 0
      %v398 = vsel %vm390, %v344, 0
      %v401 = vsel %vm390, %v345, 0
      %v404 = vsel %vm390, %v346, 0
      %v407 = vsel %vm390, %v347, 0
      %v410 = vsel %vm390, %v348, 0
      %v413 = vsel %vm390, %v349, 0
      %v416 = vsel %vm390, %v350, 0
      %v419 = vsel %vm390, %v351, 0
      %v422 = vsel %vm390, %v352, 0
      %v425 = vsel %vm390, %v353, 0
      %v428 = vsel %vm390, %v354, 0
      %v431 = vsel %vm390, %v355, 0
      %v434 = vsel %vm390, %v356, 0
      %v437 = vsel %vm390, %v357, 0
      %v440 = vsel %vm390, %v358, 0
      %v443 = vsel %vm390, %v359, 0
      %v446 = vsel %vm390, %v360, 0
      %v449 = vsel %vm390, %v361, 0
      %v452 = vsel %vm390, %v362, 0
      %v455 = vsel %vm390, %v363, 0
      %v458 = vsel %vm390, %v364, 0
      %v461 = vsel %vm390, %v365, 0
      %v464 = vsel %vm390, %v366, 0
      %v467 = vsel %vm390, %v367, 0
      %v470 = vsel %vm390, %v368, 0
      %v473 = vsel %vm390, %v369, 0
      %v476 = vsel %vm390, %v370, 0
      %v479 = vsel %vm390, %v371, 0
      %v482 = vsel %vm390, %v372, 0
      %v485 = vsel %vm390, %v373, 0
      %487 = vmatprep.subr.mxu0 0.0
      %v488 = vand.u32 %v440, 4294901760
      %489 = vmatpush1.xpose.msra.mxu0 %v488
      %490 = vmatprep.subr.mxu0 0.0
      %v491 = vand.u32 %v443, 4294901760
      %492 = vmatpush1.xpose.msra.mxu0 %v491
      %493 = vmatprep.subr.mxu0 0.0
      %v494 = vand.u32 %v446, 4294901760
      %495 = vmatpush1.xpose.msra.mxu0 %v494
      %496 = vmatprep.subr.mxu0 0.0
      %v497 = vand.u32 %v449, 4294901760
      %498 = vmatpush1.xpose.msra.mxu0 %v497
      %499 = vmatprep.subr.mxu0 0.0
      %v500 = vand.u32 %v452, 4294901760
      %501 = vmatpush1.xpose.msra.mxu0 %v500
      %502 = vmatprep.subr.mxu0 0.0
      %v503 = vand.u32 %v455, 4294901760
      %504 = vmatpush1.xpose.msra.mxu0 %v503
      %505 = vmatprep.subr.mxu0 0.0
      %v506 = vand.u32 %v458, 4294901760
      %507 = vmatpush1.xpose.msra.mxu0 %v506
      %508 = vmatprep.subr.mxu0 0.0
      %v509 = vand.u32 %v461, 4294901760
      %510 = vmatpush1.xpose.msra.mxu0 %v509
      %511 = vmatprep.subr.mxu0 0.0
      %v512 = vand.u32 %v464, 4294901760
      %513 = vmatpush1.xpose.msra.mxu0 %v512
      %514 = vmatprep.subr.mxu0 0.0
      %v515 = vand.u32 %v467, 4294901760
      %516 = vmatpush1.xpose.msra.mxu0 %v515
      %517 = vmatprep.subr.mxu0 0.0
      %v518 = vand.u32 %v470, 4294901760
      %519 = vmatpush1.xpose.msra.mxu0 %v518
      %520 = vmatprep.subr.mxu0 0.0
      %v521 = vand.u32 %v473, 4294901760
      %522 = vmatpush1.xpose.msra.mxu0 %v521
      %523 = vmatprep.subr.mxu0 0.0
      %v524 = vand.u32 %v476, 4294901760
      %525 = vmatpush1.xpose.msra.mxu0 %v524
      %526 = vmatprep.subr.mxu0 0.0
      %v527 = vand.u32 %v479, 4294901760
      %528 = vmatpush1.xpose.msra.mxu0 %v527
      %529 = vmatprep.subr.mxu0 0.0
      %v530 = vand.u32 %v482, 4294901760
      %531 = vmatpush1.xpose.msra.mxu0 %v530
      %532 = vmatprep.subr.mxu0 0.0
      %v533 = vand.u32 %v485, 4294901760
      %534 = vmatpush1.xpose.msra.mxu0 %v533
      %535 = vmatprep.subr.mxu0 0.0
      %536 = vmatpush1.xpose.msra.mxu0 0.0
      %537 = vmatprep.subr.mxu0 0.0
      %538 = vmatpush1.xpose.msra.mxu0 0.0
      %539 = vmatprep.subr.mxu0 0.0
      %540 = vmatpush1.xpose.msra.mxu0 0.0
      %541 = vmatprep.subr.mxu0 0.0
      %542 = vmatpush1.xpose.msra.mxu0 0.0
      %543 = vmatprep.subr.mxu0 0.0
      %544 = vmatpush1.xpose.msra.mxu0 0.0
      %545 = vmatprep.subr.mxu0 0.0
      %546 = vmatpush1.xpose.msra.mxu0 0.0
      %547 = vmatprep.subr.mxu0 0.0
      %548 = vmatpush1.xpose.msra.mxu0 0.0
      %549 = vmatprep.subr.mxu0 0.0
      %550 = vmatpush1.xpose.msra.mxu0 0.0
      %551 = vmatprep.subr.mxu0 0.0
      %552 = vmatpush1.xpose.msra.mxu0 0.0
      %553 = vmatprep.subr.mxu0 0.0
      %554 = vmatpush1.xpose.msra.mxu0 0.0
      %555 = vmatprep.subr.mxu0 0.0
      %556 = vmatpush1.xpose.msra.mxu0 0.0
      %557 = vmatprep.subr.mxu0 0.0
      %558 = vmatpush1.xpose.msra.mxu0 0.0
      %559 = vmatprep.subr.mxu0 0.0
      %560 = vmatpush1.xpose.msra.mxu0 0.0
      %561 = vmatprep.subr.mxu0 0.0
      %562 = vmatpush1.xpose.msra.mxu0 0.0
      %563 = vmatprep.subr.mxu0 0.0
      %564 = vmatpush1.xpose.msra.mxu0 0.0
      %565 = vmatprep.subr.mxu0 0.0
      %566 = vmatpush1.xpose.msra.mxu0 0.0
      %567 = vmatprep.mubr.f32.mxu0 0.0
      %v568 = vand.u32 %v392, 4294901760
      %v569 = vsub.f32 %v392, %v568
      %v570 = vand.u32 %v569, 4294901760
      %v571 = vsub.f32 %v569, %v570
      %v572 = vand.u32 %v571, 4294901760
      %573 = vmatmul.mubr.f32.gmra.mrb[0].mxu0 %v572
      %v574 = vpop.f32.mrb[0].mxu0
      %v575 = vadd.f32 0.0, %v574
      %v576 = vpop.f32.mrb[0].mxu0
      %577 = vmatprep.mubr.f32.mxu0 0.0
      %v578 = vand.u32 %v395, 4294901760
      %v579 = vsub.f32 %v395, %v578
      %v580 = vand.u32 %v579, 4294901760
      %v581 = vsub.f32 %v579, %v580
      %v582 = vand.u32 %v581, 4294901760
      %583 = vmatmul.mubr.f32.gmra.mrb[0].mxu0 %v582
      %v584 = vpop.f32.mrb[0].mxu0
      %v585 = vadd.f32 0.0, %v584
      %v586 = vpop.f32.mrb[0].mxu0
      %587 = vmatprep.mubr.f32.mxu0 0.0
      %v588 = vand.u32 %v398, 4294901760
      %v589 = vsub.f32 %v398, %v588
      %v590 = vand.u32 %v589, 4294901760
      %v591 = vsub.f32 %v589, %v590
      %v592 = vand.u32 %v591, 4294901760
      %593 = vmatmul.mubr.f32.gmra.mrb[0].mxu0 %v592
      %v594 = vpop.f32.mrb[0].mxu0
      %v595 = vadd.f32 0.0, %v594
      %v596 = vpop.f32.mrb[0].mxu0
      %597 = vmatprep.mubr.f32.mxu0 0.0
      %v598 = vand.u32 %v401, 4294901760
      %v599 = vsub.f32 %v401, %v598
      %v600 = vand.u32 %v599, 4294901760
      %v601 = vsub.f32 %v599, %v600
      %v602 = vand.u32 %v601, 4294901760
      %603 = vmatmul.mubr.f32.gmra.mrb[0].mxu0 %v602
      %v604 = vpop.f32.mrb[0].mxu0
      %v605 = vadd.f32 0.0, %v604
      %v606 = vpop.f32.mrb[0].mxu0
      %607 = vmatprep.mubr.f32.mxu0 0.0
      %v608 = vand.u32 %v404, 4294901760
      %v609 = vsub.f32 %v404, %v608
      %v610 = vand.u32 %v609, 4294901760
      %v611 = vsub.f32 %v609, %v610
      %v612 = vand.u32 %v611, 4294901760
      %613 = vmatmul.mubr.f32.gmra.mrb[0].mxu0 %v612
      %v614 = vpop.f32.mrb[0].mxu0
      %v615 = vadd.f32 0.0, %v614
      %v616 = vpop.f32.mrb[0].mxu0
      %617 = vmatprep.mubr.f32.mxu0 0.0
      %v618 = vand.u32 %v407, 4294901760
      %v619 = vsub.f32 %v407, %v618
      %v620 = vand.u32 %v619, 4294901760
      %v621 = vsub.f32 %v619, %v620
      %v622 = vand.u32 %v621, 4294901760
      %623 = vmatmul.mubr.f32.gmra.mrb[0].mxu0 %v622
      %v624 = vpop.f32.mrb[0].mxu0
      %v625 = vadd.f32 0.0, %v624
      %v626 = vpop.f32.mrb[0].mxu0
      %627 = vmatprep.mubr.f32.mxu0 0.0
      %v628 = vand.u32 %v410, 4294901760
      %v629 = vsub.f32 %v410, %v628
      %v630 = vand.u32 %v629, 4294901760
      %v631 = vsub.f32 %v629, %v630
      %v632 = vand.u32 %v631, 4294901760
      %633 = vmatmul.mubr.f32.gmra.mrb[0].mxu0 %v632
      %v634 = vpop.f32.mrb[0].mxu0
      %v635 = vadd.f32 0.0, %v634
      %v636 = vpop.f32.mrb[0].mxu0
      %637 = vmatprep.mubr.f32.mxu0 0.0
      %v638 = vand.u32 %v413, 4294901760
      %v639 = vsub.f32 %v413, %v638
      %v640 = vand.u32 %v639, 4294901760
      %v641 = vsub.f32 %v639, %v640
      %v642 = vand.u32 %v641, 4294901760
      %643 = vmatmul.mubr.f32.gmra.mrb[0].mxu0 %v642
      %v644 = vpop.f32.mrb[0].mxu0
      %v645 = vadd.f32 0.0, %v644
      %v646 = vpop.f32.mrb[0].mxu0
      %647 = vmatprep.mubr.f32.mxu0 0.0
      %v648 = vand.u32 %v416, 4294901760
      %v649 = vsub.f32 %v416, %v648
      %v650 = vand.u32 %v649, 4294901760
      %v651 = vsub.f32 %v649, %v650
      %v652 = vand.u32 %v651, 4294901760
      %653 = vmatmul.mubr.f32.gmra.mrb[0].mxu0 %v652
      %v654 = vpop.f32.mrb[0].mxu0
      %v655 = vadd.f32 0.0, %v654
      %v656 = vpop.f32.mrb[0].mxu0
      %657 = vmatprep.mubr.f32.mxu0 0.0
      %v658 = vand.u32 %v419, 4294901760
      %v659 = vsub.f32 %v419, %v658
      %v660 = vand.u32 %v659, 4294901760
      %v661 = vsub.f32 %v659, %v660
      %v662 = vand.u32 %v661, 4294901760
      %663 = vmatmul.mubr.f32.gmra.mrb[0].mxu0 %v662
      %v664 = vpop.f32.mrb[0].mxu0
      %v665 = vadd.f32 0.0, %v664
      %v666 = vpop.f32.mrb[0].mxu0
      %667 = vmatprep.mubr.f32.mxu0 0.0
      %v668 = vand.u32 %v422, 4294901760
      %v669 = vsub.f32 %v422, %v668
      %v670 = vand.u32 %v669, 4294901760
      %v671 = vsub.f32 %v669, %v670
      %v672 = vand.u32 %v671, 4294901760
      %673 = vmatmul.mubr.f32.gmra.mrb[0].mxu0 %v672
      %v674 = vpop.f32.mrb[0].mxu0
      %v675 = vadd.f32 0.0, %v674
      %v676 = vpop.f32.mrb[0].mxu0
      %677 = vmatprep.mubr.f32.mxu0 0.0
      %v678 = vand.u32 %v425, 4294901760
      %v679 = vsub.f32 %v425, %v678
      %v680 = vand.u32 %v679, 4294901760
      %v681 = vsub.f32 %v679, %v680
      %v682 = vand.u32 %v681, 4294901760
      %683 = vmatmul.mubr.f32.gmra.mrb[0].mxu0 %v682
      %v684 = vpop.f32.mrb[0].mxu0
      %v685 = vadd.f32 0.0, %v684
      %v686 = vpop.f32.mrb[0].mxu0
      %687 = vmatprep.mubr.f32.mxu0 0.0
      %v688 = vand.u32 %v428, 4294901760
      %v689 = vsub.f32 %v428, %v688
      %v690 = vand.u32 %v689, 4294901760
      %v691 = vsub.f32 %v689, %v690
      %v692 = vand.u32 %v691, 4294901760
      %693 = vmatmul.mubr.f32.gmra.mrb[0].mxu0 %v692
      %v694 = vpop.f32.mrb[0].mxu0
      %v695 = vadd.f32 0.0, %v694
      %v696 = vpop.f32.mrb[0].mxu0
      %697 = vmatprep.mubr.f32.mxu0 0.0
      %v698 = vand.u32 %v431, 4294901760
      %v699 = vsub.f32 %v431, %v698
      %v700 = vand.u32 %v699, 4294901760
      %v701 = vsub.f32 %v699, %v700
      %v702 = vand.u32 %v701, 4294901760
      %703 = vmatmul.mubr.f32.gmra.mrb[0].mxu0 %v702
      %v704 = vpop.f32.mrb[0].mxu0
      %v705 = vadd.f32 0.0, %v704
      %v706 = vpop.f32.mrb[0].mxu0
      %707 = vmatprep.mubr.f32.mxu0 0.0
      %v708 = vand.u32 %v434, 4294901760
      %v709 = vsub.f32 %v434, %v708
      %v710 = vand.u32 %v709, 4294901760
      %v711 = vsub.f32 %v709, %v710
      %v712 = vand.u32 %v711, 4294901760
      %713 = vmatmul.mubr.f32.gmra.mrb[0].mxu0 %v712
      %v714 = vpop.f32.mrb[0].mxu0
      %v715 = vadd.f32 0.0, %v714
      %v716 = vpop.f32.mrb[0].mxu0
      %717 = vmatprep.mubr.f32.mxu0 0.0
      %v718 = vand.u32 %v437, 4294901760
      %v719 = vsub.f32 %v437, %v718
      %v720 = vand.u32 %v719, 4294901760
      %v721 = vsub.f32 %v719, %v720
      %v722 = vand.u32 %v721, 4294901760
      %723 = vmatmul.mubr.f32.gmra.mrb[0].mxu0 %v722
      %v724 = vpop.f32.mrb[0].mxu0
      %v725 = vadd.f32 0.0, %v724
      %v726 = vpop.f32.mrb[0].mxu0
      %727 = vdwg.mxu0
      %728 = vmatprep.subr.mxu0 0.0
      %v729 = vand.u32 %v440, 4294901760
      %v730 = vsub.f32 %v440, %v729
      %v731 = vand.u32 %v730, 4294901760
      %v732 = vsub.f32 %v730, %v731
      %v733 = vand.u32 %v732, 4294901760
      %734 = vmatpush1.xpose.msra.mxu0 %v733
      %735 = vmatprep.subr.mxu0 0.0
      %v736 = vand.u32 %v443, 4294901760
      %v737 = vsub.f32 %v443, %v736
      %v738 = vand.u32 %v737, 4294901760
      %v739 = vsub.f32 %v737, %v738
      %v740 = vand.u32 %v739, 4294901760
      %741 = vmatpush1.xpose.msra.mxu0 %v740
      %742 = vmatprep.subr.mxu0 0.0
      %v743 = vand.u32 %v446, 4294901760
      %v744 = vsub.f32 %v446, %v743
      %v745 = vand.u32 %v744, 4294901760
      %v746 = vsub.f32 %v744, %v745
      %v747 = vand.u32 %v746, 4294901760
      %748 = vmatpush1.xpose.msra.mxu0 %v747
      %749 = vmatprep.subr.mxu0 0.0
      %v750 = vand.u32 %v449, 4294901760
      %v751 = vsub.f32 %v449, %v750
      %v752 = vand.u32 %v751, 4294901760
      %v753 = vsub.f32 %v751, %v752
      %v754 = vand.u32 %v753, 4294901760
      %755 = vmatpush1.xpose.msra.mxu0 %v754
      %756 = vmatprep.subr.mxu0 0.0
      %v757 = vand.u32 %v452, 4294901760
      %v758 = vsub.f32 %v452, %v757
      %v759 = vand.u32 %v758, 4294901760
      %v760 = vsub.f32 %v758, %v759
      %v761 = vand.u32 %v760, 4294901760
      %762 = vmatpush1.xpose.msra.mxu0 %v761
      %763 = vmatprep.subr.mxu0 0.0
      %v764 = vand.u32 %v455, 4294901760
      %v765 = vsub.f32 %v455, %v764
      %v766 = vand.u32 %v765, 4294901760
      %v767 = vsub.f32 %v765, %v766
      %v768 = vand.u32 %v767, 4294901760
      %769 = vmatpush1.xpose.msra.mxu0 %v768
      %770 = vmatprep.subr.mxu0 0.0
      %v771 = vand.u32 %v458, 4294901760
      %v772 = vsub.f32 %v458, %v771
      %v773 = vand.u32 %v772, 4294901760
      %v774 = vsub.f32 %v772, %v773
      %v775 = vand.u32 %v774, 4294901760
      %776 = vmatpush1.xpose.msra.mxu0 %v775
      %777 = vmatprep.subr.mxu0 0.0
      %v778 = vand.u32 %v461, 4294901760
      %v779 = vsub.f32 %v461, %v778
      %v780 = vand.u32 %v779, 4294901760
      %v781 = vsub.f32 %v779, %v780
      %v782 = vand.u32 %v781, 4294901760
      %783 = vmatpush1.xpose.msra.mxu0 %v782
      %784 = vmatprep.subr.mxu0 0.0
      %v785 = vand.u32 %v464, 4294901760
      %v786 = vsub.f32 %v464, %v785
      %v787 = vand.u32 %v786, 4294901760
      %v788 = vsub.f32 %v786, %v787
      %v789 = vand.u32 %v788, 4294901760
      %790 = vmatpush1.xpose.msra.mxu0 %v789
      %791 = vmatprep.subr.mxu0 0.0
      %v792 = vand.u32 %v467, 4294901760
      %v793 = vsub.f32 %v467, %v792
      %v794 = vand.u32 %v793, 4294901760
      %v795 = vsub.f32 %v793, %v794
      %v796 = vand.u32 %v795, 4294901760
      %797 = vmatpush1.xpose.msra.mxu0 %v796
      %798 = vmatprep.subr.mxu0 0.0
      %v799 = vand.u32 %v470, 4294901760
      %v800 = vsub.f32 %v470, %v799
      %v801 = vand.u32 %v800, 4294901760
      %v802 = vsub.f32 %v800, %v801
      %v803 = vand.u32 %v802, 4294901760
      %804 = vmatpush1.xpose.msra.mxu0 %v803
      %805 = vmatprep.subr.mxu0 0.0
      %v806 = vand.u32 %v473, 4294901760
      %v807 = vsub.f32 %v473, %v806
      %v808 = vand.u32 %v807, 4294901760
      %v809 = vsub.f32 %v807, %v808
      %v810 = vand.u32 %v809, 4294901760
      %811 = vmatpush1.xpose.msra.mxu0 %v810
      %812 = vmatprep.subr.mxu0 0.0
      %v813 = vand.u32 %v476, 4294901760
      %v814 = vsub.f32 %v476, %v813
      %v815 = vand.u32 %v814, 4294901760
      %v816 = vsub.f32 %v814, %v815
      %v817 = vand.u32 %v816, 4294901760
      %818 = vmatpush1.xpose.msra.mxu0 %v817
      %819 = vmatprep.subr.mxu0 0.0
      %v820 = vand.u32 %v479, 4294901760
      %v821 = vsub.f32 %v479, %v820
      %v822 = vand.u32 %v821, 4294901760
      %v823 = vsub.f32 %v821, %v822
      %v824 = vand.u32 %v823, 4294901760
      %825 = vmatpush1.xpose.msra.mxu0 %v824
      %826 = vmatprep.subr.mxu0 0.0
      %v827 = vand.u32 %v482, 4294901760
      %v828 = vsub.f32 %v482, %v827
      %v829 = vand.u32 %v828, 4294901760
      %v830 = vsub.f32 %v828, %v829
      %v831 = vand.u32 %v830, 4294901760
      %832 = vmatpush1.xpose.msra.mxu0 %v831
      %833 = vmatprep.subr.mxu0 0.0
      %v834 = vand.u32 %v485, 4294901760
      %v835 = vsub.f32 %v485, %v834
      %v836 = vand.u32 %v835, 4294901760
      %v837 = vsub.f32 %v835, %v836
      %v838 = vand.u32 %v837, 4294901760
      %839 = vmatpush1.xpose.msra.mxu0 %v838
      %840 = vmatprep.subr.mxu0 0.0
      %841 = vmatpush1.xpose.msra.mxu0 0.0
      %842 = vmatprep.subr.mxu0 0.0
      %843 = vmatpush1.xpose.msra.mxu0 0.0
      %844 = vmatprep.subr.mxu0 0.0
      %845 = vmatpush1.xpose.msra.mxu0 0.0
      %846 = vmatprep.subr.mxu0 0.0
      %847 = vmatpush1.xpose.msra.mxu0 0.0
      %848 = vmatprep.subr.mxu0 0.0
      %849 = vmatpush1.xpose.msra.mxu0 0.0
      %850 = vmatprep.subr.mxu0 0.0
      %851 = vmatpush1.xpose.msra.mxu0 0.0
      %852 = vmatprep.subr.mxu0 0.0
      %853 = vmatpush1.xpose.msra.mxu0 0.0
      %854 = vmatprep.subr.mxu0 0.0
      %855 = vmatpush1.xpose.msra.mxu0 0.0
      %856 = vmatprep.subr.mxu0 0.0
      %857 = vmatpush1.xpose.msra.mxu0 0.0
      %858 = vmatprep.subr.mxu0 0.0
      %859 = vmatpush1.xpose.msra.mxu0 0.0
      %860 = vmatprep.subr.mxu0 0.0
      %861 = vmatpush1.xpose.msra.mxu0 0.0
      %862 = vmatprep.subr.mxu0 0.0
      %863 = vmatpush1.xpose.msra.mxu0 0.0
      %864 = vmatprep.subr.mxu0 0.0
      %865 = vmatpush1.xpose.msra.mxu0 0.0
      %866 = vmatprep.subr.mxu0 0.0
      %867 = vmatpush1.xpose.msra.mxu0 0.0
      %868 = vmatprep.subr.mxu0 0.0
      %869 = vmatpush1.xpose.msra.mxu0 0.0
      %870 = vmatprep.subr.mxu0 0.0
      %871 = vmatpush1.xpose.msra.mxu0 0.0
      %872 = vmatprep.mubr.f32.mxu0 0.0
      %v873 = vand.u32 %v392, 4294901760
      %874 = vmatmul.mubr.f32.gmra.mrb[0].mxu0 %v873
      %v875 = vpop.f32.mrb[0].mxu0
      %v876 = vadd.f32 %v575, %v875
      %v877 = vpop.f32.mrb[0].mxu0
      %878 = vmatprep.mubr.f32.mxu0 0.0
      %v879 = vand.u32 %v395, 4294901760
      %880 = vmatmul.mubr.f32.gmra.mrb[0].mxu0 %v879
      %v881 = vpop.f32.mrb[0].mxu0
      %v882 = vadd.f32 %v585, %v881
      %v883 = vpop.f32.mrb[0].mxu0
      %884 = vmatprep.mubr.f32.mxu0 0.0
      %v885 = vand.u32 %v398, 4294901760
      %886 = vmatmul.mubr.f32.gmra.mrb[0].mxu0 %v885
      %v887 = vpop.f32.mrb[0].mxu0
      %v888 = vadd.f32 %v595, %v887
      %v889 = vpop.f32.mrb[0].mxu0
      %890 = vmatprep.mubr.f32.mxu0 0.0
      %v891 = vand.u32 %v401, 4294901760
      %892 = vmatmul.mubr.f32.gmra.mrb[0].mxu0 %v891
      %v893 = vpop.f32.mrb[0].mxu0
      %v894 = vadd.f32 %v605, %v893
      %v895 = vpop.f32.mrb[0].mxu0
      %896 = vmatprep.mubr.f32.mxu0 0.0
      %v897 = vand.u32 %v404, 4294901760
      %898 = vmatmul.mubr.f32.gmra.mrb[0].mxu0 %v897
      %v899 = vpop.f32.mrb[0].mxu0
      %v900 = vadd.f32 %v615, %v899
      %v901 = vpop.f32.mrb[0].mxu0
      %902 = vmatprep.mubr.f32.mxu0 0.0
      %v903 = vand.u32 %v407, 4294901760
      %904 = vmatmul.mubr.f32.gmra.mrb[0].mxu0 %v903
      %v905 = vpop.f32.mrb[0].mxu0
      %v906 = vadd.f32 %v625, %v905
      %v907 = vpop.f32.mrb[0].mxu0
      %908 = vmatprep.mubr.f32.mxu0 0.0
      %v909 = vand.u32 %v410, 4294901760
      %910 = vmatmul.mubr.f32.gmra.mrb[0].mxu0 %v909
      %v911 = vpop.f32.mrb[0].mxu0
      %v912 = vadd.f32 %v635, %v911
      %v913 = vpop.f32.mrb[0].mxu0
      %914 = vmatprep.mubr.f32.mxu0 0.0
      %v915 = vand.u32 %v413, 4294901760
      %916 = vmatmul.mubr.f32.gmra.mrb[0].mxu0 %v915
      %v917 = vpop.f32.mrb[0].mxu0
      %v918 = vadd.f32 %v645, %v917
      %v919 = vpop.f32.mrb[0].mxu0
      %920 = vmatprep.mubr.f32.mxu0 0.0
      %v921 = vand.u32 %v416, 4294901760
      %922 = vmatmul.mubr.f32.gmra.mrb[0].mxu0 %v921
      %v923 = vpop.f32.mrb[0].mxu0
      %v924 = vadd.f32 %v655, %v923
      %v925 = vpop.f32.mrb[0].mxu0
      %926 = vmatprep.mubr.f32.mxu0 0.0
      %v927 = vand.u32 %v419, 4294901760
      %928 = vmatmul.mubr.f32.gmra.mrb[0].mxu0 %v927
      %v929 = vpop.f32.mrb[0].mxu0
      %v930 = vadd.f32 %v665, %v929
      %v931 = vpop.f32.mrb[0].mxu0
      %932 = vmatprep.mubr.f32.mxu0 0.0
      %v933 = vand.u32 %v422, 4294901760
      %934 = vmatmul.mubr.f32.gmra.mrb[0].mxu0 %v933
      %v935 = vpop.f32.mrb[0].mxu0
      %v936 = vadd.f32 %v675, %v935
      %v937 = vpop.f32.mrb[0].mxu0
      %938 = vmatprep.mubr.f32.mxu0 0.0
      %v939 = vand.u32 %v425, 4294901760
      %940 = vmatmul.mubr.f32.gmra.mrb[0].mxu0 %v939
      %v941 = vpop.f32.mrb[0].mxu0
      %v942 = vadd.f32 %v685, %v941
      %v943 = vpop.f32.mrb[0].mxu0
      %944 = vmatprep.mubr.f32.mxu0 0.0
      %v945 = vand.u32 %v428, 4294901760
      %946 = vmatmul.mubr.f32.gmra.mrb[0].mxu0 %v945
      %v947 = vpop.f32.mrb[0].mxu0
      %v948 = vadd.f32 %v695, %v947
      %v949 = vpop.f32.mrb[0].mxu0
      %950 = vmatprep.mubr.f32.mxu0 0.0
      %v951 = vand.u32 %v431, 4294901760
      %952 = vmatmul.mubr.f32.gmra.mrb[0].mxu0 %v951
      %v953 = vpop.f32.mrb[0].mxu0
      %v954 = vadd.f32 %v705, %v953
      %v955 = vpop.f32.mrb[0].mxu0
      %956 = vmatprep.mubr.f32.mxu0 0.0
      %v957 = vand.u32 %v434, 4294901760
      %958 = vmatmul.mubr.f32.gmra.mrb[0].mxu0 %v957
      %v959 = vpop.f32.mrb[0].mxu0
      %v960 = vadd.f32 %v715, %v959
      %v961 = vpop.f32.mrb[0].mxu0
      %962 = vmatprep.mubr.f32.mxu0 0.0
      %v963 = vand.u32 %v437, 4294901760
      %964 = vmatmul.mubr.f32.gmra.mrb[0].mxu0 %v963
      %v965 = vpop.f32.mrb[0].mxu0
      %v966 = vadd.f32 %v725, %v965
      %v967 = vpop.f32.mrb[0].mxu0
      %968 = vdwg.mxu0
      %969 = vmatprep.subr.mxu0 0.0
      %v970 = vand.u32 %v440, 4294901760
      %v971 = vsub.f32 %v440, %v970
      %972 = vmatpush1.xpose.msra.mxu0 %v971
      %973 = vmatprep.subr.mxu0 0.0
      %v974 = vand.u32 %v443, 4294901760
      %v975 = vsub.f32 %v443, %v974
      %976 = vmatpush1.xpose.msra.mxu0 %v975
      %977 = vmatprep.subr.mxu0 0.0
      %v978 = vand.u32 %v446, 4294901760
      %v979 = vsub.f32 %v446, %v978
      %980 = vmatpush1.xpose.msra.mxu0 %v979
      %981 = vmatprep.subr.mxu0 0.0
      %v982 = vand.u32 %v449, 4294901760
      %v983 = vsub.f32 %v449, %v982
      %984 = vmatpush1.xpose.msra.mxu0 %v983
      %985 = vmatprep.subr.mxu0 0.0
      %v986 = vand.u32 %v452, 4294901760
      %v987 = vsub.f32 %v452, %v986
      %988 = vmatpush1.xpose.msra.mxu0 %v987
      %989 = vmatprep.subr.mxu0 0.0
      %v990 = vand.u32 %v455, 4294901760
      %v991 = vsub.f32 %v455, %v990
      %992 = vmatpush1.xpose.msra.mxu0 %v991
      %993 = vmatprep.subr.mxu0 0.0
      %v994 = vand.u32 %v458, 4294901760
      %v995 = vsub.f32 %v458, %v994
      %996 = vmatpush1.xpose.msra.mxu0 %v995
      %997 = vmatprep.subr.mxu0 0.0
      %v998 = vand.u32 %v461, 4294901760
      %v999 = vsub.f32 %v461, %v998
      %1000 = vmatpush1.xpose.msra.mxu0 %v999
      %1001 = vmatprep.subr.mxu0 0.0
      %v1002 = vand.u32 %v464, 4294901760
      %v1003 = vsub.f32 %v464, %v1002
      %1004 = vmatpush1.xpose.msra.mxu0 %v1003
      %1005 = vmatprep.subr.mxu0 0.0
      %v1006 = vand.u32 %v467, 4294901760
      %v1007 = vsub.f32 %v467, %v1006
      %1008 = vmatpush1.xpose.msra.mxu0 %v1007
      %1009 = vmatprep.subr.mxu0 0.0
      %v1010 = vand.u32 %v470, 4294901760
      %v1011 = vsub.f32 %v470, %v1010
      %1012 = vmatpush1.xpose.msra.mxu0 %v1011
      %1013 = vmatprep.subr.mxu0 0.0
      %v1014 = vand.u32 %v473, 4294901760
      %v1015 = vsub.f32 %v473, %v1014
      %1016 = vmatpush1.xpose.msra.mxu0 %v1015
      %1017 = vmatprep.subr.mxu0 0.0
      %v1018 = vand.u32 %v476, 4294901760
      %v1019 = vsub.f32 %v476, %v1018
      %1020 = vmatpush1.xpose.msra.mxu0 %v1019
      %1021 = vmatprep.subr.mxu0 0.0
      %v1022 = vand.u32 %v479, 4294901760
      %v1023 = vsub.f32 %v479, %v1022
      %1024 = vmatpush1.xpose.msra.mxu0 %v1023
      %1025 = vmatprep.subr.mxu0 0.0
      %v1026 = vand.u32 %v482, 4294901760
      %v1027 = vsub.f32 %v482, %v1026
      %1028 = vmatpush1.xpose.msra.mxu0 %v1027
      %1029 = vmatprep.subr.mxu0 0.0
      %v1030 = vand.u32 %v485, 4294901760
      %v1031 = vsub.f32 %v485, %v1030
      %1032 = vmatpush1.xpose.msra.mxu0 %v1031
      %1033 = vmatprep.subr.mxu0 0.0
      %1034 = vmatpush1.xpose.msra.mxu0 0.0
      %1035 = vmatprep.subr.mxu0 0.0
      %1036 = vmatpush1.xpose.msra.mxu0 0.0
      %1037 = vmatprep.subr.mxu0 0.0
      %1038 = vmatpush1.xpose.msra.mxu0 0.0
      %1039 = vmatprep.subr.mxu0 0.0
      %1040 = vmatpush1.xpose.msra.mxu0 0.0
      %1041 = vmatprep.subr.mxu0 0.0
      %1042 = vmatpush1.xpose.msra.mxu0 0.0
      %1043 = vmatprep.subr.mxu0 0.0
      %1044 = vmatpush1.xpose.msra.mxu0 0.0
      %1045 = vmatprep.subr.mxu0 0.0
      %1046 = vmatpush1.xpose.msra.mxu0 0.0
      %1047 = vmatprep.subr.mxu0 0.0
      %1048 = vmatpush1.xpose.msra.mxu0 0.0
      %1049 = vmatprep.subr.mxu0 0.0
      %1050 = vmatpush1.xpose.msra.mxu0 0.0
      %1051 = vmatprep.subr.mxu0 0.0
      %1052 = vmatpush1.xpose.msra.mxu0 0.0
      %1053 = vmatprep.subr.mxu0 0.0
      %1054 = vmatpush1.xpose.msra.mxu0 0.0
      %1055 = vmatprep.subr.mxu0 0.0
      %1056 = vmatpush1.xpose.msra.mxu0 0.0
      %1057 = vmatprep.subr.mxu0 0.0
      %1058 = vmatpush1.xpose.msra.mxu0 0.0
      %1059 = vmatprep.subr.mxu0 0.0
      %1060 = vmatpush1.xpose.msra.mxu0 0.0
      %1061 = vmatprep.subr.mxu0 0.0
      %1062 = vmatpush1.xpose.msra.mxu0 0.0
      %1063 = vmatprep.subr.mxu0 0.0
      %1064 = vmatpush1.xpose.msra.mxu0 0.0
      %1065 = vmatprep.mubr.f32.mxu0 0.0
      %v1066 = vand.u32 %v392, 4294901760
      %v1067 = vsub.f32 %v392, %v1066
      %1068 = vmatmul.mubr.f32.gmra.mrb[0].mxu0 %v1067
      %v1069 = vpop.f32.mrb[0].mxu0
      %v1070 = vadd.f32 %v876, %v1069
      %v1071 = vpop.f32.mrb[0].mxu0
      %1072 = vmatprep.mubr.f32.mxu0 0.0
      %v1073 = vand.u32 %v395, 4294901760
      %v1074 = vsub.f32 %v395, %v1073
      %1075 = vmatmul.mubr.f32.gmra.mrb[0].mxu0 %v1074
      %v1076 = vpop.f32.mrb[0].mxu0
      %v1077 = vadd.f32 %v882, %v1076
      %v1078 = vpop.f32.mrb[0].mxu0
      %1079 = vmatprep.mubr.f32.mxu0 0.0
      %v1080 = vand.u32 %v398, 4294901760
      %v1081 = vsub.f32 %v398, %v1080
      %1082 = vmatmul.mubr.f32.gmra.mrb[0].mxu0 %v1081
      %v1083 = vpop.f32.mrb[0].mxu0
      %v1084 = vadd.f32 %v888, %v1083
      %v1085 = vpop.f32.mrb[0].mxu0
      %1086 = vmatprep.mubr.f32.mxu0 0.0
      %v1087 = vand.u32 %v401, 4294901760
      %v1088 = vsub.f32 %v401, %v1087
      %1089 = vmatmul.mubr.f32.gmra.mrb[0].mxu0 %v1088
      %v1090 = vpop.f32.mrb[0].mxu0
      %v1091 = vadd.f32 %v894, %v1090
      %v1092 = vpop.f32.mrb[0].mxu0
      %1093 = vmatprep.mubr.f32.mxu0 0.0
      %v1094 = vand.u32 %v404, 4294901760
      %v1095 = vsub.f32 %v404, %v1094
      %1096 = vmatmul.mubr.f32.gmra.mrb[0].mxu0 %v1095
      %v1097 = vpop.f32.mrb[0].mxu0
      %v1098 = vadd.f32 %v900, %v1097
      %v1099 = vpop.f32.mrb[0].mxu0
      %1100 = vmatprep.mubr.f32.mxu0 0.0
      %v1101 = vand.u32 %v407, 4294901760
      %v1102 = vsub.f32 %v407, %v1101
      %1103 = vmatmul.mubr.f32.gmra.mrb[0].mxu0 %v1102
      %v1104 = vpop.f32.mrb[0].mxu0
      %v1105 = vadd.f32 %v906, %v1104
      %v1106 = vpop.f32.mrb[0].mxu0
      %1107 = vmatprep.mubr.f32.mxu0 0.0
      %v1108 = vand.u32 %v410, 4294901760
      %v1109 = vsub.f32 %v410, %v1108
      %1110 = vmatmul.mubr.f32.gmra.mrb[0].mxu0 %v1109
      %v1111 = vpop.f32.mrb[0].mxu0
      %v1112 = vadd.f32 %v912, %v1111
      %v1113 = vpop.f32.mrb[0].mxu0
      %1114 = vmatprep.mubr.f32.mxu0 0.0
      %v1115 = vand.u32 %v413, 4294901760
      %v1116 = vsub.f32 %v413, %v1115
      %1117 = vmatmul.mubr.f32.gmra.mrb[0].mxu0 %v1116
      %v1118 = vpop.f32.mrb[0].mxu0
      %v1119 = vadd.f32 %v918, %v1118
      %v1120 = vpop.f32.mrb[0].mxu0
      %1121 = vmatprep.mubr.f32.mxu0 0.0
      %v1122 = vand.u32 %v416, 4294901760
      %v1123 = vsub.f32 %v416, %v1122
      %1124 = vmatmul.mubr.f32.gmra.mrb[0].mxu0 %v1123
      %v1125 = vpop.f32.mrb[0].mxu0
      %v1126 = vadd.f32 %v924, %v1125
      %v1127 = vpop.f32.mrb[0].mxu0
      %1128 = vmatprep.mubr.f32.mxu0 0.0
      %v1129 = vand.u32 %v419, 4294901760
      %v1130 = vsub.f32 %v419, %v1129
      %1131 = vmatmul.mubr.f32.gmra.mrb[0].mxu0 %v1130
      %v1132 = vpop.f32.mrb[0].mxu0
      %v1133 = vadd.f32 %v930, %v1132
      %v1134 = vpop.f32.mrb[0].mxu0
      %1135 = vmatprep.mubr.f32.mxu0 0.0
      %v1136 = vand.u32 %v422, 4294901760
      %v1137 = vsub.f32 %v422, %v1136
      %1138 = vmatmul.mubr.f32.gmra.mrb[0].mxu0 %v1137
      %v1139 = vpop.f32.mrb[0].mxu0
      %v1140 = vadd.f32 %v936, %v1139
      %v1141 = vpop.f32.mrb[0].mxu0
      %1142 = vmatprep.mubr.f32.mxu0 0.0
      %v1143 = vand.u32 %v425, 4294901760
      %v1144 = vsub.f32 %v425, %v1143
      %1145 = vmatmul.mubr.f32.gmra.mrb[0].mxu0 %v1144
      %v1146 = vpop.f32.mrb[0].mxu0
      %v1147 = vadd.f32 %v942, %v1146
      %v1148 = vpop.f32.mrb[0].mxu0
      %1149 = vmatprep.mubr.f32.mxu0 0.0
      %v1150 = vand.u32 %v428, 4294901760
      %v1151 = vsub.f32 %v428, %v1150
      %1152 = vmatmul.mubr.f32.gmra.mrb[0].mxu0 %v1151
      %v1153 = vpop.f32.mrb[0].mxu0
      %v1154 = vadd.f32 %v948, %v1153
      %v1155 = vpop.f32.mrb[0].mxu0
      %1156 = vmatprep.mubr.f32.mxu0 0.0
      %v1157 = vand.u32 %v431, 4294901760
      %v1158 = vsub.f32 %v431, %v1157
      %1159 = vmatmul.mubr.f32.gmra.mrb[0].mxu0 %v1158
      %v1160 = vpop.f32.mrb[0].mxu0
      %v1161 = vadd.f32 %v954, %v1160
      %v1162 = vpop.f32.mrb[0].mxu0
      %1163 = vmatprep.mubr.f32.mxu0 0.0
      %v1164 = vand.u32 %v434, 4294901760
      %v1165 = vsub.f32 %v434, %v1164
      %1166 = vmatmul.mubr.f32.gmra.mrb[0].mxu0 %v1165
      %v1167 = vpop.f32.mrb[0].mxu0
      %v1168 = vadd.f32 %v960, %v1167
      %v1169 = vpop.f32.mrb[0].mxu0
      %1170 = vmatprep.mubr.f32.mxu0 0.0
      %v1171 = vand.u32 %v437, 4294901760
      %v1172 = vsub.f32 %v437, %v1171
      %1173 = vmatmul.mubr.f32.gmra.mrb[0].mxu0 %v1172
      %v1174 = vpop.f32.mrb[0].mxu0
      %v1175 = vadd.f32 %v966, %v1174
      %v1176 = vpop.f32.mrb[0].mxu0
      %1177 = vdwg.mxu0
      %1178 = vmatprep.subr.mxu0 0.0
      %v1179 = vand.u32 %v440, 4294901760
      %1180 = vmatpush1.xpose.msra.mxu0 %v1179
      %1181 = vmatprep.subr.mxu0 0.0
      %v1182 = vand.u32 %v443, 4294901760
      %1183 = vmatpush1.xpose.msra.mxu0 %v1182
      %1184 = vmatprep.subr.mxu0 0.0
      %v1185 = vand.u32 %v446, 4294901760
      %1186 = vmatpush1.xpose.msra.mxu0 %v1185
      %1187 = vmatprep.subr.mxu0 0.0
      %v1188 = vand.u32 %v449, 4294901760
      %1189 = vmatpush1.xpose.msra.mxu0 %v1188
      %1190 = vmatprep.subr.mxu0 0.0
      %v1191 = vand.u32 %v452, 4294901760
      %1192 = vmatpush1.xpose.msra.mxu0 %v1191
      %1193 = vmatprep.subr.mxu0 0.0
      %v1194 = vand.u32 %v455, 4294901760
      %1195 = vmatpush1.xpose.msra.mxu0 %v1194
      %1196 = vmatprep.subr.mxu0 0.0
      %v1197 = vand.u32 %v458, 4294901760
      %1198 = vmatpush1.xpose.msra.mxu0 %v1197
      %1199 = vmatprep.subr.mxu0 0.0
      %v1200 = vand.u32 %v461, 4294901760
      %1201 = vmatpush1.xpose.msra.mxu0 %v1200
      %1202 = vmatprep.subr.mxu0 0.0
      %v1203 = vand.u32 %v464, 4294901760
      %1204 = vmatpush1.xpose.msra.mxu0 %v1203
      %1205 = vmatprep.subr.mxu0 0.0
      %v1206 = vand.u32 %v467, 4294901760
      %1207 = vmatpush1.xpose.msra.mxu0 %v1206
      %1208 = vmatprep.subr.mxu0 0.0
      %v1209 = vand.u32 %v470, 4294901760
      %1210 = vmatpush1.xpose.msra.mxu0 %v1209
      %1211 = vmatprep.subr.mxu0 0.0
      %v1212 = vand.u32 %v473, 4294901760
      %1213 = vmatpush1.xpose.msra.mxu0 %v1212
      %1214 = vmatprep.subr.mxu0 0.0
      %v1215 = vand.u32 %v476, 4294901760
      %1216 = vmatpush1.xpose.msra.mxu0 %v1215
      %1217 = vmatprep.subr.mxu0 0.0
      %v1218 = vand.u32 %v479, 4294901760
      %1219 = vmatpush1.xpose.msra.mxu0 %v1218
      %1220 = vmatprep.subr.mxu0 0.0
      %v1221 = vand.u32 %v482, 4294901760
      %1222 = vmatpush1.xpose.msra.mxu0 %v1221
      %1223 = vmatprep.subr.mxu0 0.0
      %v1224 = vand.u32 %v485, 4294901760
      %1225 = vmatpush1.xpose.msra.mxu0 %v1224
      %1226 = vmatprep.subr.mxu0 0.0
      %1227 = vmatpush1.xpose.msra.mxu0 0.0
      %1228 = vmatprep.subr.mxu0 0.0
      %1229 = vmatpush1.xpose.msra.mxu0 0.0
      %1230 = vmatprep.subr.mxu0 0.0
      %1231 = vmatpush1.xpose.msra.mxu0 0.0
      %1232 = vmatprep.subr.mxu0 0.0
      %1233 = vmatpush1.xpose.msra.mxu0 0.0
      %1234 = vmatprep.subr.mxu0 0.0
      %1235 = vmatpush1.xpose.msra.mxu0 0.0
      %1236 = vmatprep.subr.mxu0 0.0
      %1237 = vmatpush1.xpose.msra.mxu0 0.0
      %1238 = vmatprep.subr.mxu0 0.0
      %1239 = vmatpush1.xpose.msra.mxu0 0.0
      %1240 = vmatprep.subr.mxu0 0.0
      %1241 = vmatpush1.xpose.msra.mxu0 0.0
      %1242 = vmatprep.subr.mxu0 0.0
      %1243 = vmatpush1.xpose.msra.mxu0 0.0
      %1244 = vmatprep.subr.mxu0 0.0
      %1245 = vmatpush1.xpose.msra.mxu0 0.0
      %1246 = vmatprep.subr.mxu0 0.0
      %1247 = vmatpush1.xpose.msra.mxu0 0.0
      %1248 = vmatprep.subr.mxu0 0.0
      %1249 = vmatpush1.xpose.msra.mxu0 0.0
      %1250 = vmatprep.subr.mxu0 0.0
      %1251 = vmatpush1.xpose.msra.mxu0 0.0
      %1252 = vmatprep.subr.mxu0 0.0
      %1253 = vmatpush1.xpose.msra.mxu0 0.0
      %1254 = vmatprep.subr.mxu0 0.0
      %1255 = vmatpush1.xpose.msra.mxu0 0.0
      %1256 = vmatprep.subr.mxu0 0.0
      %1257 = vmatpush1.xpose.msra.mxu0 0.0
      %1258 = vmatprep.mubr.f32.mxu0 0.0
      %v1259 = vand.u32 %v392, 4294901760
      %v1260 = vsub.f32 %v392, %v1259
      %v1261 = vand.u32 %v1260, 4294901760
      %1262 = vmatmul.mubr.f32.gmra.mrb[0].mxu0 %v1261
      %v1263 = vpop.f32.mrb[0].mxu0
      %v1264 = vadd.f32 %v1070, %v1263
      %v1265 = vpop.f32.mrb[0].mxu0
      %1266 = vmatprep.mubr.f32.mxu0 0.0
      %v1267 = vand.u32 %v395, 4294901760
      %v1268 = vsub.f32 %v395, %v1267
      %v1269 = vand.u32 %v1268, 4294901760
      %1270 = vmatmul.mubr.f32.gmra.mrb[0].mxu0 %v1269
      %v1271 = vpop.f32.mrb[0].mxu0
      %v1272 = vadd.f32 %v1077, %v1271
      %v1273 = vpop.f32.mrb[0].mxu0
      %1274 = vmatprep.mubr.f32.mxu0 0.0
      %v1275 = vand.u32 %v398, 4294901760
      %v1276 = vsub.f32 %v398, %v1275
      %v1277 = vand.u32 %v1276, 4294901760
      %1278 = vmatmul.mubr.f32.gmra.mrb[0].mxu0 %v1277
      %v1279 = vpop.f32.mrb[0].mxu0
      %v1280 = vadd.f32 %v1084, %v1279
      %v1281 = vpop.f32.mrb[0].mxu0
      %1282 = vmatprep.mubr.f32.mxu0 0.0
      %v1283 = vand.u32 %v401, 4294901760
      %v1284 = vsub.f32 %v401, %v1283
      %v1285 = vand.u32 %v1284, 4294901760
      %1286 = vmatmul.mubr.f32.gmra.mrb[0].mxu0 %v1285
      %v1287 = vpop.f32.mrb[0].mxu0
      %v1288 = vadd.f32 %v1091, %v1287
      %v1289 = vpop.f32.mrb[0].mxu0
      %1290 = vmatprep.mubr.f32.mxu0 0.0
      %v1291 = vand.u32 %v404, 4294901760
      %v1292 = vsub.f32 %v404, %v1291
      %v1293 = vand.u32 %v1292, 4294901760
      %1294 = vmatmul.mubr.f32.gmra.mrb[0].mxu0 %v1293
      %v1295 = vpop.f32.mrb[0].mxu0
      %v1296 = vadd.f32 %v1098, %v1295
      %v1297 = vpop.f32.mrb[0].mxu0
      %1298 = vmatprep.mubr.f32.mxu0 0.0
      %v1299 = vand.u32 %v407, 4294901760
      %v1300 = vsub.f32 %v407, %v1299
      %v1301 = vand.u32 %v1300, 4294901760
      %1302 = vmatmul.mubr.f32.gmra.mrb[0].mxu0 %v1301
      %v1303 = vpop.f32.mrb[0].mxu0
      %v1304 = vadd.f32 %v1105, %v1303
      %v1305 = vpop.f32.mrb[0].mxu0
      %1306 = vmatprep.mubr.f32.mxu0 0.0
      %v1307 = vand.u32 %v410, 4294901760
      %v1308 = vsub.f32 %v410, %v1307
      %v1309 = vand.u32 %v1308, 4294901760
      %1310 = vmatmul.mubr.f32.gmra.mrb[0].mxu0 %v1309
      %v1311 = vpop.f32.mrb[0].mxu0
      %v1312 = vadd.f32 %v1112, %v1311
      %v1313 = vpop.f32.mrb[0].mxu0
      %1314 = vmatprep.mubr.f32.mxu0 0.0
      %v1315 = vand.u32 %v413, 4294901760
      %v1316 = vsub.f32 %v413, %v1315
      %v1317 = vand.u32 %v1316, 4294901760
      %1318 = vmatmul.mubr.f32.gmra.mrb[0].mxu0 %v1317
      %v1319 = vpop.f32.mrb[0].mxu0
      %v1320 = vadd.f32 %v1119, %v1319
      %v1321 = vpop.f32.mrb[0].mxu0
      %1322 = vmatprep.mubr.f32.mxu0 0.0
      %v1323 = vand.u32 %v416, 4294901760
      %v1324 = vsub.f32 %v416, %v1323
      %v1325 = vand.u32 %v1324, 4294901760
      %1326 = vmatmul.mubr.f32.gmra.mrb[0].mxu0 %v1325
      %v1327 = vpop.f32.mrb[0].mxu0
      %v1328 = vadd.f32 %v1126, %v1327
      %v1329 = vpop.f32.mrb[0].mxu0
      %1330 = vmatprep.mubr.f32.mxu0 0.0
      %v1331 = vand.u32 %v419, 4294901760
      %v1332 = vsub.f32 %v419, %v1331
      %v1333 = vand.u32 %v1332, 4294901760
      %1334 = vmatmul.mubr.f32.gmra.mrb[0].mxu0 %v1333
      %v1335 = vpop.f32.mrb[0].mxu0
      %v1336 = vadd.f32 %v1133, %v1335
      %v1337 = vpop.f32.mrb[0].mxu0
      %1338 = vmatprep.mubr.f32.mxu0 0.0
      %v1339 = vand.u32 %v422, 4294901760
      %v1340 = vsub.f32 %v422, %v1339
      %v1341 = vand.u32 %v1340, 4294901760
      %1342 = vmatmul.mubr.f32.gmra.mrb[0].mxu0 %v1341
      %v1343 = vpop.f32.mrb[0].mxu0
      %v1344 = vadd.f32 %v1140, %v1343
      %v1345 = vpop.f32.mrb[0].mxu0
      %1346 = vmatprep.mubr.f32.mxu0 0.0
      %v1347 = vand.u32 %v425, 4294901760
      %v1348 = vsub.f32 %v425, %v1347
      %v1349 = vand.u32 %v1348, 4294901760
      %1350 = vmatmul.mubr.f32.gmra.mrb[0].mxu0 %v1349
      %v1351 = vpop.f32.mrb[0].mxu0
      %v1352 = vadd.f32 %v1147, %v1351
      %v1353 = vpop.f32.mrb[0].mxu0
      %1354 = vmatprep.mubr.f32.mxu0 0.0
      %v1355 = vand.u32 %v428, 4294901760
      %v1356 = vsub.f32 %v428, %v1355
      %v1357 = vand.u32 %v1356, 4294901760
      %1358 = vmatmul.mubr.f32.gmra.mrb[0].mxu0 %v1357
      %v1359 = vpop.f32.mrb[0].mxu0
      %v1360 = vadd.f32 %v1154, %v1359
      %v1361 = vpop.f32.mrb[0].mxu0
      %1362 = vmatprep.mubr.f32.mxu0 0.0
      %v1363 = vand.u32 %v431, 4294901760
      %v1364 = vsub.f32 %v431, %v1363
      %v1365 = vand.u32 %v1364, 4294901760
      %1366 = vmatmul.mubr.f32.gmra.mrb[0].mxu0 %v1365
      %v1367 = vpop.f32.mrb[0].mxu0
      %v1368 = vadd.f32 %v1161, %v1367
      %v1369 = vpop.f32.mrb[0].mxu0
      %1370 = vmatprep.mubr.f32.mxu0 0.0
      %v1371 = vand.u32 %v434, 4294901760
      %v1372 = vsub.f32 %v434, %v1371
      %v1373 = vand.u32 %v1372, 4294901760
      %1374 = vmatmul.mubr.f32.gmra.mrb[0].mxu0 %v1373
      %v1375 = vpop.f32.mrb[0].mxu0
      %v1376 = vadd.f32 %v1168, %v1375
      %v1377 = vpop.f32.mrb[0].mxu0
      %1378 = vmatprep.mubr.f32.mxu0 0.0
      %v1379 = vand.u32 %v437, 4294901760
      %v1380 = vsub.f32 %v437, %v1379
      %v1381 = vand.u32 %v1380, 4294901760
      %1382 = vmatmul.mubr.f32.gmra.mrb[0].mxu0 %v1381
      %v1383 = vpop.f32.mrb[0].mxu0
      %v1384 = vadd.f32 %v1175, %v1383
      %v1385 = vpop.f32.mrb[0].mxu0
      %1386 = vdwg.mxu0
      %1387 = vmatprep.subr.mxu0 0.0
      %v1388 = vand.u32 %v440, 4294901760
      %v1389 = vsub.f32 %v440, %v1388
      %v1390 = vand.u32 %v1389, 4294901760
      %1391 = vmatpush1.xpose.msra.mxu0 %v1390
      %1392 = vmatprep.subr.mxu0 0.0
      %v1393 = vand.u32 %v443, 4294901760
      %v1394 = vsub.f32 %v443, %v1393
      %v1395 = vand.u32 %v1394, 4294901760
      %1396 = vmatpush1.xpose.msra.mxu0 %v1395
      %1397 = vmatprep.subr.mxu0 0.0
      %v1398 = vand.u32 %v446, 4294901760
      %v1399 = vsub.f32 %v446, %v1398
      %v1400 = vand.u32 %v1399, 4294901760
      %1401 = vmatpush1.xpose.msra.mxu0 %v1400
      %1402 = vmatprep.subr.mxu0 0.0
      %v1403 = vand.u32 %v449, 4294901760
      %v1404 = vsub.f32 %v449, %v1403
      %v1405 = vand.u32 %v1404, 4294901760
      %1406 = vmatpush1.xpose.msra.mxu0 %v1405
      %1407 = vmatprep.subr.mxu0 0.0
      %v1408 = vand.u32 %v452, 4294901760
      %v1409 = vsub.f32 %v452, %v1408
      %v1410 = vand.u32 %v1409, 4294901760
      %1411 = vmatpush1.xpose.msra.mxu0 %v1410
      %1412 = vmatprep.subr.mxu0 0.0
      %v1413 = vand.u32 %v455, 4294901760
      %v1414 = vsub.f32 %v455, %v1413
      %v1415 = vand.u32 %v1414, 4294901760
      %1416 = vmatpush1.xpose.msra.mxu0 %v1415
      %1417 = vmatprep.subr.mxu0 0.0
      %v1418 = vand.u32 %v458, 4294901760
      %v1419 = vsub.f32 %v458, %v1418
      %v1420 = vand.u32 %v1419, 4294901760
      %1421 = vmatpush1.xpose.msra.mxu0 %v1420
      %1422 = vmatprep.subr.mxu0 0.0
      %v1423 = vand.u32 %v461, 4294901760
      %v1424 = vsub.f32 %v461, %v1423
      %v1425 = vand.u32 %v1424, 4294901760
      %1426 = vmatpush1.xpose.msra.mxu0 %v1425
      %1427 = vmatprep.subr.mxu0 0.0
      %v1428 = vand.u32 %v464, 4294901760
      %v1429 = vsub.f32 %v464, %v1428
      %v1430 = vand.u32 %v1429, 4294901760
      %1431 = vmatpush1.xpose.msra.mxu0 %v1430
      %1432 = vmatprep.subr.mxu0 0.0
      %v1433 = vand.u32 %v467, 4294901760
      %v1434 = vsub.f32 %v467, %v1433
      %v1435 = vand.u32 %v1434, 4294901760
      %1436 = vmatpush1.xpose.msra.mxu0 %v1435
      %1437 = vmatprep.subr.mxu0 0.0
      %v1438 = vand.u32 %v470, 4294901760
      %v1439 = vsub.f32 %v470, %v1438
      %v1440 = vand.u32 %v1439, 4294901760
      %1441 = vmatpush1.xpose.msra.mxu0 %v1440
      %1442 = vmatprep.subr.mxu0 0.0
      %v1443 = vand.u32 %v473, 4294901760
      %v1444 = vsub.f32 %v473, %v1443
      %v1445 = vand.u32 %v1444, 4294901760
      %1446 = vmatpush1.xpose.msra.mxu0 %v1445
      %1447 = vmatprep.subr.mxu0 0.0
      %v1448 = vand.u32 %v476, 4294901760
      %v1449 = vsub.f32 %v476, %v1448
      %v1450 = vand.u32 %v1449, 4294901760
      %1451 = vmatpush1.xpose.msra.mxu0 %v1450
      %1452 = vmatprep.subr.mxu0 0.0
      %v1453 = vand.u32 %v479, 4294901760
      %v1454 = vsub.f32 %v479, %v1453
      %v1455 = vand.u32 %v1454, 4294901760
      %1456 = vmatpush1.xpose.msra.mxu0 %v1455
      %1457 = vmatprep.subr.mxu0 0.0
      %v1458 = vand.u32 %v482, 4294901760
      %v1459 = vsub.f32 %v482, %v1458
      %v1460 = vand.u32 %v1459, 4294901760
      %1461 = vmatpush1.xpose.msra.mxu0 %v1460
      %1462 = vmatprep.subr.mxu0 0.0
      %v1463 = vand.u32 %v485, 4294901760
      %v1464 = vsub.f32 %v485, %v1463
      %v1465 = vand.u32 %v1464, 4294901760
      %1466 = vmatpush1.xpose.msra.mxu0 %v1465
      %1467 = vmatprep.subr.mxu0 0.0
      %1468 = vmatpush1.xpose.msra.mxu0 0.0
      %1469 = vmatprep.subr.mxu0 0.0
      %1470 = vmatpush1.xpose.msra.mxu0 0.0
      %1471 = vmatprep.subr.mxu0 0.0
      %1472 = vmatpush1.xpose.msra.mxu0 0.0
      %1473 = vmatprep.subr.mxu0 0.0
      %1474 = vmatpush1.xpose.msra.mxu0 0.0
      %1475 = vmatprep.subr.mxu0 0.0
      %1476 = vmatpush1.xpose.msra.mxu0 0.0
      %1477 = vmatprep.subr.mxu0 0.0
      %1478 = vmatpush1.xpose.msra.mxu0 0.0
      %1479 = vmatprep.subr.mxu0 0.0
      %1480 = vmatpush1.xpose.msra.mxu0 0.0
      %1481 = vmatprep.subr.mxu0 0.0
      %1482 = vmatpush1.xpose.msra.mxu0 0.0
      %1483 = vmatprep.subr.mxu0 0.0
      %1484 = vmatpush1.xpose.msra.mxu0 0.0
      %1485 = vmatprep.subr.mxu0 0.0
      %1486 = vmatpush1.xpose.msra.mxu0 0.0
      %1487 = vmatprep.subr.mxu0 0.0
      %1488 = vmatpush1.xpose.msra.mxu0 0.0
      %1489 = vmatprep.subr.mxu0 0.0
      %1490 = vmatpush1.xpose.msra.mxu0 0.0
      %1491 = vmatprep.subr.mxu0 0.0
      %1492 = vmatpush1.xpose.msra.mxu0 0.0
      %1493 = vmatprep.subr.mxu0 0.0
      %1494 = vmatpush1.xpose.msra.mxu0 0.0
      %1495 = vmatprep.subr.mxu0 0.0
      %1496 = vmatpush1.xpose.msra.mxu0 0.0
      %1497 = vmatprep.subr.mxu0 0.0
      %1498 = vmatpush1.xpose.msra.mxu0 0.0
      %1499 = vmatprep.mubr.f32.mxu0 0.0
      %v1500 = vand.u32 %v392, 4294901760
      %1501 = vmatmul.mubr.f32.gmra.mrb[0].mxu0 %v1500
      %v1502 = vpop.f32.mrb[0].mxu0
      %v1503 = vadd.f32 %v1264, %v1502
      %v1504 = vpop.f32.mrb[0].mxu0
      %1505 = vmatprep.mubr.f32.mxu0 0.0
      %v1506 = vand.u32 %v395, 4294901760
      %1507 = vmatmul.mubr.f32.gmra.mrb[0].mxu0 %v1506
      %v1508 = vpop.f32.mrb[0].mxu0
      %v1509 = vadd.f32 %v1272, %v1508
      %v1510 = vpop.f32.mrb[0].mxu0
      %1511 = vmatprep.mubr.f32.mxu0 0.0
      %v1512 = vand.u32 %v398, 4294901760
      %1513 = vmatmul.mubr.f32.gmra.mrb[0].mxu0 %v1512
      %v1514 = vpop.f32.mrb[0].mxu0
      %v1515 = vadd.f32 %v1280, %v1514
      %v1516 = vpop.f32.mrb[0].mxu0
      %1517 = vmatprep.mubr.f32.mxu0 0.0
      %v1518 = vand.u32 %v401, 4294901760
      %1519 = vmatmul.mubr.f32.gmra.mrb[0].mxu0 %v1518
      %v1520 = vpop.f32.mrb[0].mxu0
      %v1521 = vadd.f32 %v1288, %v1520
      %v1522 = vpop.f32.mrb[0].mxu0
      %1523 = vmatprep.mubr.f32.mxu0 0.0
      %v1524 = vand.u32 %v404, 4294901760
      %1525 = vmatmul.mubr.f32.gmra.mrb[0].mxu0 %v1524
      %v1526 = vpop.f32.mrb[0].mxu0
      %v1527 = vadd.f32 %v1296, %v1526
      %v1528 = vpop.f32.mrb[0].mxu0
      %1529 = vmatprep.mubr.f32.mxu0 0.0
      %v1530 = vand.u32 %v407, 4294901760
      %1531 = vmatmul.mubr.f32.gmra.mrb[0].mxu0 %v1530
      %v1532 = vpop.f32.mrb[0].mxu0
      %v1533 = vadd.f32 %v1304, %v1532
      %v1534 = vpop.f32.mrb[0].mxu0
      %1535 = vmatprep.mubr.f32.mxu0 0.0
      %v1536 = vand.u32 %v410, 4294901760
      %1537 = vmatmul.mubr.f32.gmra.mrb[0].mxu0 %v1536
      %v1538 = vpop.f32.mrb[0].mxu0
      %v1539 = vadd.f32 %v1312, %v1538
      %v1540 = vpop.f32.mrb[0].mxu0
      %1541 = vmatprep.mubr.f32.mxu0 0.0
      %v1542 = vand.u32 %v413, 4294901760
      %1543 = vmatmul.mubr.f32.gmra.mrb[0].mxu0 %v1542
      %v1544 = vpop.f32.mrb[0].mxu0
      %v1545 = vadd.f32 %v1320, %v1544
      %v1546 = vpop.f32.mrb[0].mxu0
      %1547 = vmatprep.mubr.f32.mxu0 0.0
      %v1548 = vand.u32 %v416, 4294901760
      %1549 = vmatmul.mubr.f32.gmra.mrb[0].mxu0 %v1548
      %v1550 = vpop.f32.mrb[0].mxu0
      %v1551 = vadd.f32 %v1328, %v1550
      %v1552 = vpop.f32.mrb[0].mxu0
      %1553 = vmatprep.mubr.f32.mxu0 0.0
      %v1554 = vand.u32 %v419, 4294901760
      %1555 = vmatmul.mubr.f32.gmra.mrb[0].mxu0 %v1554
      %v1556 = vpop.f32.mrb[0].mxu0
      %v1557 = vadd.f32 %v1336, %v1556
      %v1558 = vpop.f32.mrb[0].mxu0
      %1559 = vmatprep.mubr.f32.mxu0 0.0
      %v1560 = vand.u32 %v422, 4294901760
      %1561 = vmatmul.mubr.f32.gmra.mrb[0].mxu0 %v1560
      %v1562 = vpop.f32.mrb[0].mxu0
      %v1563 = vadd.f32 %v1344, %v1562
      %v1564 = vpop.f32.mrb[0].mxu0
      %1565 = vmatprep.mubr.f32.mxu0 0.0
      %v1566 = vand.u32 %v425, 4294901760
      %1567 = vmatmul.mubr.f32.gmra.mrb[0].mxu0 %v1566
      %v1568 = vpop.f32.mrb[0].mxu0
      %v1569 = vadd.f32 %v1352, %v1568
      %v1570 = vpop.f32.mrb[0].mxu0
      %1571 = vmatprep.mubr.f32.mxu0 0.0
      %v1572 = vand.u32 %v428, 4294901760
      %1573 = vmatmul.mubr.f32.gmra.mrb[0].mxu0 %v1572
      %v1574 = vpop.f32.mrb[0].mxu0
      %v1575 = vadd.f32 %v1360, %v1574
      %v1576 = vpop.f32.mrb[0].mxu0
      %1577 = vmatprep.mubr.f32.mxu0 0.0
      %v1578 = vand.u32 %v431, 4294901760
      %1579 = vmatmul.mubr.f32.gmra.mrb[0].mxu0 %v1578
      %v1580 = vpop.f32.mrb[0].mxu0
      %v1581 = vadd.f32 %v1368, %v1580
      %v1582 = vpop.f32.mrb[0].mxu0
      %1583 = vmatprep.mubr.f32.mxu0 0.0
      %v1584 = vand.u32 %v434, 4294901760
      %1585 = vmatmul.mubr.f32.gmra.mrb[0].mxu0 %v1584
      %v1586 = vpop.f32.mrb[0].mxu0
      %v1587 = vadd.f32 %v1376, %v1586
      %v1588 = vpop.f32.mrb[0].mxu0
      %1589 = vmatprep.mubr.f32.mxu0 0.0
      %v1590 = vand.u32 %v437, 4294901760
      %1591 = vmatmul.mubr.f32.gmra.mrb[0].mxu0 %v1590
      %v1592 = vpop.f32.mrb[0].mxu0
      %v1593 = vadd.f32 %v1384, %v1592
      %v1594 = vpop.f32.mrb[0].mxu0
      %1595 = vdwg.mxu0
      %1596 = vmatprep.subr.mxu0 0.0
      %v1597 = vand.u32 %v440, 4294901760
      %1598 = vmatpush1.xpose.msra.mxu0 %v1597
      %1599 = vmatprep.subr.mxu0 0.0
      %v1600 = vand.u32 %v443, 4294901760
      %1601 = vmatpush1.xpose.msra.mxu0 %v1600
      %1602 = vmatprep.subr.mxu0 0.0
      %v1603 = vand.u32 %v446, 4294901760
      %1604 = vmatpush1.xpose.msra.mxu0 %v1603
      %1605 = vmatprep.subr.mxu0 0.0
      %v1606 = vand.u32 %v449, 4294901760
      %1607 = vmatpush1.xpose.msra.mxu0 %v1606
      %1608 = vmatprep.subr.mxu0 0.0
      %v1609 = vand.u32 %v452, 4294901760
      %1610 = vmatpush1.xpose.msra.mxu0 %v1609
      %1611 = vmatprep.subr.mxu0 0.0
      %v1612 = vand.u32 %v455, 4294901760
      %1613 = vmatpush1.xpose.msra.mxu0 %v1612
      %1614 = vmatprep.subr.mxu0 0.0
      %v1615 = vand.u32 %v458, 4294901760
      %1616 = vmatpush1.xpose.msra.mxu0 %v1615
      %1617 = vmatprep.subr.mxu0 0.0
      %v1618 = vand.u32 %v461, 4294901760
      %1619 = vmatpush1.xpose.msra.mxu0 %v1618
      %1620 = vmatprep.subr.mxu0 0.0
      %v1621 = vand.u32 %v464, 4294901760
      %1622 = vmatpush1.xpose.msra.mxu0 %v1621
      %1623 = vmatprep.subr.mxu0 0.0
      %v1624 = vand.u32 %v467, 4294901760
      %1625 = vmatpush1.xpose.msra.mxu0 %v1624
      %1626 = vmatprep.subr.mxu0 0.0
      %v1627 = vand.u32 %v470, 4294901760
      %1628 = vmatpush1.xpose.msra.mxu0 %v1627
      %1629 = vmatprep.subr.mxu0 0.0
      %v1630 = vand.u32 %v473, 4294901760
      %1631 = vmatpush1.xpose.msra.mxu0 %v1630
      %1632 = vmatprep.subr.mxu0 0.0
      %v1633 = vand.u32 %v476, 4294901760
      %1634 = vmatpush1.xpose.msra.mxu0 %v1633
      %1635 = vmatprep.subr.mxu0 0.0
      %v1636 = vand.u32 %v479, 4294901760
      %1637 = vmatpush1.xpose.msra.mxu0 %v1636
      %1638 = vmatprep.subr.mxu0 0.0
      %v1639 = vand.u32 %v482, 4294901760
      %1640 = vmatpush1.xpose.msra.mxu0 %v1639
      %1641 = vmatprep.subr.mxu0 0.0
      %v1642 = vand.u32 %v485, 4294901760
      %1643 = vmatpush1.xpose.msra.mxu0 %v1642
      %1644 = vmatprep.subr.mxu0 0.0
      %1645 = vmatpush1.xpose.msra.mxu0 0.0
      %1646 = vmatprep.subr.mxu0 0.0
      %1647 = vmatpush1.xpose.msra.mxu0 0.0
      %1648 = vmatprep.subr.mxu0 0.0
      %1649 = vmatpush1.xpose.msra.mxu0 0.0
      %1650 = vmatprep.subr.mxu0 0.0
      %1651 = vmatpush1.xpose.msra.mxu0 0.0
      %1652 = vmatprep.subr.mxu0 0.0
      %1653 = vmatpush1.xpose.msra.mxu0 0.0
      %1654 = vmatprep.subr.mxu0 0.0
      %1655 = vmatpush1.xpose.msra.mxu0 0.0
      %1656 = vmatprep.subr.mxu0 0.0
      %1657 = vmatpush1.xpose.msra.mxu0 0.0
      %1658 = vmatprep.subr.mxu0 0.0
      %1659 = vmatpush1.xpose.msra.mxu0 0.0
      %1660 = vmatprep.subr.mxu0 0.0
      %1661 = vmatpush1.xpose.msra.mxu0 0.0
      %1662 = vmatprep.subr.mxu0 0.0
      %1663 = vmatpush1.xpose.msra.mxu0 0.0
      %1664 = vmatprep.subr.mxu0 0.0
      %1665 = vmatpush1.xpose.msra.mxu0 0.0
      %1666 = vmatprep.subr.mxu0 0.0
      %1667 = vmatpush1.xpose.msra.mxu0 0.0
      %1668 = vmatprep.subr.mxu0 0.0
      %1669 = vmatpush1.xpose.msra.mxu0 0.0
      %1670 = vmatprep.subr.mxu0 0.0
      %1671 = vmatpush1.xpose.msra.mxu0 0.0
      %1672 = vmatprep.subr.mxu0 0.0
      %1673 = vmatpush1.xpose.msra.mxu0 0.0
      %1674 = vmatprep.subr.mxu0 0.0
      %1675 = vmatpush1.xpose.msra.mxu0 0.0
      %1676 = vmatprep.mubr.f32.mxu0 0.0
      %v1677 = vand.u32 %v392, 4294901760
      %1678 = vmatmul.mubr.f32.gmra.mrb[0].mxu0 %v1677
      %v1679 = vpop.f32.mrb[0].mxu0
      %v1680 = vadd.f32 %v1503, %v1679
      %v1681 = vpop.f32.mrb[0].mxu0
      %1682 = vmatprep.mubr.f32.mxu0 0.0
      %v1683 = vand.u32 %v395, 4294901760
      %1684 = vmatmul.mubr.f32.gmra.mrb[0].mxu0 %v1683
      %v1685 = vpop.f32.mrb[0].mxu0
      %v1686 = vadd.f32 %v1509, %v1685
      %v1687 = vpop.f32.mrb[0].mxu0
      %1688 = vmatprep.mubr.f32.mxu0 0.0
      %v1689 = vand.u32 %v398, 4294901760
      %1690 = vmatmul.mubr.f32.gmra.mrb[0].mxu0 %v1689
      %v1691 = vpop.f32.mrb[0].mxu0
      %v1692 = vadd.f32 %v1515, %v1691
      %v1693 = vpop.f32.mrb[0].mxu0
      %1694 = vmatprep.mubr.f32.mxu0 0.0
      %v1695 = vand.u32 %v401, 4294901760
      %1696 = vmatmul.mubr.f32.gmra.mrb[0].mxu0 %v1695
      %v1697 = vpop.f32.mrb[0].mxu0
      %v1698 = vadd.f32 %v1521, %v1697
      %v1699 = vpop.f32.mrb[0].mxu0
      %1700 = vmatprep.mubr.f32.mxu0 0.0
      %v1701 = vand.u32 %v404, 4294901760
      %1702 = vmatmul.mubr.f32.gmra.mrb[0].mxu0 %v1701
      %v1703 = vpop.f32.mrb[0].mxu0
      %v1704 = vadd.f32 %v1527, %v1703
      %v1705 = vpop.f32.mrb[0].mxu0
      %1706 = vmatprep.mubr.f32.mxu0 0.0
      %v1707 = vand.u32 %v407, 4294901760
      %1708 = vmatmul.mubr.f32.gmra.mrb[0].mxu0 %v1707
      %v1709 = vpop.f32.mrb[0].mxu0
      %v1710 = vadd.f32 %v1533, %v1709
      %v1711 = vpop.f32.mrb[0].mxu0
      %1712 = vmatprep.mubr.f32.mxu0 0.0
      %v1713 = vand.u32 %v410, 4294901760
      %1714 = vmatmul.mubr.f32.gmra.mrb[0].mxu0 %v1713
      %v1715 = vpop.f32.mrb[0].mxu0
      %v1716 = vadd.f32 %v1539, %v1715
      %v1717 = vpop.f32.mrb[0].mxu0
      %1718 = vmatprep.mubr.f32.mxu0 0.0
      %v1719 = vand.u32 %v413, 4294901760
      %1720 = vmatmul.mubr.f32.gmra.mrb[0].mxu0 %v1719
      %v1721 = vpop.f32.mrb[0].mxu0
      %v1722 = vadd.f32 %v1545, %v1721
      %v1723 = vpop.f32.mrb[0].mxu0
      %1724 = vmatprep.mubr.f32.mxu0 0.0
      %v1725 = vand.u32 %v416, 4294901760
      %1726 = vmatmul.mubr.f32.gmra.mrb[0].mxu0 %v1725
      %v1727 = vpop.f32.mrb[0].mxu0
      %v1728 = vadd.f32 %v1551, %v1727
      %v1729 = vpop.f32.mrb[0].mxu0
      %1730 = vmatprep.mubr.f32.mxu0 0.0
      %v1731 = vand.u32 %v419, 4294901760
      %1732 = vmatmul.mubr.f32.gmra.mrb[0].mxu0 %v1731
      %v1733 = vpop.f32.mrb[0].mxu0
      %v1734 = vadd.f32 %v1557, %v1733
      %v1735 = vpop.f32.mrb[0].mxu0
      %1736 = vmatprep.mubr.f32.mxu0 0.0
      %v1737 = vand.u32 %v422, 4294901760
      %1738 = vmatmul.mubr.f32.gmra.mrb[0].mxu0 %v1737
      %v1739 = vpop.f32.mrb[0].mxu0
      %v1740 = vadd.f32 %v1563, %v1739
      %v1741 = vpop.f32.mrb[0].mxu0
      %1742 = vmatprep.mubr.f32.mxu0 0.0
      %v1743 = vand.u32 %v425, 4294901760
      %1744 = vmatmul.mubr.f32.gmra.mrb[0].mxu0 %v1743
      %v1745 = vpop.f32.mrb[0].mxu0
      %v1746 = vadd.f32 %v1569, %v1745
      %v1747 = vpop.f32.mrb[0].mxu0
      %1748 = vmatprep.mubr.f32.mxu0 0.0
      %v1749 = vand.u32 %v428, 4294901760
      %1750 = vmatmul.mubr.f32.gmra.mrb[0].mxu0 %v1749
      %v1751 = vpop.f32.mrb[0].mxu0
      %v1752 = vadd.f32 %v1575, %v1751
      %v1753 = vpop.f32.mrb[0].mxu0
      %1754 = vmatprep.mubr.f32.mxu0 0.0
      %v1755 = vand.u32 %v431, 4294901760
      %1756 = vmatmul.mubr.f32.gmra.mrb[0].mxu0 %v1755
      %v1757 = vpop.f32.mrb[0].mxu0
      %v1758 = vadd.f32 %v1581, %v1757
      %v1759 = vpop.f32.mrb[0].mxu0
      %1760 = vmatprep.mubr.f32.mxu0 0.0
      %v1761 = vand.u32 %v434, 4294901760
      %1762 = vmatmul.mubr.f32.gmra.mrb[0].mxu0 %v1761
      %v1763 = vpop.f32.mrb[0].mxu0
      %v1764 = vadd.f32 %v1587, %v1763
      %v1765 = vpop.f32.mrb[0].mxu0
      %1766 = vmatprep.mubr.f32.mxu0 0.0
      %v1767 = vand.u32 %v437, 4294901760
      %1768 = vmatmul.mubr.f32.gmra.mrb[0].mxu0 %v1767
      %v1769 = vpop.f32.mrb[0].mxu0
      %v1770 = vadd.f32 %v1593, %v1769
      %v1771 = vpop.f32.mrb[0].mxu0
      %1772 = vdwg.mxu0
      %v1773 = vld [vmem:[#allocation2] sm:$0xff]
      %v1774 = vld [vmem:[#allocation2 + $0x8] sm:$0xff]
      %v1775 = vld [vmem:[#allocation2 + $0x10] sm:$0xff]
      %v1776 = vld [vmem:[#allocation2 + $0x18] sm:$0xff]
      %v1777 = vld [vmem:[#allocation2 + $0x20] sm:$0xff]
      %v1778 = vld [vmem:[#allocation2 + $0x28] sm:$0xff]
      %v1779 = vld [vmem:[#allocation2 + $0x30] sm:$0xff]
      %v1780 = vld [vmem:[#allocation2 + $0x38] sm:$0xff]
      %v1781 = vld [vmem:[#allocation2 + $0x40] sm:$0xff]
      %v1782 = vld [vmem:[#allocation2 + $0x48] sm:$0xff]
      %v1783 = vld [vmem:[#allocation2 + $0x50] sm:$0xff]
      %v1784 = vld [vmem:[#allocation2 + $0x58] sm:$0xff]
      %v1785 = vld [vmem:[#allocation2 + $0x60] sm:$0xff]
      %v1786 = vld [vmem:[#allocation2 + $0x68] sm:$0xff]
      %v1787 = vld [vmem:[#allocation2 + $0x70] sm:$0xff]
      %v1788 = vld [vmem:[#allocation2 + $0x78] sm:$0xff]
      %v1789 = vld [vmem:[#allocation3] sm:$0xff]
      %v1790 = vld [vmem:[#allocation3 + $0x8] sm:$0xff]
      %v1791 = vld [vmem:[#allocation3 + $0x10] sm:$0xff]
      %v1792 = vld [vmem:[#allocation3 + $0x18] sm:$0xff]
      %v1793 = vld [vmem:[#allocation3 + $0x20] sm:$0xff]
      %v1794 = vld [vmem:[#allocation3 + $0x28] sm:$0xff]
      %v1795 = vld [vmem:[#allocation3 + $0x30] sm:$0xff]
      %v1796 = vld [vmem:[#allocation3 + $0x38] sm:$0xff]
      %v1797 = vld [vmem:[#allocation3 + $0x40] sm:$0xff]
      %v1798 = vld [vmem:[#allocation3 + $0x48] sm:$0xff]
      %v1799 = vld [vmem:[#allocation3 + $0x50] sm:$0xff]
      %v1800 = vld [vmem:[#allocation3 + $0x58] sm:$0xff]
      %v1801 = vld [vmem:[#allocation3 + $0x60] sm:$0xff]
      %v1802 = vld [vmem:[#allocation3 + $0x68] sm:$0xff]
      %v1803 = vld [vmem:[#allocation3 + $0x70] sm:$0xff]
      %v1804 = vld [vmem:[#allocation3 + $0x78] sm:$0xff]
      %1805 = vmax.xlane.f32.xlu0 %v1680
      %v1806 = vpop.xlane.xlu0 %1805
      %1807 = vmax.xlane.f32.xlu0 %v1686
      %v1808 = vpop.xlane.xlu0 %1807
      %1809 = vmax.xlane.f32.xlu0 %v1692
      %v1810 = vpop.xlane.xlu0 %1809
      %1811 = vmax.xlane.f32.xlu0 %v1698
      %v1812 = vpop.xlane.xlu0 %1811
      %1813 = vmax.xlane.f32.xlu0 %v1704
      %v1814 = vpop.xlane.xlu0 %1813
      %1815 = vmax.xlane.f32.xlu0 %v1710
      %v1816 = vpop.xlane.xlu0 %1815
      %1817 = vmax.xlane.f32.xlu0 %v1716
      %v1818 = vpop.xlane.xlu0 %1817
      %1819 = vmax.xlane.f32.xlu0 %v1722
      %v1820 = vpop.xlane.xlu0 %1819
      %1821 = vmax.xlane.f32.xlu0 %v1728
      %v1822 = vpop.xlane.xlu0 %1821
      %1823 = vmax.xlane.f32.xlu0 %v1734
      %v1824 = vpop.xlane.xlu0 %1823
      %1825 = vmax.xlane.f32.xlu0 %v1740
      %v1826 = vpop.xlane.xlu0 %1825
      %1827 = vmax.xlane.f32.xlu0 %v1746
      %v1828 = vpop.xlane.xlu0 %1827
      %1829 = vmax.xlane.f32.xlu0 %v1752
      %v1830 = vpop.xlane.xlu0 %1829
      %1831 = vmax.xlane.f32.xlu0 %v1758
      %v1832 = vpop.xlane.xlu0 %1831
      %1833 = vmax.xlane.f32.xlu0 %v1764
      %v1834 = vpop.xlane.xlu0 %1833
      %1835 = vmax.xlane.f32.xlu0 %v1770
      %v1836 = vpop.xlane.xlu0 %1835
      %v1837 = vmax.f32 %v1773, %v1806
      %v1838 = vmax.f32 %v1774, %v1808
      %v1839 = vmax.f32 %v1775, %v1810
      %v1840 = vmax.f32 %v1776, %v1812
      %v1841 = vmax.f32 %v1777, %v1814
      %v1842 = vmax.f32 %v1778, %v1816
      %v1843 = vmax.f32 %v1779, %v1818
      %v1844 = vmax.f32 %v1780, %v1820
      %v1845 = vmax.f32 %v1781, %v1822
      %v1846 = vmax.f32 %v1782, %v1824
      %v1847 = vmax.f32 %v1783, %v1826
      %v1848 = vmax.f32 %v1784, %v1828
      %v1849 = vmax.f32 %v1785, %v1830
      %v1850 = vmax.f32 %v1786, %v1832
      %v1851 = vmax.f32 %v1787, %v1834
      %v1852 = vmax.f32 %v1788, %v1836
      %v1853 = vsub.f32 %v1773, %v1837
      %v1854 = vsub.f32 %v1774, %v1838
      %v1855 = vsub.f32 %v1775, %v1839
      %v1856 = vsub.f32 %v1776, %v1840
      %v1857 = vsub.f32 %v1777, %v1841
      %v1858 = vsub.f32 %v1778, %v1842
      %v1859 = vsub.f32 %v1779, %v1843
      %v1860 = vsub.f32 %v1780, %v1844
      %v1861 = vsub.f32 %v1781, %v1845
      %v1862 = vsub.f32 %v1782, %v1846
      %v1863 = vsub.f32 %v1783, %v1847
      %v1864 = vsub.f32 %v1784, %v1848
      %v1865 = vsub.f32 %v1785, %v1849
      %v1866 = vsub.f32 %v1786, %v1850
      %v1867 = vsub.f32 %v1787, %v1851
      %v1868 = vsub.f32 %v1788, %v1852
      %v1869 = vmul.f32 %v1853, 1.442695
      %v1870 = vpow.pop %v1869
      %v1871 = vmul.f32 %v1854, 1.442695
      %v1872 = vpow.pop %v1871
      %v1873 = vmul.f32 %v1855, 1.442695
      %v1874 = vpow.pop %v1873
      %v1875 = vmul.f32 %v1856, 1.442695
      %v1876 = vpow.pop %v1875
      %v1877 = vmul.f32 %v1857, 1.442695
      %v1878 = vpow.pop %v1877
      %v1879 = vmul.f32 %v1858, 1.442695
      %v1880 = vpow.pop %v1879
      %v1881 = vmul.f32 %v1859, 1.442695
      %v1882 = vpow.pop %v1881
      %v1883 = vmul.f32 %v1860, 1.442695
      %v1884 = vpow.pop %v1883
      %v1885 = vmul.f32 %v1861, 1.442695
      %v1886 = vpow.pop %v1885
      %v1887 = vmul.f32 %v1862, 1.442695
      %v1888 = vpow.pop %v1887
      %v1889 = vmul.f32 %v1863, 1.442695
      %v1890 = vpow.pop %v1889
      %v1891 = vmul.f32 %v1864, 1.442695
      %v1892 = vpow.pop %v1891
      %v1893 = vmul.f32 %v1865, 1.442695
      %v1894 = vpow.pop %v1893
      %v1895 = vmul.f32 %v1866, 1.442695
      %v1896 = vpow.pop %v1895
      %v1897 = vmul.f32 %v1867, 1.442695
      %v1898 = vpow.pop %v1897
      %v1899 = vmul.f32 %v1868, 1.442695
      %v1900 = vpow.pop %v1899
      %1902 = vset.pattern.permute.xlu0 0
      %1903 = vperm.xlu0 %1902, %v1837
      %v1904 = vpop.permute.xlu0 %1903
      %1907 = vset.pattern.permute.xlu0 0
      %1908 = vperm.xlu0 %1907, %v1838
      %v1909 = vpop.permute.xlu0 %1908
      %1912 = vset.pattern.permute.xlu0 0
      %1913 = vperm.xlu0 %1912, %v1839
      %v1914 = vpop.permute.xlu0 %1913
      %1917 = vset.pattern.permute.xlu0 0
      %1918 = vperm.xlu0 %1917, %v1840
      %v1919 = vpop.permute.xlu0 %1918
      %1922 = vset.pattern.permute.xlu0 0
      %1923 = vperm.xlu0 %1922, %v1841
      %v1924 = vpop.permute.xlu0 %1923
      %1927 = vset.pattern.permute.xlu0 0
      %1928 = vperm.xlu0 %1927, %v1842
      %v1929 = vpop.permute.xlu0 %1928
      %1932 = vset.pattern.permute.xlu0 0
      %1933 = vperm.xlu0 %1932, %v1843
      %v1934 = vpop.permute.xlu0 %1933
      %1937 = vset.pattern.permute.xlu0 0
      %1938 = vperm.xlu0 %1937, %v1844
      %v1939 = vpop.permute.xlu0 %1938
      %1942 = vset.pattern.permute.xlu0 0
      %1943 = vperm.xlu0 %1942, %v1845
      %v1944 = vpop.permute.xlu0 %1943
      %1947 = vset.pattern.permute.xlu0 0
      %1948 = vperm.xlu0 %1947, %v1846
      %v1949 = vpop.permute.xlu0 %1948
      %1952 = vset.pattern.permute.xlu0 0
      %1953 = vperm.xlu0 %1952, %v1847
      %v1954 = vpop.permute.xlu0 %1953
      %1957 = vset.pattern.permute.xlu0 0
      %1958 = vperm.xlu0 %1957, %v1848
      %v1959 = vpop.permute.xlu0 %1958
      %1962 = vset.pattern.permute.xlu0 0
      %1963 = vperm.xlu0 %1962, %v1849
      %v1964 = vpop.permute.xlu0 %1963
      %1967 = vset.pattern.permute.xlu0 0
      %1968 = vperm.xlu0 %1967, %v1850
      %v1969 = vpop.permute.xlu0 %1968
      %1972 = vset.pattern.permute.xlu0 0
      %1973 = vperm.xlu0 %1972, %v1851
      %v1974 = vpop.permute.xlu0 %1973
      %1977 = vset.pattern.permute.xlu0 0
      %1978 = vperm.xlu0 %1977, %v1852
      %v1979 = vpop.permute.xlu0 %1978
      %v1981 = vsub.f32 %v1680, %v1904
      %v1982 = vsub.f32 %v1686, %v1909
      %v1983 = vsub.f32 %v1692, %v1914
      %v1984 = vsub.f32 %v1698, %v1919
      %v1985 = vsub.f32 %v1704, %v1924
      %v1986 = vsub.f32 %v1710, %v1929
      %v1987 = vsub.f32 %v1716, %v1934
      %v1988 = vsub.f32 %v1722, %v1939
      %v1989 = vsub.f32 %v1728, %v1944
      %v1990 = vsub.f32 %v1734, %v1949
      %v1991 = vsub.f32 %v1740, %v1954
      %v1992 = vsub.f32 %v1746, %v1959
      %v1993 = vsub.f32 %v1752, %v1964
      %v1994 = vsub.f32 %v1758, %v1969
      %v1995 = vsub.f32 %v1764, %v1974
      %v1996 = vsub.f32 %v1770, %v1979
      %v1997 = vmul.f32 %v1981, 1.442695
      %v1998 = vpow.pop %v1997
      %v1999 = vmul.f32 %v1982, 1.442695
      %v2000 = vpow.pop %v1999
      %v2001 = vmul.f32 %v1983, 1.442695
      %v2002 = vpow.pop %v2001
      %v2003 = vmul.f32 %v1984, 1.442695
      %v2004 = vpow.pop %v2003
      %v2005 = vmul.f32 %v1985, 1.442695
      %v2006 = vpow.pop %v2005
      %v2007 = vmul.f32 %v1986, 1.442695
      %v2008 = vpow.pop %v2007
      %v2009 = vmul.f32 %v1987, 1.442695
      %v2010 = vpow.pop %v2009
      %v2011 = vmul.f32 %v1988, 1.442695
      %v2012 = vpow.pop %v2011
      %v2013 = vmul.f32 %v1989, 1.442695
      %v2014 = vpow.pop %v2013
      %v2015 = vmul.f32 %v1990, 1.442695
      %v2016 = vpow.pop %v2015
      %v2017 = vmul.f32 %v1991, 1.442695
      %v2018 = vpow.pop %v2017
      %v2019 = vmul.f32 %v1992, 1.442695
      %v2020 = vpow.pop %v2019
      %v2021 = vmul.f32 %v1993, 1.442695
      %v2022 = vpow.pop %v2021
      %v2023 = vmul.f32 %v1994, 1.442695
      %v2024 = vpow.pop %v2023
      %v2025 = vmul.f32 %v1995, 1.442695
      %v2026 = vpow.pop %v2025
      %v2027 = vmul.f32 %v1996, 1.442695
      %v2028 = vpow.pop %v2027
      %v2029 = vmul.f32 %v1789, %v1870
      %v2030 = vmul.f32 %v1790, %v1872
      %v2031 = vmul.f32 %v1791, %v1874
      %v2032 = vmul.f32 %v1792, %v1876
      %v2033 = vmul.f32 %v1793, %v1878
      %v2034 = vmul.f32 %v1794, %v1880
      %v2035 = vmul.f32 %v1795, %v1882
      %v2036 = vmul.f32 %v1796, %v1884
      %v2037 = vmul.f32 %v1797, %v1886
      %v2038 = vmul.f32 %v1798, %v1888
      %v2039 = vmul.f32 %v1799, %v1890
      %v2040 = vmul.f32 %v1800, %v1892
      %v2041 = vmul.f32 %v1801, %v1894
      %v2042 = vmul.f32 %v1802, %v1896
      %v2043 = vmul.f32 %v1803, %v1898
      %v2044 = vmul.f32 %v1804, %v1900
      %2045 = vadd.xlane.f32.xlu0 %v1998
      %v2046 = vpop.xlane.xlu0 %2045
      %2047 = vadd.xlane.f32.xlu0 %v2000
      %v2048 = vpop.xlane.xlu0 %2047
      %2049 = vadd.xlane.f32.xlu0 %v2002
      %v2050 = vpop.xlane.xlu0 %2049
      %2051 = vadd.xlane.f32.xlu0 %v2004
      %v2052 = vpop.xlane.xlu0 %2051
      %2053 = vadd.xlane.f32.xlu0 %v2006
      %v2054 = vpop.xlane.xlu0 %2053
      %2055 = vadd.xlane.f32.xlu0 %v2008
      %v2056 = vpop.xlane.xlu0 %2055
      %2057 = vadd.xlane.f32.xlu0 %v2010
      %v2058 = vpop.xlane.xlu0 %2057
      %2059 = vadd.xlane.f32.xlu0 %v2012
      %v2060 = vpop.xlane.xlu0 %2059
      %2061 = vadd.xlane.f32.xlu0 %v2014
      %v2062 = vpop.xlane.xlu0 %2061
      %2063 = vadd.xlane.f32.xlu0 %v2016
      %v2064 = vpop.xlane.xlu0 %2063
      %2065 = vadd.xlane.f32.xlu0 %v2018
      %v2066 = vpop.xlane.xlu0 %2065
      %2067 = vadd.xlane.f32.xlu0 %v2020
      %v2068 = vpop.xlane.xlu0 %2067
      %2069 = vadd.xlane.f32.xlu0 %v2022
      %v2070 = vpop.xlane.xlu0 %2069
      %2071 = vadd.xlane.f32.xlu0 %v2024
      %v2072 = vpop.xlane.xlu0 %2071
      %2073 = vadd.xlane.f32.xlu0 %v2026
      %v2074 = vpop.xlane.xlu0 %2073
      %2075 = vadd.xlane.f32.xlu0 %v2028
      %v2076 = vpop.xlane.xlu0 %2075
      %v2077 = vadd.f32 %v2029, %v2046
      %v2078 = vadd.f32 %v2030, %v2048
      %v2079 = vadd.f32 %v2031, %v2050
      %v2080 = vadd.f32 %v2032, %v2052
      %v2081 = vadd.f32 %v2033, %v2054
      %v2082 = vadd.f32 %v2034, %v2056
      %v2083 = vadd.f32 %v2035, %v2058
      %v2084 = vadd.f32 %v2036, %v2060
      %v2085 = vadd.f32 %v2037, %v2062
      %v2086 = vadd.f32 %v2038, %v2064
      %v2087 = vadd.f32 %v2039, %v2066
      %v2088 = vadd.f32 %v2040, %v2068
      %v2089 = vadd.f32 %v2041, %v2070
      %v2090 = vadd.f32 %v2042, %v2072
      %v2091 = vadd.f32 %v2043, %v2074
      %v2092 = vadd.f32 %v2044, %v2076
      %v2093 = vsub.f32 %v1806, %v1837
      %v2094 = vsub.f32 %v1808, %v1838
      %v2095 = vsub.f32 %v1810, %v1839
      %v2096 = vsub.f32 %v1812, %v1840
      %v2097 = vsub.f32 %v1814, %v1841
      %v2098 = vsub.f32 %v1816, %v1842
      %v2099 = vsub.f32 %v1818, %v1843
      %v2100 = vsub.f32 %v1820, %v1844
      %v2101 = vsub.f32 %v1822, %v1845
      %v2102 = vsub.f32 %v1824, %v1846
      %v2103 = vsub.f32 %v1826, %v1847
      %v2104 = vsub.f32 %v1828, %v1848
      %v2105 = vsub.f32 %v1830, %v1849
      %v2106 = vsub.f32 %v1832, %v1850
      %v2107 = vsub.f32 %v1834, %v1851
      %v2108 = vsub.f32 %v1836, %v1852
      %v2109 = vmul.f32 %v2093, 1.442695
      %v2110 = vpow.pop %v2109
      %v2111 = vmul.f32 %v2094, 1.442695
      %v2112 = vpow.pop %v2111
      %v2113 = vmul.f32 %v2095, 1.442695
      %v2114 = vpow.pop %v2113
      %v2115 = vmul.f32 %v2096, 1.442695
      %v2116 = vpow.pop %v2115
      %v2117 = vmul.f32 %v2097, 1.442695
      %v2118 = vpow.pop %v2117
      %v2119 = vmul.f32 %v2098, 1.442695
      %v2120 = vpow.pop %v2119
      %v2121 = vmul.f32 %v2099, 1.442695
      %v2122 = vpow.pop %v2121
      %v2123 = vmul.f32 %v2100, 1.442695
      %v2124 = vpow.pop %v2123
      %v2125 = vmul.f32 %v2101, 1.442695
      %v2126 = vpow.pop %v2125
      %v2127 = vmul.f32 %v2102, 1.442695
      %v2128 = vpow.pop %v2127
      %v2129 = vmul.f32 %v2103, 1.442695
      %v2130 = vpow.pop %v2129
      %v2131 = vmul.f32 %v2104, 1.442695
      %v2132 = vpow.pop %v2131
      %v2133 = vmul.f32 %v2105, 1.442695
      %v2134 = vpow.pop %v2133
      %v2135 = vmul.f32 %v2106, 1.442695
      %v2136 = vpow.pop %v2135
      %v2137 = vmul.f32 %v2107, 1.442695
      %v2138 = vpow.pop %v2137
      %v2139 = vmul.f32 %v2108, 1.442695
      %v2140 = vpow.pop %v2139
      %v2141 = vmul.f32 %v2110, 1e-06
      %v2142 = vmul.f32 %v2112, 1e-06
      %v2143 = vmul.f32 %v2114, 1e-06
      %v2144 = vmul.f32 %v2116, 1e-06
      %v2145 = vmul.f32 %v2118, 1e-06
      %v2146 = vmul.f32 %v2120, 1e-06
      %v2147 = vmul.f32 %v2122, 1e-06
      %v2148 = vmul.f32 %v2124, 1e-06
      %v2149 = vmul.f32 %v2126, 1e-06
      %v2150 = vmul.f32 %v2128, 1e-06
      %v2151 = vmul.f32 %v2130, 1e-06
      %v2152 = vmul.f32 %v2132, 1e-06
      %v2153 = vmul.f32 %v2134, 1e-06
      %v2154 = vmul.f32 %v2136, 1e-06
      %v2155 = vmul.f32 %v2138, 1e-06
      %v2156 = vmul.f32 %v2140, 1e-06
      %v2157 = vadd.f32 %v2077, %v2141
      %v2158 = vadd.f32 %v2078, %v2142
      %v2159 = vadd.f32 %v2079, %v2143
      %v2160 = vadd.f32 %v2080, %v2144
      %v2161 = vadd.f32 %v2081, %v2145
      %v2162 = vadd.f32 %v2082, %v2146
      %v2163 = vadd.f32 %v2083, %v2147
      %v2164 = vadd.f32 %v2084, %v2148
      %v2165 = vadd.f32 %v2085, %v2149
      %v2166 = vadd.f32 %v2086, %v2150
      %v2167 = vadd.f32 %v2087, %v2151
      %v2168 = vadd.f32 %v2088, %v2152
      %v2169 = vadd.f32 %v2089, %v2153
      %v2170 = vadd.f32 %v2090, %v2154
      %v2171 = vadd.f32 %v2091, %v2155
      %v2172 = vadd.f32 %v2092, %v2156
      %2173 = vmatprep.subr.mxu0 0.0
      %v2174 = vand.u32 %v374, 4294901760
      %2175 = vmatpush1.msra.mxu0 %v2174
      %2176 = vmatprep.subr.mxu0 0.0
      %v2177 = vand.u32 %v375, 4294901760
      %2178 = vmatpush1.msra.mxu0 %v2177
      %2179 = vmatprep.subr.mxu0 0.0
      %v2180 = vand.u32 %v376, 4294901760
      %2181 = vmatpush1.msra.mxu0 %v2180
      %2182 = vmatprep.subr.mxu0 0.0
      %v2183 = vand.u32 %v377, 4294901760
      %2184 = vmatpush1.msra.mxu0 %v2183
      %2185 = vmatprep.subr.mxu0 0.0
      %v2186 = vand.u32 %v378, 4294901760
      %2187 = vmatpush1.msra.mxu0 %v2186
      %2188 = vmatprep.subr.mxu0 0.0
      %v2189 = vand.u32 %v379, 4294901760
      %2190 = vmatpush1.msra.mxu0 %v2189
      %2191 = vmatprep.subr.mxu0 0.0
      %v2192 = vand.u32 %v380, 4294901760
      %2193 = vmatpush1.msra.mxu0 %v2192
      %2194 = vmatprep.subr.mxu0 0.0
      %v2195 = vand.u32 %v381, 4294901760
      %2196 = vmatpush1.msra.mxu0 %v2195
      %2197 = vmatprep.subr.mxu0 0.0
      %v2198 = vand.u32 %v382, 4294901760
      %2199 = vmatpush1.msra.mxu0 %v2198
      %2200 = vmatprep.subr.mxu0 0.0
      %v2201 = vand.u32 %v383, 4294901760
      %2202 = vmatpush1.msra.mxu0 %v2201
      %2203 = vmatprep.subr.mxu0 0.0
      %v2204 = vand.u32 %v384, 4294901760
      %2205 = vmatpush1.msra.mxu0 %v2204
      %2206 = vmatprep.subr.mxu0 0.0
      %v2207 = vand.u32 %v385, 4294901760
      %2208 = vmatpush1.msra.mxu0 %v2207
      %2209 = vmatprep.subr.mxu0 0.0
      %v2210 = vand.u32 %v386, 4294901760
      %2211 = vmatpush1.msra.mxu0 %v2210
      %2212 = vmatprep.subr.mxu0 0.0
      %v2213 = vand.u32 %v387, 4294901760
      %2214 = vmatpush1.msra.mxu0 %v2213
      %2215 = vmatprep.subr.mxu0 0.0
      %v2216 = vand.u32 %v388, 4294901760
      %2217 = vmatpush1.msra.mxu0 %v2216
      %2218 = vmatprep.subr.mxu0 0.0
      %v2219 = vand.u32 %v389, 4294901760
      %2220 = vmatpush1.msra.mxu0 %v2219
      %2221 = vmatprep.subr.mxu0 0.0
      %2222 = vmatpush1.msra.mxu0 0.0
      %2223 = vmatprep.subr.mxu0 0.0
      %2224 = vmatpush1.msra.mxu0 0.0
      %2225 = vmatprep.subr.mxu0 0.0
      %2226 = vmatpush1.msra.mxu0 0.0
      %2227 = vmatprep.subr.mxu0 0.0
      %2228 = vmatpush1.msra.mxu0 0.0
      %2229 = vmatprep.subr.mxu0 0.0
      %2230 = vmatpush1.msra.mxu0 0.0
      %2231 = vmatprep.subr.mxu0 0.0
      %2232 = vmatpush1.msra.mxu0 0.0
      %2233 = vmatprep.subr.mxu0 0.0
      %2234 = vmatpush1.msra.mxu0 0.0
      %2235 = vmatprep.subr.mxu0 0.0
      %2236 = vmatpush1.msra.mxu0 0.0
      %2237 = vmatprep.subr.mxu0 0.0
      %2238 = vmatpush1.msra.mxu0 0.0
      %2239 = vmatprep.subr.mxu0 0.0
      %2240 = vmatpush1.msra.mxu0 0.0
      %2241 = vmatprep.subr.mxu0 0.0
      %2242 = vmatpush1.msra.mxu0 0.0
      %2243 = vmatprep.subr.mxu0 0.0
      %2244 = vmatpush1.msra.mxu0 0.0
      %2245 = vmatprep.subr.mxu0 0.0
      %2246 = vmatpush1.msra.mxu0 0.0
      %2247 = vmatprep.subr.mxu0 0.0
      %2248 = vmatpush1.msra.mxu0 0.0
      %2249 = vmatprep.subr.mxu0 0.0
      %2250 = vmatpush1.msra.mxu0 0.0
      %2251 = vmatprep.subr.mxu0 0.0
      %2252 = vmatpush1.msra.mxu0 0.0
      %2253 = vmatprep.mubr.f32.mxu0 0.0
      %v2254 = vand.u32 %v1998, 4294901760
      %v2255 = vsub.f32 %v1998, %v2254
      %v2256 = vand.u32 %v2255, 4294901760
      %v2257 = vsub.f32 %v2255, %v2256
      %v2258 = vand.u32 %v2257, 4294901760
      %2259 = vmatmul.mubr.f32.gmra.mrb[0].mxu0 %v2258
      %v2260 = vpop.f32.mrb[0].mxu0
      %v2261 = vadd.f32 0.0, %v2260
      %v2262 = vpop.f32.mrb[0].mxu0
      %2263 = vmatprep.mubr.f32.mxu0 0.0
      %v2264 = vand.u32 %v2000, 4294901760
      %v2265 = vsub.f32 %v2000, %v2264
      %v2266 = vand.u32 %v2265, 4294901760
      %v2267 = vsub.f32 %v2265, %v2266
      %v2268 = vand.u32 %v2267, 4294901760
      %2269 = vmatmul.mubr.f32.gmra.mrb[0].mxu0 %v2268
      %v2270 = vpop.f32.mrb[0].mxu0
      %v2271 = vadd.f32 0.0, %v2270
      %v2272 = vpop.f32.mrb[0].mxu0
      %2273 = vmatprep.mubr.f32.mxu0 0.0
      %v2274 = vand.u32 %v2002, 4294901760
      %v2275 = vsub.f32 %v2002, %v2274
      %v2276 = vand.u32 %v2275, 4294901760
      %v2277 = vsub.f32 %v2275, %v2276
      %v2278 = vand.u32 %v2277, 4294901760
      %2279 = vmatmul.mubr.f32.gmra.mrb[0].mxu0 %v2278
      %v2280 = vpop.f32.mrb[0].mxu0
      %v2281 = vadd.f32 0.0, %v2280
      %v2282 = vpop.f32.mrb[0].mxu0
      %2283 = vmatprep.mubr.f32.mxu0 0.0
      %v2284 = vand.u32 %v2004, 4294901760
      %v2285 = vsub.f32 %v2004, %v2284
      %v2286 = vand.u32 %v2285, 4294901760
      %v2287 = vsub.f32 %v2285, %v2286
      %v2288 = vand.u32 %v2287, 4294901760
      %2289 = vmatmul.mubr.f32.gmra.mrb[0].mxu0 %v2288
      %v2290 = vpop.f32.mrb[0].mxu0
      %v2291 = vadd.f32 0.0, %v2290
      %v2292 = vpop.f32.mrb[0].mxu0
      %2293 = vmatprep.mubr.f32.mxu0 0.0
      %v2294 = vand.u32 %v2006, 4294901760
      %v2295 = vsub.f32 %v2006, %v2294
      %v2296 = vand.u32 %v2295, 4294901760
      %v2297 = vsub.f32 %v2295, %v2296
      %v2298 = vand.u32 %v2297, 4294901760
      %2299 = vmatmul.mubr.f32.gmra.mrb[0].mxu0 %v2298
      %v2300 = vpop.f32.mrb[0].mxu0
      %v2301 = vadd.f32 0.0, %v2300
      %v2302 = vpop.f32.mrb[0].mxu0
      %2303 = vmatprep.mubr.f32.mxu0 0.0
      %v2304 = vand.u32 %v2008, 4294901760
      %v2305 = vsub.f32 %v2008, %v2304
      %v2306 = vand.u32 %v2305, 4294901760
      %v2307 = vsub.f32 %v2305, %v2306
      %v2308 = vand.u32 %v2307, 4294901760
      %2309 = vmatmul.mubr.f32.gmra.mrb[0].mxu0 %v2308
      %v2310 = vpop.f32.mrb[0].mxu0
      %v2311 = vadd.f32 0.0, %v2310
      %v2312 = vpop.f32.mrb[0].mxu0
      %2313 = vmatprep.mubr.f32.mxu0 0.0
      %v2314 = vand.u32 %v2010, 4294901760
      %v2315 = vsub.f32 %v2010, %v2314
      %v2316 = vand.u32 %v2315, 4294901760
      %v2317 = vsub.f32 %v2315, %v2316
      %v2318 = vand.u32 %v2317, 4294901760
      %2319 = vmatmul.mubr.f32.gmra.mrb[0].mxu0 %v2318
      %v2320 = vpop.f32.mrb[0].mxu0
      %v2321 = vadd.f32 0.0, %v2320
      %v2322 = vpop.f32.mrb[0].mxu0
      %2323 = vmatprep.mubr.f32.mxu0 0.0
      %v2324 = vand.u32 %v2012, 4294901760
      %v2325 = vsub.f32 %v2012, %v2324
      %v2326 = vand.u32 %v2325, 4294901760
      %v2327 = vsub.f32 %v2325, %v2326
      %v2328 = vand.u32 %v2327, 4294901760
      %2329 = vmatmul.mubr.f32.gmra.mrb[0].mxu0 %v2328
      %v2330 = vpop.f32.mrb[0].mxu0
      %v2331 = vadd.f32 0.0, %v2330
      %v2332 = vpop.f32.mrb[0].mxu0
      %2333 = vmatprep.mubr.f32.mxu0 0.0
      %v2334 = vand.u32 %v2014, 4294901760
      %v2335 = vsub.f32 %v2014, %v2334
      %v2336 = vand.u32 %v2335, 4294901760
      %v2337 = vsub.f32 %v2335, %v2336
      %v2338 = vand.u32 %v2337, 4294901760
      %2339 = vmatmul.mubr.f32.gmra.mrb[0].mxu0 %v2338
      %v2340 = vpop.f32.mrb[0].mxu0
      %v2341 = vadd.f32 0.0, %v2340
      %v2342 = vpop.f32.mrb[0].mxu0
      %2343 = vmatprep.mubr.f32.mxu0 0.0
      %v2344 = vand.u32 %v2016, 4294901760
      %v2345 = vsub.f32 %v2016, %v2344
      %v2346 = vand.u32 %v2345, 4294901760
      %v2347 = vsub.f32 %v2345, %v2346
      %v2348 = vand.u32 %v2347, 4294901760
      %2349 = vmatmul.mubr.f32.gmra.mrb[0].mxu0 %v2348
      %v2350 = vpop.f32.mrb[0].mxu0
      %v2351 = vadd.f32 0.0, %v2350
      %v2352 = vpop.f32.mrb[0].mxu0
      %2353 = vmatprep.mubr.f32.mxu0 0.0
      %v2354 = vand.u32 %v2018, 4294901760
      %v2355 = vsub.f32 %v2018, %v2354
      %v2356 = vand.u32 %v2355, 4294901760
      %v2357 = vsub.f32 %v2355, %v2356
      %v2358 = vand.u32 %v2357, 4294901760
      %2359 = vmatmul.mubr.f32.gmra.mrb[0].mxu0 %v2358
      %v2360 = vpop.f32.mrb[0].mxu0
      %v2361 = vadd.f32 0.0, %v2360
      %v2362 = vpop.f32.mrb[0].mxu0
      %2363 = vmatprep.mubr.f32.mxu0 0.0
      %v2364 = vand.u32 %v2020, 4294901760
      %v2365 = vsub.f32 %v2020, %v2364
      %v2366 = vand.u32 %v2365, 4294901760
      %v2367 = vsub.f32 %v2365, %v2366
      %v2368 = vand.u32 %v2367, 4294901760
      %2369 = vmatmul.mubr.f32.gmra.mrb[0].mxu0 %v2368
      %v2370 = vpop.f32.mrb[0].mxu0
      %v2371 = vadd.f32 0.0, %v2370
      %v2372 = vpop.f32.mrb[0].mxu0
      %2373 = vmatprep.mubr.f32.mxu0 0.0
      %v2374 = vand.u32 %v2022, 4294901760
      %v2375 = vsub.f32 %v2022, %v2374
      %v2376 = vand.u32 %v2375, 4294901760
      %v2377 = vsub.f32 %v2375, %v2376
      %v2378 = vand.u32 %v2377, 4294901760
      %2379 = vmatmul.mubr.f32.gmra.mrb[0].mxu0 %v2378
      %v2380 = vpop.f32.mrb[0].mxu0
      %v2381 = vadd.f32 0.0, %v2380
      %v2382 = vpop.f32.mrb[0].mxu0
      %2383 = vmatprep.mubr.f32.mxu0 0.0
      %v2384 = vand.u32 %v2024, 4294901760
      %v2385 = vsub.f32 %v2024, %v2384
      %v2386 = vand.u32 %v2385, 4294901760
      %v2387 = vsub.f32 %v2385, %v2386
      %v2388 = vand.u32 %v2387, 4294901760
      %2389 = vmatmul.mubr.f32.gmra.mrb[0].mxu0 %v2388
      %v2390 = vpop.f32.mrb[0].mxu0
      %v2391 = vadd.f32 0.0, %v2390
      %v2392 = vpop.f32.mrb[0].mxu0
      %2393 = vmatprep.mubr.f32.mxu0 0.0
      %v2394 = vand.u32 %v2026, 4294901760
      %v2395 = vsub.f32 %v2026, %v2394
      %v2396 = vand.u32 %v2395, 4294901760
      %v2397 = vsub.f32 %v2395, %v2396
      %v2398 = vand.u32 %v2397, 4294901760
      %2399 = vmatmul.mubr.f32.gmra.mrb[0].mxu0 %v2398
      %v2400 = vpop.f32.mrb[0].mxu0
      %v2401 = vadd.f32 0.0, %v2400
      %v2402 = vpop.f32.mrb[0].mxu0
      %2403 = vmatprep.mubr.f32.mxu0 0.0
      %v2404 = vand.u32 %v2028, 4294901760
      %v2405 = vsub.f32 %v2028, %v2404
      %v2406 = vand.u32 %v2405, 4294901760
      %v2407 = vsub.f32 %v2405, %v2406
      %v2408 = vand.u32 %v2407, 4294901760
      %2409 = vmatmul.mubr.f32.gmra.mrb[0].mxu0 %v2408
      %v2410 = vpop.f32.mrb[0].mxu0
      %v2411 = vadd.f32 0.0, %v2410
      %v2412 = vpop.f32.mrb[0].mxu0
      %2413 = vdwg.mxu0
      %2414 = vmatprep.subr.mxu0 0.0
      %v2415 = vand.u32 %v374, 4294901760
      %v2416 = vsub.f32 %v374, %v2415
      %v2417 = vand.u32 %v2416, 4294901760
      %v2418 = vsub.f32 %v2416, %v2417
      %v2419 = vand.u32 %v2418, 4294901760
      %2420 = vmatpush1.msra.mxu0 %v2419
      %2421 = vmatprep.subr.mxu0 0.0
      %v2422 = vand.u32 %v375, 4294901760
      %v2423 = vsub.f32 %v375, %v2422
      %v2424 = vand.u32 %v2423, 4294901760
      %v2425 = vsub.f32 %v2423, %v2424
      %v2426 = vand.u32 %v2425, 4294901760
      %2427 = vmatpush1.msra.mxu0 %v2426
      %2428 = vmatprep.subr.mxu0 0.0
      %v2429 = vand.u32 %v376, 4294901760
      %v2430 = vsub.f32 %v376, %v2429
      %v2431 = vand.u32 %v2430, 4294901760
      %v2432 = vsub.f32 %v2430, %v2431
      %v2433 = vand.u32 %v2432, 4294901760
      %2434 = vmatpush1.msra.mxu0 %v2433
      %2435 = vmatprep.subr.mxu0 0.0
      %v2436 = vand.u32 %v377, 4294901760
      %v2437 = vsub.f32 %v377, %v2436
      %v2438 = vand.u32 %v2437, 4294901760
      %v2439 = vsub.f32 %v2437, %v2438
      %v2440 = vand.u32 %v2439, 4294901760
      %2441 = vmatpush1.msra.mxu0 %v2440
      %2442 = vmatprep.subr.mxu0 0.0
      %v2443 = vand.u32 %v378, 4294901760
      %v2444 = vsub.f32 %v378, %v2443
      %v2445 = vand.u32 %v2444, 4294901760
      %v2446 = vsub.f32 %v2444, %v2445
      %v2447 = vand.u32 %v2446, 4294901760
      %2448 = vmatpush1.msra.mxu0 %v2447
      %2449 = vmatprep.subr.mxu0 0.0
      %v2450 = vand.u32 %v379, 4294901760
      %v2451 = vsub.f32 %v379, %v2450
      %v2452 = vand.u32 %v2451, 4294901760
      %v2453 = vsub.f32 %v2451, %v2452
      %v2454 = vand.u32 %v2453, 4294901760
      %2455 = vmatpush1.msra.mxu0 %v2454
      %2456 = vmatprep.subr.mxu0 0.0
      %v2457 = vand.u32 %v380, 4294901760
      %v2458 = vsub.f32 %v380, %v2457
      %v2459 = vand.u32 %v2458, 4294901760
      %v2460 = vsub.f32 %v2458, %v2459
      %v2461 = vand.u32 %v2460, 4294901760
      %2462 = vmatpush1.msra.mxu0 %v2461
      %2463 = vmatprep.subr.mxu0 0.0
      %v2464 = vand.u32 %v381, 4294901760
      %v2465 = vsub.f32 %v381, %v2464
      %v2466 = vand.u32 %v2465, 4294901760
      %v2467 = vsub.f32 %v2465, %v2466
      %v2468 = vand.u32 %v2467, 4294901760
      %2469 = vmatpush1.msra.mxu0 %v2468
      %2470 = vmatprep.subr.mxu0 0.0
      %v2471 = vand.u32 %v382, 4294901760
      %v2472 = vsub.f32 %v382, %v2471
      %v2473 = vand.u32 %v2472, 4294901760
      %v2474 = vsub.f32 %v2472, %v2473
      %v2475 = vand.u32 %v2474, 4294901760
      %2476 = vmatpush1.msra.mxu0 %v2475
      %2477 = vmatprep.subr.mxu0 0.0
      %v2478 = vand.u32 %v383, 4294901760
      %v2479 = vsub.f32 %v383, %v2478
      %v2480 = vand.u32 %v2479, 4294901760
      %v2481 = vsub.f32 %v2479, %v2480
      %v2482 = vand.u32 %v2481, 4294901760
      %2483 = vmatpush1.msra.mxu0 %v2482
      %2484 = vmatprep.subr.mxu0 0.0
      %v2485 = vand.u32 %v384, 4294901760
      %v2486 = vsub.f32 %v384, %v2485
      %v2487 = vand.u32 %v2486, 4294901760
      %v2488 = vsub.f32 %v2486, %v2487
      %v2489 = vand.u32 %v2488, 4294901760
      %2490 = vmatpush1.msra.mxu0 %v2489
      %2491 = vmatprep.subr.mxu0 0.0
      %v2492 = vand.u32 %v385, 4294901760
      %v2493 = vsub.f32 %v385, %v2492
      %v2494 = vand.u32 %v2493, 4294901760
      %v2495 = vsub.f32 %v2493, %v2494
      %v2496 = vand.u32 %v2495, 4294901760
      %2497 = vmatpush1.msra.mxu0 %v2496
      %2498 = vmatprep.subr.mxu0 0.0
      %v2499 = vand.u32 %v386, 4294901760
      %v2500 = vsub.f32 %v386, %v2499
      %v2501 = vand.u32 %v2500, 4294901760
      %v2502 = vsub.f32 %v2500, %v2501
      %v2503 = vand.u32 %v2502, 4294901760
      %2504 = vmatpush1.msra.mxu0 %v2503
      %2505 = vmatprep.subr.mxu0 0.0
      %v2506 = vand.u32 %v387, 4294901760
      %v2507 = vsub.f32 %v387, %v2506
      %v2508 = vand.u32 %v2507, 4294901760
      %v2509 = vsub.f32 %v2507, %v2508
      %v2510 = vand.u32 %v2509, 4294901760
      %2511 = vmatpush1.msra.mxu0 %v2510
      %2512 = vmatprep.subr.mxu0 0.0
      %v2513 = vand.u32 %v388, 4294901760
      %v2514 = vsub.f32 %v388, %v2513
      %v2515 = vand.u32 %v2514, 4294901760
      %v2516 = vsub.f32 %v2514, %v2515
      %v2517 = vand.u32 %v2516, 4294901760
      %2518 = vmatpush1.msra.mxu0 %v2517
      %2519 = vmatprep.subr.mxu0 0.0
      %v2520 = vand.u32 %v389, 4294901760
      %v2521 = vsub.f32 %v389, %v2520
      %v2522 = vand.u32 %v2521, 4294901760
      %v2523 = vsub.f32 %v2521, %v2522
      %v2524 = vand.u32 %v2523, 4294901760
      %2525 = vmatpush1.msra.mxu0 %v2524
      %2526 = vmatprep.subr.mxu0 0.0
      %2527 = vmatpush1.msra.mxu0 0.0
      %2528 = vmatprep.subr.mxu0 0.0
      %2529 = vmatpush1.msra.mxu0 0.0
      %2530 = vmatprep.subr.mxu0 0.0
      %2531 = vmatpush1.msra.mxu0 0.0
      %2532 = vmatprep.subr.mxu0 0.0
      %2533 = vmatpush1.msra.mxu0 0.0
      %2534 = vmatprep.subr.mxu0 0.0
      %2535 = vmatpush1.msra.mxu0 0.0
      %2536 = vmatprep.subr.mxu0 0.0
      %2537 = vmatpush1.msra.mxu0 0.0
      %2538 = vmatprep.subr.mxu0 0.0
      %2539 = vmatpush1.msra.mxu0 0.0
      %2540 = vmatprep.subr.mxu0 0.0
      %2541 = vmatpush1.msra.mxu0 0.0
      %2542 = vmatprep.subr.mxu0 0.0
      %2543 = vmatpush1.msra.mxu0 0.0
      %2544 = vmatprep.subr.mxu0 0.0
      %2545 = vmatpush1.msra.mxu0 0.0
      %2546 = vmatprep.subr.mxu0 0.0
      %2547 = vmatpush1.msra.mxu0 0.0
      %2548 = vmatprep.subr.mxu0 0.0
      %2549 = vmatpush1.msra.mxu0 0.0
      %2550 = vmatprep.subr.mxu0 0.0
      %2551 = vmatpush1.msra.mxu0 0.0
      %2552 = vmatprep.subr.mxu0 0.0
      %2553 = vmatpush1.msra.mxu0 0.0
      %2554 = vmatprep.subr.mxu0 0.0
      %2555 = vmatpush1.msra.mxu0 0.0
      %2556 = vmatprep.subr.mxu0 0.0
      %2557 = vmatpush1.msra.mxu0 0.0
      %2558 = vmatprep.mubr.f32.mxu0 0.0
      %v2559 = vand.u32 %v1998, 4294901760
      %2560 = vmatmul.mubr.f32.gmra.mrb[0].mxu0 %v2559
      %v2561 = vpop.f32.mrb[0].mxu0
      %v2562 = vadd.f32 %v2261, %v2561
      %v2563 = vpop.f32.mrb[0].mxu0
      %2564 = vmatprep.mubr.f32.mxu0 0.0
      %v2565 = vand.u32 %v2000, 4294901760
      %2566 = vmatmul.mubr.f32.gmra.mrb[0].mxu0 %v2565
      %v2567 = vpop.f32.mrb[0].mxu0
      %v2568 = vadd.f32 %v2271, %v2567
      %v2569 = vpop.f32.mrb[0].mxu0
      %2570 = vmatprep.mubr.f32.mxu0 0.0
      %v2571 = vand.u32 %v2002, 4294901760
      %2572 = vmatmul.mubr.f32.gmra.mrb[0].mxu0 %v2571
      %v2573 = vpop.f32.mrb[0].mxu0
      %v2574 = vadd.f32 %v2281, %v2573
      %v2575 = vpop.f32.mrb[0].mxu0
      %2576 = vmatprep.mubr.f32.mxu0 0.0
      %v2577 = vand.u32 %v2004, 4294901760
      %2578 = vmatmul.mubr.f32.gmra.mrb[0].mxu0 %v2577
      %v2579 = vpop.f32.mrb[0].mxu0
      %v2580 = vadd.f32 %v2291, %v2579
      %v2581 = vpop.f32.mrb[0].mxu0
      %2582 = vmatprep.mubr.f32.mxu0 0.0
      %v2583 = vand.u32 %v2006, 4294901760
      %2584 = vmatmul.mubr.f32.gmra.mrb[0].mxu0 %v2583
      %v2585 = vpop.f32.mrb[0].mxu0
      %v2586 = vadd.f32 %v2301, %v2585
      %v2587 = vpop.f32.mrb[0].mxu0
      %2588 = vmatprep.mubr.f32.mxu0 0.0
      %v2589 = vand.u32 %v2008, 4294901760
      %2590 = vmatmul.mubr.f32.gmra.mrb[0].mxu0 %v2589
      %v2591 = vpop.f32.mrb[0].mxu0
      %v2592 = vadd.f32 %v2311, %v2591
      %v2593 = vpop.f32.mrb[0].mxu0
      %2594 = vmatprep.mubr.f32.mxu0 0.0
      %v2595 = vand.u32 %v2010, 4294901760
      %2596 = vmatmul.mubr.f32.gmra.mrb[0].mxu0 %v2595
      %v2597 = vpop.f32.mrb[0].mxu0
      %v2598 = vadd.f32 %v2321, %v2597
      %v2599 = vpop.f32.mrb[0].mxu0
      %2600 = vmatprep.mubr.f32.mxu0 0.0
      %v2601 = vand.u32 %v2012, 4294901760
      %2602 = vmatmul.mubr.f32.gmra.mrb[0].mxu0 %v2601
      %v2603 = vpop.f32.mrb[0].mxu0
      %v2604 = vadd.f32 %v2331, %v2603
      %v2605 = vpop.f32.mrb[0].mxu0
      %2606 = vmatprep.mubr.f32.mxu0 0.0
      %v2607 = vand.u32 %v2014, 4294901760
      %2608 = vmatmul.mubr.f32.gmra.mrb[0].mxu0 %v2607
      %v2609 = vpop.f32.mrb[0].mxu0
      %v2610 = vadd.f32 %v2341, %v2609
      %v2611 = vpop.f32.mrb[0].mxu0
      %2612 = vmatprep.mubr.f32.mxu0 0.0
      %v2613 = vand.u32 %v2016, 4294901760
      %2614 = vmatmul.mubr.f32.gmra.mrb[0].mxu0 %v2613
      %v2615 = vpop.f32.mrb[0].mxu0
      %v2616 = vadd.f32 %v2351, %v2615
      %v2617 = vpop.f32.mrb[0].mxu0
      %2618 = vmatprep.mubr.f32.mxu0 0.0
      %v2619 = vand.u32 %v2018, 4294901760
      %2620 = vmatmul.mubr.f32.gmra.mrb[0].mxu0 %v2619
      %v2621 = vpop.f32.mrb[0].mxu0
      %v2622 = vadd.f32 %v2361, %v2621
      %v2623 = vpop.f32.mrb[0].mxu0
      %2624 = vmatprep.mubr.f32.mxu0 0.0
      %v2625 = vand.u32 %v2020, 4294901760
      %2626 = vmatmul.mubr.f32.gmra.mrb[0].mxu0 %v2625
      %v2627 = vpop.f32.mrb[0].mxu0
      %v2628 = vadd.f32 %v2371, %v2627
      %v2629 = vpop.f32.mrb[0].mxu0
      %2630 = vmatprep.mubr.f32.mxu0 0.0
      %v2631 = vand.u32 %v2022, 4294901760
      %2632 = vmatmul.mubr.f32.gmra.mrb[0].mxu0 %v2631
      %v2633 = vpop.f32.mrb[0].mxu0
      %v2634 = vadd.f32 %v2381, %v2633
      %v2635 = vpop.f32.mrb[0].mxu0
      %2636 = vmatprep.mubr.f32.mxu0 0.0
      %v2637 = vand.u32 %v2024, 4294901760
      %2638 = vmatmul.mubr.f32.gmra.mrb[0].mxu0 %v2637
      %v2639 = vpop.f32.mrb[0].mxu0
      %v2640 = vadd.f32 %v2391, %v2639
      %v2641 = vpop.f32.mrb[0].mxu0
      %2642 = vmatprep.mubr.f32.mxu0 0.0
      %v2643 = vand.u32 %v2026, 4294901760
      %2644 = vmatmul.mubr.f32.gmra.mrb[0].mxu0 %v2643
      %v2645 = vpop.f32.mrb[0].mxu0
      %v2646 = vadd.f32 %v2401, %v2645
      %v2647 = vpop.f32.mrb[0].mxu0
      %2648 = vmatprep.mubr.f32.mxu0 0.0
      %v2649 = vand.u32 %v2028, 4294901760
      %2650 = vmatmul.mubr.f32.gmra.mrb[0].mxu0 %v2649
      %v2651 = vpop.f32.mrb[0].mxu0
      %v2652 = vadd.f32 %v2411, %v2651
      %v2653 = vpop.f32.mrb[0].mxu0
      %2654 = vdwg.mxu0
      %2655 = vmatprep.subr.mxu0 0.0
      %v2656 = vand.u32 %v374, 4294901760
      %v2657 = vsub.f32 %v374, %v2656
      %2658 = vmatpush1.msra.mxu0 %v2657
      %2659 = vmatprep.subr.mxu0 0.0
      %v2660 = vand.u32 %v375, 4294901760
      %v2661 = vsub.f32 %v375, %v2660
      %2662 = vmatpush1.msra.mxu0 %v2661
      %2663 = vmatprep.subr.mxu0 0.0
      %v2664 = vand.u32 %v376, 4294901760
      %v2665 = vsub.f32 %v376, %v2664
      %2666 = vmatpush1.msra.mxu0 %v2665
      %2667 = vmatprep.subr.mxu0 0.0
      %v2668 = vand.u32 %v377, 4294901760
      %v2669 = vsub.f32 %v377, %v2668
      %2670 = vmatpush1.msra.mxu0 %v2669
      %2671 = vmatprep.subr.mxu0 0.0
      %v2672 = vand.u32 %v378, 4294901760
      %v2673 = vsub.f32 %v378, %v2672
      %2674 = vmatpush1.msra.mxu0 %v2673
      %2675 = vmatprep.subr.mxu0 0.0
      %v2676 = vand.u32 %v379, 4294901760
      %v2677 = vsub.f32 %v379, %v2676
      %2678 = vmatpush1.msra.mxu0 %v2677
      %2679 = vmatprep.subr.mxu0 0.0
      %v2680 = vand.u32 %v380, 4294901760
      %v2681 = vsub.f32 %v380, %v2680
      %2682 = vmatpush1.msra.mxu0 %v2681
      %2683 = vmatprep.subr.mxu0 0.0
      %v2684 = vand.u32 %v381, 4294901760
      %v2685 = vsub.f32 %v381, %v2684
      %2686 = vmatpush1.msra.mxu0 %v2685
      %2687 = vmatprep.subr.mxu0 0.0
      %v2688 = vand.u32 %v382, 4294901760
      %v2689 = vsub.f32 %v382, %v2688
      %2690 = vmatpush1.msra.mxu0 %v2689
      %2691 = vmatprep.subr.mxu0 0.0
      %v2692 = vand.u32 %v383, 4294901760
      %v2693 = vsub.f32 %v383, %v2692
      %2694 = vmatpush1.msra.mxu0 %v2693
      %2695 = vmatprep.subr.mxu0 0.0
      %v2696 = vand.u32 %v384, 4294901760
      %v2697 = vsub.f32 %v384, %v2696
      %2698 = vmatpush1.msra.mxu0 %v2697
      %2699 = vmatprep.subr.mxu0 0.0
      %v2700 = vand.u32 %v385, 4294901760
      %v2701 = vsub.f32 %v385, %v2700
      %2702 = vmatpush1.msra.mxu0 %v2701
      %2703 = vmatprep.subr.mxu0 0.0
      %v2704 = vand.u32 %v386, 4294901760
      %v2705 = vsub.f32 %v386, %v2704
      %2706 = vmatpush1.msra.mxu0 %v2705
      %2707 = vmatprep.subr.mxu0 0.0
      %v2708 = vand.u32 %v387, 4294901760
      %v2709 = vsub.f32 %v387, %v2708
      %2710 = vmatpush1.msra.mxu0 %v2709
      %2711 = vmatprep.subr.mxu0 0.0
      %v2712 = vand.u32 %v388, 4294901760
      %v2713 = vsub.f32 %v388, %v2712
      %2714 = vmatpush1.msra.mxu0 %v2713
      %2715 = vmatprep.subr.mxu0 0.0
      %v2716 = vand.u32 %v389, 4294901760
      %v2717 = vsub.f32 %v389, %v2716
      %2718 = vmatpush1.msra.mxu0 %v2717
      %2719 = vmatprep.subr.mxu0 0.0
      %2720 = vmatpush1.msra.mxu0 0.0
      %2721 = vmatprep.subr.mxu0 0.0
      %2722 = vmatpush1.msra.mxu0 0.0
      %2723 = vmatprep.subr.mxu0 0.0
      %2724 = vmatpush1.msra.mxu0 0.0
      %2725 = vmatprep.subr.mxu0 0.0
      %2726 = vmatpush1.msra.mxu0 0.0
      %2727 = vmatprep.subr.mxu0 0.0
      %2728 = vmatpush1.msra.mxu0 0.0
      %2729 = vmatprep.subr.mxu0 0.0
      %2730 = vmatpush1.msra.mxu0 0.0
      %2731 = vmatprep.subr.mxu0 0.0
      %2732 = vmatpush1.msra.mxu0 0.0
      %2733 = vmatprep.subr.mxu0 0.0
      %2734 = vmatpush1.msra.mxu0 0.0
      %2735 = vmatprep.subr.mxu0 0.0
      %2736 = vmatpush1.msra.mxu0 0.0
      %2737 = vmatprep.subr.mxu0 0.0
      %2738 = vmatpush1.msra.mxu0 0.0
      %2739 = vmatprep.subr.mxu0 0.0
      %2740 = vmatpush1.msra.mxu0 0.0
      %2741 = vmatprep.subr.mxu0 0.0
      %2742 = vmatpush1.msra.mxu0 0.0
      %2743 = vmatprep.subr.mxu0 0.0
      %2744 = vmatpush1.msra.mxu0 0.0
      %2745 = vmatprep.subr.mxu0 0.0
      %2746 = vmatpush1.msra.mxu0 0.0
      %2747 = vmatprep.subr.mxu0 0.0
      %2748 = vmatpush1.msra.mxu0 0.0
      %2749 = vmatprep.subr.mxu0 0.0
      %2750 = vmatpush1.msra.mxu0 0.0
      %2751 = vmatprep.mubr.f32.mxu0 0.0
      %v2752 = vand.u32 %v1998, 4294901760
      %v2753 = vsub.f32 %v1998, %v2752
      %2754 = vmatmul.mubr.f32.gmra.mrb[0].mxu0 %v2753
      %v2755 = vpop.f32.mrb[0].mxu0
      %v2756 = vadd.f32 %v2562, %v2755
      %v2757 = vpop.f32.mrb[0].mxu0
      %2758 = vmatprep.mubr.f32.mxu0 0.0
      %v2759 = vand.u32 %v2000, 4294901760
      %v2760 = vsub.f32 %v2000, %v2759
      %2761 = vmatmul.mubr.f32.gmra.mrb[0].mxu0 %v2760
      %v2762 = vpop.f32.mrb[0].mxu0
      %v2763 = vadd.f32 %v2568, %v2762
      %v2764 = vpop.f32.mrb[0].mxu0
      %2765 = vmatprep.mubr.f32.mxu0 0.0
      %v2766 = vand.u32 %v2002, 4294901760
      %v2767 = vsub.f32 %v2002, %v2766
      %2768 = vmatmul.mubr.f32.gmra.mrb[0].mxu0 %v2767
      %v2769 = vpop.f32.mrb[0].mxu0
      %v2770 = vadd.f32 %v2574, %v2769
      %v2771 = vpop.f32.mrb[0].mxu0
      %2772 = vmatprep.mubr.f32.mxu0 0.0
      %v2773 = vand.u32 %v2004, 4294901760
      %v2774 = vsub.f32 %v2004, %v2773
      %2775 = vmatmul.mubr.f32.gmra.mrb[0].mxu0 %v2774
      %v2776 = vpop.f32.mrb[0].mxu0
      %v2777 = vadd.f32 %v2580, %v2776
      %v2778 = vpop.f32.mrb[0].mxu0
      %2779 = vmatprep.mubr.f32.mxu0 0.0
      %v2780 = vand.u32 %v2006, 4294901760
      %v2781 = vsub.f32 %v2006, %v2780
      %2782 = vmatmul.mubr.f32.gmra.mrb[0].mxu0 %v2781
      %v2783 = vpop.f32.mrb[0].mxu0
      %v2784 = vadd.f32 %v2586, %v2783
      %v2785 = vpop.f32.mrb[0].mxu0
      %2786 = vmatprep.mubr.f32.mxu0 0.0
      %v2787 = vand.u32 %v2008, 4294901760
      %v2788 = vsub.f32 %v2008, %v2787
      %2789 = vmatmul.mubr.f32.gmra.mrb[0].mxu0 %v2788
      %v2790 = vpop.f32.mrb[0].mxu0
      %v2791 = vadd.f32 %v2592, %v2790
      %v2792 = vpop.f32.mrb[0].mxu0
      %2793 = vmatprep.mubr.f32.mxu0 0.0
      %v2794 = vand.u32 %v2010, 4294901760
      %v2795 = vsub.f32 %v2010, %v2794
      %2796 = vmatmul.mubr.f32.gmra.mrb[0].mxu0 %v2795
      %v2797 = vpop.f32.mrb[0].mxu0
      %v2798 = vadd.f32 %v2598, %v2797
      %v2799 = vpop.f32.mrb[0].mxu0
      %2800 = vmatprep.mubr.f32.mxu0 0.0
      %v2801 = vand.u32 %v2012, 4294901760
      %v2802 = vsub.f32 %v2012, %v2801
      %2803 = vmatmul.mubr.f32.gmra.mrb[0].mxu0 %v2802
      %v2804 = vpop.f32.mrb[0].mxu0
      %v2805 = vadd.f32 %v2604, %v2804
      %v2806 = vpop.f32.mrb[0].mxu0
      %2807 = vmatprep.mubr.f32.mxu0 0.0
      %v2808 = vand.u32 %v2014, 4294901760
      %v2809 = vsub.f32 %v2014, %v2808
      %2810 = vmatmul.mubr.f32.gmra.mrb[0].mxu0 %v2809
      %v2811 = vpop.f32.mrb[0].mxu0
      %v2812 = vadd.f32 %v2610, %v2811
      %v2813 = vpop.f32.mrb[0].mxu0
      %2814 = vmatprep.mubr.f32.mxu0 0.0
      %v2815 = vand.u32 %v2016, 4294901760
      %v2816 = vsub.f32 %v2016, %v2815
      %2817 = vmatmul.mubr.f32.gmra.mrb[0].mxu0 %v2816
      %v2818 = vpop.f32.mrb[0].mxu0
      %v2819 = vadd.f32 %v2616, %v2818
      %v2820 = vpop.f32.mrb[0].mxu0
      %2821 = vmatprep.mubr.f32.mxu0 0.0
      %v2822 = vand.u32 %v2018, 4294901760
      %v2823 = vsub.f32 %v2018, %v2822
      %2824 = vmatmul.mubr.f32.gmra.mrb[0].mxu0 %v2823
      %v2825 = vpop.f32.mrb[0].mxu0
      %v2826 = vadd.f32 %v2622, %v2825
      %v2827 = vpop.f32.mrb[0].mxu0
      %2828 = vmatprep.mubr.f32.mxu0 0.0
      %v2829 = vand.u32 %v2020, 4294901760
      %v2830 = vsub.f32 %v2020, %v2829
      %2831 = vmatmul.mubr.f32.gmra.mrb[0].mxu0 %v2830
      %v2832 = vpop.f32.mrb[0].mxu0
      %v2833 = vadd.f32 %v2628, %v2832
      %v2834 = vpop.f32.mrb[0].mxu0
      %2835 = vmatprep.mubr.f32.mxu0 0.0
      %v2836 = vand.u32 %v2022, 4294901760
      %v2837 = vsub.f32 %v2022, %v2836
      %2838 = vmatmul.mubr.f32.gmra.mrb[0].mxu0 %v2837
      %v2839 = vpop.f32.mrb[0].mxu0
      %v2840 = vadd.f32 %v2634, %v2839
      %v2841 = vpop.f32.mrb[0].mxu0
      %2842 = vmatprep.mubr.f32.mxu0 0.0
      %v2843 = vand.u32 %v2024, 4294901760
      %v2844 = vsub.f32 %v2024, %v2843
      %2845 = vmatmul.mubr.f32.gmra.mrb[0].mxu0 %v2844
      %v2846 = vpop.f32.mrb[0].mxu0
      %v2847 = vadd.f32 %v2640, %v2846
      %v2848 = vpop.f32.mrb[0].mxu0
      %2849 = vmatprep.mubr.f32.mxu0 0.0
      %v2850 = vand.u32 %v2026, 4294901760
      %v2851 = vsub.f32 %v2026, %v2850
      %2852 = vmatmul.mubr.f32.gmra.mrb[0].mxu0 %v2851
      %v2853 = vpop.f32.mrb[0].mxu0
      %v2854 = vadd.f32 %v2646, %v2853
      %v2855 = vpop.f32.mrb[0].mxu0
      %2856 = vmatprep.mubr.f32.mxu0 0.0
      %v2857 = vand.u32 %v2028, 4294901760
      %v2858 = vsub.f32 %v2028, %v2857
      %2859 = vmatmul.mubr.f32.gmra.mrb[0].mxu0 %v2858
      %v2860 = vpop.f32.mrb[0].mxu0
      %v2861 = vadd.f32 %v2652, %v2860
      %v2862 = vpop.f32.mrb[0].mxu0
      %2863 = vdwg.mxu0
      %2864 = vmatprep.subr.mxu0 0.0
      %v2865 = vand.u32 %v374, 4294901760
      %2866 = vmatpush1.msra.mxu0 %v2865
      %2867 = vmatprep.subr.mxu0 0.0
      %v2868 = vand.u32 %v375, 4294901760
      %2869 = vmatpush1.msra.mxu0 %v2868
      %2870 = vmatprep.subr.mxu0 0.0
      %v2871 = vand.u32 %v376, 4294901760
      %2872 = vmatpush1.msra.mxu0 %v2871
      %2873 = vmatprep.subr.mxu0 0.0
      %v2874 = vand.u32 %v377, 4294901760
      %2875 = vmatpush1.msra.mxu0 %v2874
      %2876 = vmatprep.subr.mxu0 0.0
      %v2877 = vand.u32 %v378, 4294901760
      %2878 = vmatpush1.msra.mxu0 %v2877
      %2879 = vmatprep.subr.mxu0 0.0
      %v2880 = vand.u32 %v379, 4294901760
      %2881 = vmatpush1.msra.mxu0 %v2880
      %2882 = vmatprep.subr.mxu0 0.0
      %v2883 = vand.u32 %v380, 4294901760
      %2884 = vmatpush1.msra.mxu0 %v2883
      %2885 = vmatprep.subr.mxu0 0.0
      %v2886 = vand.u32 %v381, 4294901760
      %2887 = vmatpush1.msra.mxu0 %v2886
      %2888 = vmatprep.subr.mxu0 0.0
      %v2889 = vand.u32 %v382, 4294901760
      %2890 = vmatpush1.msra.mxu0 %v2889
      %2891 = vmatprep.subr.mxu0 0.0
      %v2892 = vand.u32 %v383, 4294901760
      %2893 = vmatpush1.msra.mxu0 %v2892
      %2894 = vmatprep.subr.mxu0 0.0
      %v2895 = vand.u32 %v384, 4294901760
      %2896 = vmatpush1.msra.mxu0 %v2895
      %2897 = vmatprep.subr.mxu0 0.0
      %v2898 = vand.u32 %v385, 4294901760
      %2899 = vmatpush1.msra.mxu0 %v2898
      %2900 = vmatprep.subr.mxu0 0.0
      %v2901 = vand.u32 %v386, 4294901760
      %2902 = vmatpush1.msra.mxu0 %v2901
      %2903 = vmatprep.subr.mxu0 0.0
      %v2904 = vand.u32 %v387, 4294901760
      %2905 = vmatpush1.msra.mxu0 %v2904
      %2906 = vmatprep.subr.mxu0 0.0
      %v2907 = vand.u32 %v388, 4294901760
      %2908 = vmatpush1.msra.mxu0 %v2907
      %2909 = vmatprep.subr.mxu0 0.0
      %v2910 = vand.u32 %v389, 4294901760
      %2911 = vmatpush1.msra.mxu0 %v2910
      %2912 = vmatprep.subr.mxu0 0.0
      %2913 = vmatpush1.msra.mxu0 0.0
      %2914 = vmatprep.subr.mxu0 0.0
      %2915 = vmatpush1.msra.mxu0 0.0
      %2916 = vmatprep.subr.mxu0 0.0
      %2917 = vmatpush1.msra.mxu0 0.0
      %2918 = vmatprep.subr.mxu0 0.0
      %2919 = vmatpush1.msra.mxu0 0.0
      %2920 = vmatprep.subr.mxu0 0.0
      %2921 = vmatpush1.msra.mxu0 0.0
      %2922 = vmatprep.subr.mxu0 0.0
      %2923 = vmatpush1.msra.mxu0 0.0
      %2924 = vmatprep.subr.mxu0 0.0
      %2925 = vmatpush1.msra.mxu0 0.0
      %2926 = vmatprep.subr.mxu0 0.0
      %2927 = vmatpush1.msra.mxu0 0.0
      %2928 = vmatprep.subr.mxu0 0.0
      %2929 = vmatpush1.msra.mxu0 0.0
      %2930 = vmatprep.subr.mxu0 0.0
      %2931 = vmatpush1.msra.mxu0 0.0
      %2932 = vmatprep.subr.mxu0 0.0
      %2933 = vmatpush1.msra.mxu0 0.0
      %2934 = vmatprep.subr.mxu0 0.0
      %2935 = vmatpush1.msra.mxu0 0.0
      %2936 = vmatprep.subr.mxu0 0.0
      %2937 = vmatpush1.msra.mxu0 0.0
      %2938 = vmatprep.subr.mxu0 0.0
      %2939 = vmatpush1.msra.mxu0 0.0
      %2940 = vmatprep.subr.mxu0 0.0
      %2941 = vmatpush1.msra.mxu0 0.0
      %2942 = vmatprep.subr.mxu0 0.0
      %2943 = vmatpush1.msra.mxu0 0.0
      %2944 = vmatprep.mubr.f32.mxu0 0.0
      %v2945 = vand.u32 %v1998, 4294901760
      %v2946 = vsub.f32 %v1998, %v2945
      %v2947 = vand.u32 %v2946, 4294901760
      %2948 = vmatmul.mubr.f32.gmra.mrb[0].mxu0 %v2947
      %v2949 = vpop.f32.mrb[0].mxu0
      %v2950 = vadd.f32 %v2756, %v2949
      %v2951 = vpop.f32.mrb[0].mxu0
      %2952 = vmatprep.mubr.f32.mxu0 0.0
      %v2953 = vand.u32 %v2000, 4294901760
      %v2954 = vsub.f32 %v2000, %v2953
      %v2955 = vand.u32 %v2954, 4294901760
      %2956 = vmatmul.mubr.f32.gmra.mrb[0].mxu0 %v2955
      %v2957 = vpop.f32.mrb[0].mxu0
      %v2958 = vadd.f32 %v2763, %v2957
      %v2959 = vpop.f32.mrb[0].mxu0
      %2960 = vmatprep.mubr.f32.mxu0 0.0
      %v2961 = vand.u32 %v2002, 4294901760
      %v2962 = vsub.f32 %v2002, %v2961
      %v2963 = vand.u32 %v2962, 4294901760
      %2964 = vmatmul.mubr.f32.gmra.mrb[0].mxu0 %v2963
      %v2965 = vpop.f32.mrb[0].mxu0
      %v2966 = vadd.f32 %v2770, %v2965
      %v2967 = vpop.f32.mrb[0].mxu0
      %2968 = vmatprep.mubr.f32.mxu0 0.0
      %v2969 = vand.u32 %v2004, 4294901760
      %v2970 = vsub.f32 %v2004, %v2969
      %v2971 = vand.u32 %v2970, 4294901760
      %2972 = vmatmul.mubr.f32.gmra.mrb[0].mxu0 %v2971
      %v2973 = vpop.f32.mrb[0].mxu0
      %v2974 = vadd.f32 %v2777, %v2973
      %v2975 = vpop.f32.mrb[0].mxu0
      %2976 = vmatprep.mubr.f32.mxu0 0.0
      %v2977 = vand.u32 %v2006, 4294901760
      %v2978 = vsub.f32 %v2006, %v2977
      %v2979 = vand.u32 %v2978, 4294901760
      %2980 = vmatmul.mubr.f32.gmra.mrb[0].mxu0 %v2979
      %v2981 = vpop.f32.mrb[0].mxu0
      %v2982 = vadd.f32 %v2784, %v2981
      %v2983 = vpop.f32.mrb[0].mxu0
      %2984 = vmatprep.mubr.f32.mxu0 0.0
      %v2985 = vand.u32 %v2008, 4294901760
      %v2986 = vsub.f32 %v2008, %v2985
      %v2987 = vand.u32 %v2986, 4294901760
      %2988 = vmatmul.mubr.f32.gmra.mrb[0].mxu0 %v2987
      %v2989 = vpop.f32.mrb[0].mxu0
      %v2990 = vadd.f32 %v2791, %v2989
      %v2991 = vpop.f32.mrb[0].mxu0
      %2992 = vmatprep.mubr.f32.mxu0 0.0
      %v2993 = vand.u32 %v2010, 4294901760
      %v2994 = vsub.f32 %v2010, %v2993
      %v2995 = vand.u32 %v2994, 4294901760
      %2996 = vmatmul.mubr.f32.gmra.mrb[0].mxu0 %v2995
      %v2997 = vpop.f32.mrb[0].mxu0
      %v2998 = vadd.f32 %v2798, %v2997
      %v2999 = vpop.f32.mrb[0].mxu0
      %3000 = vmatprep.mubr.f32.mxu0 0.0
      %v3001 = vand.u32 %v2012, 4294901760
      %v3002 = vsub.f32 %v2012, %v3001
      %v3003 = vand.u32 %v3002, 4294901760
      %3004 = vmatmul.mubr.f32.gmra.mrb[0].mxu0 %v3003
      %v3005 = vpop.f32.mrb[0].mxu0
      %v3006 = vadd.f32 %v2805, %v3005
      %v3007 = vpop.f32.mrb[0].mxu0
      %3008 = vmatprep.mubr.f32.mxu0 0.0
      %v3009 = vand.u32 %v2014, 4294901760
      %v3010 = vsub.f32 %v2014, %v3009
      %v3011 = vand.u32 %v3010, 4294901760
      %3012 = vmatmul.mubr.f32.gmra.mrb[0].mxu0 %v3011
      %v3013 = vpop.f32.mrb[0].mxu0
      %v3014 = vadd.f32 %v2812, %v3013
      %v3015 = vpop.f32.mrb[0].mxu0
      %3016 = vmatprep.mubr.f32.mxu0 0.0
      %v3017 = vand.u32 %v2016, 4294901760
      %v3018 = vsub.f32 %v2016, %v3017
      %v3019 = vand.u32 %v3018, 4294901760
      %3020 = vmatmul.mubr.f32.gmra.mrb[0].mxu0 %v3019
      %v3021 = vpop.f32.mrb[0].mxu0
      %v3022 = vadd.f32 %v2819, %v3021
      %v3023 = vpop.f32.mrb[0].mxu0
      %3024 = vmatprep.mubr.f32.mxu0 0.0
      %v3025 = vand.u32 %v2018, 4294901760
      %v3026 = vsub.f32 %v2018, %v3025
      %v3027 = vand.u32 %v3026, 4294901760
      %3028 = vmatmul.mubr.f32.gmra.mrb[0].mxu0 %v3027
      %v3029 = vpop.f32.mrb[0].mxu0
      %v3030 = vadd.f32 %v2826, %v3029
      %v3031 = vpop.f32.mrb[0].mxu0
      %3032 = vmatprep.mubr.f32.mxu0 0.0
      %v3033 = vand.u32 %v2020, 4294901760
      %v3034 = vsub.f32 %v2020, %v3033
      %v3035 = vand.u32 %v3034, 4294901760
      %3036 = vmatmul.mubr.f32.gmra.mrb[0].mxu0 %v3035
      %v3037 = vpop.f32.mrb[0].mxu0
      %v3038 = vadd.f32 %v2833, %v3037
      %v3039 = vpop.f32.mrb[0].mxu0
      %3040 = vmatprep.mubr.f32.mxu0 0.0
      %v3041 = vand.u32 %v2022, 4294901760
      %v3042 = vsub.f32 %v2022, %v3041
      %v3043 = vand.u32 %v3042, 4294901760
      %3044 = vmatmul.mubr.f32.gmra.mrb[0].mxu0 %v3043
      %v3045 = vpop.f32.mrb[0].mxu0
      %v3046 = vadd.f32 %v2840, %v3045
      %v3047 = vpop.f32.mrb[0].mxu0
      %3048 = vmatprep.mubr.f32.mxu0 0.0
      %v3049 = vand.u32 %v2024, 4294901760
      %v3050 = vsub.f32 %v2024, %v3049
      %v3051 = vand.u32 %v3050, 4294901760
      %3052 = vmatmul.mubr.f32.gmra.mrb[0].mxu0 %v3051
      %v3053 = vpop.f32.mrb[0].mxu0
      %v3054 = vadd.f32 %v2847, %v3053
      %v3055 = vpop.f32.mrb[0].mxu0
      %3056 = vmatprep.mubr.f32.mxu0 0.0
      %v3057 = vand.u32 %v2026, 4294901760
      %v3058 = vsub.f32 %v2026, %v3057
      %v3059 = vand.u32 %v3058, 4294901760
      %3060 = vmatmul.mubr.f32.gmra.mrb[0].mxu0 %v3059
      %v3061 = vpop.f32.mrb[0].mxu0
      %v3062 = vadd.f32 %v2854, %v3061
      %v3063 = vpop.f32.mrb[0].mxu0
      %3064 = vmatprep.mubr.f32.mxu0 0.0
      %v3065 = vand.u32 %v2028, 4294901760
      %v3066 = vsub.f32 %v2028, %v3065
      %v3067 = vand.u32 %v3066, 4294901760
      %3068 = vmatmul.mubr.f32.gmra.mrb[0].mxu0 %v3067
      %v3069 = vpop.f32.mrb[0].mxu0
      %v3070 = vadd.f32 %v2861, %v3069
      %v3071 = vpop.f32.mrb[0].mxu0
      %3072 = vdwg.mxu0
      %3073 = vmatprep.subr.mxu0 0.0
      %v3074 = vand.u32 %v374, 4294901760
      %v3075 = vsub.f32 %v374, %v3074
      %v3076 = vand.u32 %v3075, 4294901760
      %3077 = vmatpush1.msra.mxu0 %v3076
      %3078 = vmatprep.subr.mxu0 0.0
      %v3079 = vand.u32 %v375, 4294901760
      %v3080 = vsub.f32 %v375, %v3079
      %v3081 = vand.u32 %v3080, 4294901760
      %3082 = vmatpush1.msra.mxu0 %v3081
      %3083 = vmatprep.subr.mxu0 0.0
      %v3084 = vand.u32 %v376, 4294901760
      %v3085 = vsub.f32 %v376, %v3084
      %v3086 = vand.u32 %v3085, 4294901760
      %3087 = vmatpush1.msra.mxu0 %v3086
      %3088 = vmatprep.subr.mxu0 0.0
      %v3089 = vand.u32 %v377, 4294901760
      %v3090 = vsub.f32 %v377, %v3089
      %v3091 = vand.u32 %v3090, 4294901760
      %3092 = vmatpush1.msra.mxu0 %v3091
      %3093 = vmatprep.subr.mxu0 0.0
      %v3094 = vand.u32 %v378, 4294901760
      %v3095 = vsub.f32 %v378, %v3094
      %v3096 = vand.u32 %v3095, 4294901760
      %3097 = vmatpush1.msra.mxu0 %v3096
      %3098 = vmatprep.subr.mxu0 0.0
      %v3099 = vand.u32 %v379, 4294901760
      %v3100 = vsub.f32 %v379, %v3099
      %v3101 = vand.u32 %v3100, 4294901760
      %3102 = vmatpush1.msra.mxu0 %v3101
      %3103 = vmatprep.subr.mxu0 0.0
      %v3104 = vand.u32 %v380, 4294901760
      %v3105 = vsub.f32 %v380, %v3104
      %v3106 = vand.u32 %v3105, 4294901760
      %3107 = vmatpush1.msra.mxu0 %v3106
      %3108 = vmatprep.subr.mxu0 0.0
      %v3109 = vand.u32 %v381, 4294901760
      %v3110 = vsub.f32 %v381, %v3109
      %v3111 = vand.u32 %v3110, 4294901760
      %3112 = vmatpush1.msra.mxu0 %v3111
      %3113 = vmatprep.subr.mxu0 0.0
      %v3114 = vand.u32 %v382, 4294901760
      %v3115 = vsub.f32 %v382, %v3114
      %v3116 = vand.u32 %v3115, 4294901760
      %3117 = vmatpush1.msra.mxu0 %v3116
      %3118 = vmatprep.subr.mxu0 0.0
      %v3119 = vand.u32 %v383, 4294901760
      %v3120 = vsub.f32 %v383, %v3119
      %v3121 = vand.u32 %v3120, 4294901760
      %3122 = vmatpush1.msra.mxu0 %v3121
      %3123 = vmatprep.subr.mxu0 0.0
      %v3124 = vand.u32 %v384, 4294901760
      %v3125 = vsub.f32 %v384, %v3124
      %v3126 = vand.u32 %v3125, 4294901760
      %3127 = vmatpush1.msra.mxu0 %v3126
      %3128 = vmatprep.subr.mxu0 0.0
      %v3129 = vand.u32 %v385, 4294901760
      %v3130 = vsub.f32 %v385, %v3129
      %v3131 = vand.u32 %v3130, 4294901760
      %3132 = vmatpush1.msra.mxu0 %v3131
      %3133 = vmatprep.subr.mxu0 0.0
      %v3134 = vand.u32 %v386, 4294901760
      %v3135 = vsub.f32 %v386, %v3134
      %v3136 = vand.u32 %v3135, 4294901760
      %3137 = vmatpush1.msra.mxu0 %v3136
      %3138 = vmatprep.subr.mxu0 0.0
      %v3139 = vand.u32 %v387, 4294901760
      %v3140 = vsub.f32 %v387, %v3139
      %v3141 = vand.u32 %v3140, 4294901760
      %3142 = vmatpush1.msra.mxu0 %v3141
      %3143 = vmatprep.subr.mxu0 0.0
      %v3144 = vand.u32 %v388, 4294901760
      %v3145 = vsub.f32 %v388, %v3144
      %v3146 = vand.u32 %v3145, 4294901760
      %3147 = vmatpush1.msra.mxu0 %v3146
      %3148 = vmatprep.subr.mxu0 0.0
      %v3149 = vand.u32 %v389, 4294901760
      %v3150 = vsub.f32 %v389, %v3149
      %v3151 = vand.u32 %v3150, 4294901760
      %3152 = vmatpush1.msra.mxu0 %v3151
      %3153 = vmatprep.subr.mxu0 0.0
      %3154 = vmatpush1.msra.mxu0 0.0
      %3155 = vmatprep.subr.mxu0 0.0
      %3156 = vmatpush1.msra.mxu0 0.0
      %3157 = vmatprep.subr.mxu0 0.0
      %3158 = vmatpush1.msra.mxu0 0.0
      %3159 = vmatprep.subr.mxu0 0.0
      %3160 = vmatpush1.msra.mxu0 0.0
      %3161 = vmatprep.subr.mxu0 0.0
      %3162 = vmatpush1.msra.mxu0 0.0
      %3163 = vmatprep.subr.mxu0 0.0
      %3164 = vmatpush1.msra.mxu0 0.0
      %3165 = vmatprep.subr.mxu0 0.0
      %3166 = vmatpush1.msra.mxu0 0.0
      %3167 = vmatprep.subr.mxu0 0.0
      %3168 = vmatpush1.msra.mxu0 0.0
      %3169 = vmatprep.subr.mxu0 0.0
      %3170 = vmatpush1.msra.mxu0 0.0
      %3171 = vmatprep.subr.mxu0 0.0
      %3172 = vmatpush1.msra.mxu0 0.0
      %3173 = vmatprep.subr.mxu0 0.0
      %3174 = vmatpush1.msra.mxu0 0.0
      %3175 = vmatprep.subr.mxu0 0.0
      %3176 = vmatpush1.msra.mxu0 0.0
      %3177 = vmatprep.subr.mxu0 0.0
      %3178 = vmatpush1.msra.mxu0 0.0
      %3179 = vmatprep.subr.mxu0 0.0
      %3180 = vmatpush1.msra.mxu0 0.0
      %3181 = vmatprep.subr.mxu0 0.0
      %3182 = vmatpush1.msra.mxu0 0.0
      %3183 = vmatprep.subr.mxu0 0.0
      %3184 = vmatpush1.msra.mxu0 0.0
      %3185 = vmatprep.mubr.f32.mxu0 0.0
      %v3186 = vand.u32 %v1998, 4294901760
      %3187 = vmatmul.mubr.f32.gmra.mrb[0].mxu0 %v3186
      %v3188 = vpop.f32.mrb[0].mxu0
      %v3189 = vadd.f32 %v2950, %v3188
      %v3190 = vpop.f32.mrb[0].mxu0
      %3191 = vmatprep.mubr.f32.mxu0 0.0
      %v3192 = vand.u32 %v2000, 4294901760
      %3193 = vmatmul.mubr.f32.gmra.mrb[0].mxu0 %v3192
      %v3194 = vpop.f32.mrb[0].mxu0
      %v3195 = vadd.f32 %v2958, %v3194
      %v3196 = vpop.f32.mrb[0].mxu0
      %3197 = vmatprep.mubr.f32.mxu0 0.0
      %v3198 = vand.u32 %v2002, 4294901760
      %3199 = vmatmul.mubr.f32.gmra.mrb[0].mxu0 %v3198
      %v3200 = vpop.f32.mrb[0].mxu0
      %v3201 = vadd.f32 %v2966, %v3200
      %v3202 = vpop.f32.mrb[0].mxu0
      %3203 = vmatprep.mubr.f32.mxu0 0.0
      %v3204 = vand.u32 %v2004, 4294901760
      %3205 = vmatmul.mubr.f32.gmra.mrb[0].mxu0 %v3204
      %v3206 = vpop.f32.mrb[0].mxu0
      %v3207 = vadd.f32 %v2974, %v3206
      %v3208 = vpop.f32.mrb[0].mxu0
      %3209 = vmatprep.mubr.f32.mxu0 0.0
      %v3210 = vand.u32 %v2006, 4294901760
      %3211 = vmatmul.mubr.f32.gmra.mrb[0].mxu0 %v3210
      %v3212 = vpop.f32.mrb[0].mxu0
      %v3213 = vadd.f32 %v2982, %v3212
      %v3214 = vpop.f32.mrb[0].mxu0
      %3215 = vmatprep.mubr.f32.mxu0 0.0
      %v3216 = vand.u32 %v2008, 4294901760
      %3217 = vmatmul.mubr.f32.gmra.mrb[0].mxu0 %v3216
      %v3218 = vpop.f32.mrb[0].mxu0
      %v3219 = vadd.f32 %v2990, %v3218
      %v3220 = vpop.f32.mrb[0].mxu0
      %3221 = vmatprep.mubr.f32.mxu0 0.0
      %v3222 = vand.u32 %v2010, 4294901760
      %3223 = vmatmul.mubr.f32.gmra.mrb[0].mxu0 %v3222
      %v3224 = vpop.f32.mrb[0].mxu0
      %v3225 = vadd.f32 %v2998, %v3224
      %v3226 = vpop.f32.mrb[0].mxu0
      %3227 = vmatprep.mubr.f32.mxu0 0.0
      %v3228 = vand.u32 %v2012, 4294901760
      %3229 = vmatmul.mubr.f32.gmra.mrb[0].mxu0 %v3228
      %v3230 = vpop.f32.mrb[0].mxu0
      %v3231 = vadd.f32 %v3006, %v3230
      %v3232 = vpop.f32.mrb[0].mxu0
      %3233 = vmatprep.mubr.f32.mxu0 0.0
      %v3234 = vand.u32 %v2014, 4294901760
      %3235 = vmatmul.mubr.f32.gmra.mrb[0].mxu0 %v3234
      %v3236 = vpop.f32.mrb[0].mxu0
      %v3237 = vadd.f32 %v3014, %v3236
      %v3238 = vpop.f32.mrb[0].mxu0
      %3239 = vmatprep.mubr.f32.mxu0 0.0
      %v3240 = vand.u32 %v2016, 4294901760
      %3241 = vmatmul.mubr.f32.gmra.mrb[0].mxu0 %v3240
      %v3242 = vpop.f32.mrb[0].mxu0
      %v3243 = vadd.f32 %v3022, %v3242
      %v3244 = vpop.f32.mrb[0].mxu0
      %3245 = vmatprep.mubr.f32.mxu0 0.0
      %v3246 = vand.u32 %v2018, 4294901760
      %3247 = vmatmul.mubr.f32.gmra.mrb[0].mxu0 %v3246
      %v3248 = vpop.f32.mrb[0].mxu0
      %v3249 = vadd.f32 %v3030, %v3248
      %v3250 = vpop.f32.mrb[0].mxu0
      %3251 = vmatprep.mubr.f32.mxu0 0.0
      %v3252 = vand.u32 %v2020, 4294901760
      %3253 = vmatmul.mubr.f32.gmra.mrb[0].mxu0 %v3252
      %v3254 = vpop.f32.mrb[0].mxu0
      %v3255 = vadd.f32 %v3038, %v3254
      %v3256 = vpop.f32.mrb[0].mxu0
      %3257 = vmatprep.mubr.f32.mxu0 0.0
      %v3258 = vand.u32 %v2022, 4294901760
      %3259 = vmatmul.mubr.f32.gmra.mrb[0].mxu0 %v3258
      %v3260 = vpop.f32.mrb[0].mxu0
      %v3261 = vadd.f32 %v3046, %v3260
      %v3262 = vpop.f32.mrb[0].mxu0
      %3263 = vmatprep.mubr.f32.mxu0 0.0
      %v3264 = vand.u32 %v2024, 4294901760
      %3265 = vmatmul.mubr.f32.gmra.mrb[0].mxu0 %v3264
      %v3266 = vpop.f32.mrb[0].mxu0
      %v3267 = vadd.f32 %v3054, %v3266
      %v3268 = vpop.f32.mrb[0].mxu0
      %3269 = vmatprep.mubr.f32.mxu0 0.0
      %v3270 = vand.u32 %v2026, 4294901760
      %3271 = vmatmul.mubr.f32.gmra.mrb[0].mxu0 %v3270
      %v3272 = vpop.f32.mrb[0].mxu0
      %v3273 = vadd.f32 %v3062, %v3272
      %v3274 = vpop.f32.mrb[0].mxu0
      %3275 = vmatprep.mubr.f32.mxu0 0.0
      %v3276 = vand.u32 %v2028, 4294901760
      %3277 = vmatmul.mubr.f32.gmra.mrb[0].mxu0 %v3276
      %v3278 = vpop.f32.mrb[0].mxu0
      %v3279 = vadd.f32 %v3070, %v3278
      %v3280 = vpop.f32.mrb[0].mxu0
      %3281 = vdwg.mxu0
      %3282 = vmatprep.subr.mxu0 0.0
      %v3283 = vand.u32 %v374, 4294901760
      %3284 = vmatpush1.msra.mxu0 %v3283
      %3285 = vmatprep.subr.mxu0 0.0
      %v3286 = vand.u32 %v375, 4294901760
      %3287 = vmatpush1.msra.mxu0 %v3286
      %3288 = vmatprep.subr.mxu0 0.0
      %v3289 = vand.u32 %v376, 4294901760
      %3290 = vmatpush1.msra.mxu0 %v3289
      %3291 = vmatprep.subr.mxu0 0.0
      %v3292 = vand.u32 %v377, 4294901760
      %3293 = vmatpush1.msra.mxu0 %v3292
      %3294 = vmatprep.subr.mxu0 0.0
      %v3295 = vand.u32 %v378, 4294901760
      %3296 = vmatpush1.msra.mxu0 %v3295
      %3297 = vmatprep.subr.mxu0 0.0
      %v3298 = vand.u32 %v379, 4294901760
      %3299 = vmatpush1.msra.mxu0 %v3298
      %3300 = vmatprep.subr.mxu0 0.0
      %v3301 = vand.u32 %v380, 4294901760
      %3302 = vmatpush1.msra.mxu0 %v3301
      %3303 = vmatprep.subr.mxu0 0.0
      %v3304 = vand.u32 %v381, 4294901760
      %3305 = vmatpush1.msra.mxu0 %v3304
      %3306 = vmatprep.subr.mxu0 0.0
      %v3307 = vand.u32 %v382, 4294901760
      %3308 = vmatpush1.msra.mxu0 %v3307
      %3309 = vmatprep.subr.mxu0 0.0
      %v3310 = vand.u32 %v383, 4294901760
      %3311 = vmatpush1.msra.mxu0 %v3310
      %3312 = vmatprep.subr.mxu0 0.0
      %v3313 = vand.u32 %v384, 4294901760
      %3314 = vmatpush1.msra.mxu0 %v3313
      %3315 = vmatprep.subr.mxu0 0.0
      %v3316 = vand.u32 %v385, 4294901760
      %3317 = vmatpush1.msra.mxu0 %v3316
      %3318 = vmatprep.subr.mxu0 0.0
      %v3319 = vand.u32 %v386, 4294901760
      %3320 = vmatpush1.msra.mxu0 %v3319
      %3321 = vmatprep.subr.mxu0 0.0
      %v3322 = vand.u32 %v387, 4294901760
      %3323 = vmatpush1.msra.mxu0 %v3322
      %3324 = vmatprep.subr.mxu0 0.0
      %v3325 = vand.u32 %v388, 4294901760
      %3326 = vmatpush1.msra.mxu0 %v3325
      %3327 = vmatprep.subr.mxu0 0.0
      %v3328 = vand.u32 %v389, 4294901760
      %3329 = vmatpush1.msra.mxu0 %v3328
      %3330 = vmatprep.subr.mxu0 0.0
      %3331 = vmatpush1.msra.mxu0 0.0
      %3332 = vmatprep.subr.mxu0 0.0
      %3333 = vmatpush1.msra.mxu0 0.0
      %3334 = vmatprep.subr.mxu0 0.0
      %3335 = vmatpush1.msra.mxu0 0.0
      %3336 = vmatprep.subr.mxu0 0.0
      %3337 = vmatpush1.msra.mxu0 0.0
      %3338 = vmatprep.subr.mxu0 0.0
      %3339 = vmatpush1.msra.mxu0 0.0
      %3340 = vmatprep.subr.mxu0 0.0
      %3341 = vmatpush1.msra.mxu0 0.0
      %3342 = vmatprep.subr.mxu0 0.0
      %3343 = vmatpush1.msra.mxu0 0.0
      %3344 = vmatprep.subr.mxu0 0.0
      %3345 = vmatpush1.msra.mxu0 0.0
      %3346 = vmatprep.subr.mxu0 0.0
      %3347 = vmatpush1.msra.mxu0 0.0
      %3348 = vmatprep.subr.mxu0 0.0
      %3349 = vmatpush1.msra.mxu0 0.0
      %3350 = vmatprep.subr.mxu0 0.0
      %3351 = vmatpush1.msra.mxu0 0.0
      %3352 = vmatprep.subr.mxu0 0.0
      %3353 = vmatpush1.msra.mxu0 0.0
      %3354 = vmatprep.subr.mxu0 0.0
      %3355 = vmatpush1.msra.mxu0 0.0
      %3356 = vmatprep.subr.mxu0 0.0
      %3357 = vmatpush1.msra.mxu0 0.0
      %3358 = vmatprep.subr.mxu0 0.0
      %3359 = vmatpush1.msra.mxu0 0.0
      %3360 = vmatprep.subr.mxu0 0.0
      %3361 = vmatpush1.msra.mxu0 0.0
      %3362 = vmatprep.mubr.f32.mxu0 0.0
      %v3363 = vand.u32 %v1998, 4294901760
      %3364 = vmatmul.mubr.f32.gmra.mrb[0].mxu0 %v3363
      %v3365 = vpop.f32.mrb[0].mxu0
      %v3366 = vadd.f32 %v3189, %v3365
      %v3367 = vpop.f32.mrb[0].mxu0
      %3368 = vmatprep.mubr.f32.mxu0 0.0
      %v3369 = vand.u32 %v2000, 4294901760
      %3370 = vmatmul.mubr.f32.gmra.mrb[0].mxu0 %v3369
      %v3371 = vpop.f32.mrb[0].mxu0
      %v3372 = vadd.f32 %v3195, %v3371
      %v3373 = vpop.f32.mrb[0].mxu0
      %3374 = vmatprep.mubr.f32.mxu0 0.0
      %v3375 = vand.u32 %v2002, 4294901760
      %3376 = vmatmul.mubr.f32.gmra.mrb[0].mxu0 %v3375
      %v3377 = vpop.f32.mrb[0].mxu0
      %v3378 = vadd.f32 %v3201, %v3377
      %v3379 = vpop.f32.mrb[0].mxu0
      %3380 = vmatprep.mubr.f32.mxu0 0.0
      %v3381 = vand.u32 %v2004, 4294901760
      %3382 = vmatmul.mubr.f32.gmra.mrb[0].mxu0 %v3381
      %v3383 = vpop.f32.mrb[0].mxu0
      %v3384 = vadd.f32 %v3207, %v3383
      %v3385 = vpop.f32.mrb[0].mxu0
      %3386 = vmatprep.mubr.f32.mxu0 0.0
      %v3387 = vand.u32 %v2006, 4294901760
      %3388 = vmatmul.mubr.f32.gmra.mrb[0].mxu0 %v3387
      %v3389 = vpop.f32.mrb[0].mxu0
      %v3390 = vadd.f32 %v3213, %v3389
      %v3391 = vpop.f32.mrb[0].mxu0
      %3392 = vmatprep.mubr.f32.mxu0 0.0
      %v3393 = vand.u32 %v2008, 4294901760
      %3394 = vmatmul.mubr.f32.gmra.mrb[0].mxu0 %v3393
      %v3395 = vpop.f32.mrb[0].mxu0
      %v3396 = vadd.f32 %v3219, %v3395
      %v3397 = vpop.f32.mrb[0].mxu0
      %3398 = vmatprep.mubr.f32.mxu0 0.0
      %v3399 = vand.u32 %v2010, 4294901760
      %3400 = vmatmul.mubr.f32.gmra.mrb[0].mxu0 %v3399
      %v3401 = vpop.f32.mrb[0].mxu0
      %v3402 = vadd.f32 %v3225, %v3401
      %v3403 = vpop.f32.mrb[0].mxu0
      %3404 = vmatprep.mubr.f32.mxu0 0.0
      %v3405 = vand.u32 %v2012, 4294901760
      %3406 = vmatmul.mubr.f32.gmra.mrb[0].mxu0 %v3405
      %v3407 = vpop.f32.mrb[0].mxu0
      %v3408 = vadd.f32 %v3231, %v3407
      %v3409 = vpop.f32.mrb[0].mxu0
      %3410 = vmatprep.mubr.f32.mxu0 0.0
      %v3411 = vand.u32 %v2014, 4294901760
      %3412 = vmatmul.mubr.f32.gmra.mrb[0].mxu0 %v3411
      %v3413 = vpop.f32.mrb[0].mxu0
      %v3414 = vadd.f32 %v3237, %v3413
      %v3415 = vpop.f32.mrb[0].mxu0
      %3416 = vmatprep.mubr.f32.mxu0 0.0
      %v3417 = vand.u32 %v2016, 4294901760
      %3418 = vmatmul.mubr.f32.gmra.mrb[0].mxu0 %v3417
      %v3419 = vpop.f32.mrb[0].mxu0
      %v3420 = vadd.f32 %v3243, %v3419
      %v3421 = vpop.f32.mrb[0].mxu0
      %3422 = vmatprep.mubr.f32.mxu0 0.0
      %v3423 = vand.u32 %v2018, 4294901760
      %3424 = vmatmul.mubr.f32.gmra.mrb[0].mxu0 %v3423
      %v3425 = vpop.f32.mrb[0].mxu0
      %v3426 = vadd.f32 %v3249, %v3425
      %v3427 = vpop.f32.mrb[0].mxu0
      %3428 = vmatprep.mubr.f32.mxu0 0.0
      %v3429 = vand.u32 %v2020, 4294901760
      %3430 = vmatmul.mubr.f32.gmra.mrb[0].mxu0 %v3429
      %v3431 = vpop.f32.mrb[0].mxu0
      %v3432 = vadd.f32 %v3255, %v3431
      %v3433 = vpop.f32.mrb[0].mxu0
      %3434 = vmatprep.mubr.f32.mxu0 0.0
      %v3435 = vand.u32 %v2022, 4294901760
      %3436 = vmatmul.mubr.f32.gmra.mrb[0].mxu0 %v3435
      %v3437 = vpop.f32.mrb[0].mxu0
      %v3438 = vadd.f32 %v3261, %v3437
      %v3439 = vpop.f32.mrb[0].mxu0
      %3440 = vmatprep.mubr.f32.mxu0 0.0
      %v3441 = vand.u32 %v2024, 4294901760
      %3442 = vmatmul.mubr.f32.gmra.mrb[0].mxu0 %v3441
      %v3443 = vpop.f32.mrb[0].mxu0
      %v3444 = vadd.f32 %v3267, %v3443
      %v3445 = vpop.f32.mrb[0].mxu0
      %3446 = vmatprep.mubr.f32.mxu0 0.0
      %v3447 = vand.u32 %v2026, 4294901760
      %3448 = vmatmul.mubr.f32.gmra.mrb[0].mxu0 %v3447
      %v3449 = vpop.f32.mrb[0].mxu0
      %v3450 = vadd.f32 %v3273, %v3449
      %v3451 = vpop.f32.mrb[0].mxu0
      %3452 = vmatprep.mubr.f32.mxu0 0.0
      %v3453 = vand.u32 %v2028, 4294901760
      %3454 = vmatmul.mubr.f32.gmra.mrb[0].mxu0 %v3453
      %v3455 = vpop.f32.mrb[0].mxu0
      %v3456 = vadd.f32 %v3279, %v3455
      %v3457 = vpop.f32.mrb[0].mxu0
      %3458 = vdwg.mxu0
      %v3459 = vld [vmem:[#allocation4] sm:$0xff]
      %v3460 = vld [vmem:[#allocation4 + $0x8] sm:$0xff]
      %v3461 = vld [vmem:[#allocation4 + $0x10] sm:$0xff]
      %v3462 = vld [vmem:[#allocation4 + $0x18] sm:$0xff]
      %v3463 = vld [vmem:[#allocation4 + $0x20] sm:$0xff]
      %v3464 = vld [vmem:[#allocation4 + $0x28] sm:$0xff]
      %v3465 = vld [vmem:[#allocation4 + $0x30] sm:$0xff]
      %v3466 = vld [vmem:[#allocation4 + $0x38] sm:$0xff]
      %v3467 = vld [vmem:[#allocation4 + $0x40] sm:$0xff]
      %v3468 = vld [vmem:[#allocation4 + $0x48] sm:$0xff]
      %v3469 = vld [vmem:[#allocation4 + $0x50] sm:$0xff]
      %v3470 = vld [vmem:[#allocation4 + $0x58] sm:$0xff]
      %v3471 = vld [vmem:[#allocation4 + $0x60] sm:$0xff]
      %v3472 = vld [vmem:[#allocation4 + $0x68] sm:$0xff]
      %v3473 = vld [vmem:[#allocation4 + $0x70] sm:$0xff]
      %v3474 = vld [vmem:[#allocation4 + $0x78] sm:$0xff]
      %3476 = vset.pattern.permute.xlu0 0
      %3477 = vperm.xlu0 %3476, %v1870
      %v3478 = vpop.permute.xlu0 %3477
      %3481 = vset.pattern.permute.xlu0 0
      %3482 = vperm.xlu0 %3481, %v1872
      %v3483 = vpop.permute.xlu0 %3482
      %3486 = vset.pattern.permute.xlu0 0
      %3487 = vperm.xlu0 %3486, %v1874
      %v3488 = vpop.permute.xlu0 %3487
      %3491 = vset.pattern.permute.xlu0 0
      %3492 = vperm.xlu0 %3491, %v1876
      %v3493 = vpop.permute.xlu0 %3492
      %3496 = vset.pattern.permute.xlu0 0
      %3497 = vperm.xlu0 %3496, %v1878
      %v3498 = vpop.permute.xlu0 %3497
      %3501 = vset.pattern.permute.xlu0 0
      %3502 = vperm.xlu0 %3501, %v1880
      %v3503 = vpop.permute.xlu0 %3502
      %3506 = vset.pattern.permute.xlu0 0
      %3507 = vperm.xlu0 %3506, %v1882
      %v3508 = vpop.permute.xlu0 %3507
      %3511 = vset.pattern.permute.xlu0 0
      %3512 = vperm.xlu0 %3511, %v1884
      %v3513 = vpop.permute.xlu0 %3512
      %3516 = vset.pattern.permute.xlu0 0
      %3517 = vperm.xlu0 %3516, %v1886
      %v3518 = vpop.permute.xlu0 %3517
      %3521 = vset.pattern.permute.xlu0 0
      %3522 = vperm.xlu0 %3521, %v1888
      %v3523 = vpop.permute.xlu0 %3522
      %3526 = vset.pattern.permute.xlu0 0
      %3527 = vperm.xlu0 %3526, %v1890
      %v3528 = vpop.permute.xlu0 %3527
      %3531 = vset.pattern.permute.xlu0 0
      %3532 = vperm.xlu0 %3531, %v1892
      %v3533 = vpop.permute.xlu0 %3532
      %3536 = vset.pattern.permute.xlu0 0
      %3537 = vperm.xlu0 %3536, %v1894
      %v3538 = vpop.permute.xlu0 %3537
      %3541 = vset.pattern.permute.xlu0 0
      %3542 = vperm.xlu0 %3541, %v1896
      %v3543 = vpop.permute.xlu0 %3542
      %3546 = vset.pattern.permute.xlu0 0
      %3547 = vperm.xlu0 %3546, %v1898
      %v3548 = vpop.permute.xlu0 %3547
      %3551 = vset.pattern.permute.xlu0 0
      %3552 = vperm.xlu0 %3551, %v1900
      %v3553 = vpop.permute.xlu0 %3552
      %v3555 = vmul.f32 %v3459, %v3478
      %v3556 = vmul.f32 %v3460, %v3483
      %v3557 = vmul.f32 %v3461, %v3488
      %v3558 = vmul.f32 %v3462, %v3493
      %v3559 = vmul.f32 %v3463, %v3498
      %v3560 = vmul.f32 %v3464, %v3503
      %v3561 = vmul.f32 %v3465, %v3508
      %v3562 = vmul.f32 %v3466, %v3513
      %v3563 = vmul.f32 %v3467, %v3518
      %v3564 = vmul.f32 %v3468, %v3523
      %v3565 = vmul.f32 %v3469, %v3528
      %v3566 = vmul.f32 %v3470, %v3533
      %v3567 = vmul.f32 %v3471, %v3538
      %v3568 = vmul.f32 %v3472, %v3543
      %v3569 = vmul.f32 %v3473, %v3548
      %v3570 = vmul.f32 %v3474, %v3553
      %v3571 = vadd.f32 %v3555, %v3366
      %v3572 = vadd.f32 %v3556, %v3372
      %v3573 = vadd.f32 %v3557, %v3378
      %v3574 = vadd.f32 %v3558, %v3384
      %v3575 = vadd.f32 %v3559, %v3390
      %v3576 = vadd.f32 %v3560, %v3396
      %v3577 = vadd.f32 %v3561, %v3402
      %v3578 = vadd.f32 %v3562, %v3408
      %v3579 = vadd.f32 %v3563, %v3414
      %v3580 = vadd.f32 %v3564, %v3420
      %v3581 = vadd.f32 %v3565, %v3426
      %v3582 = vadd.f32 %v3566, %v3432
      %v3583 = vadd.f32 %v3567, %v3438
      %v3584 = vadd.f32 %v3568, %v3444
      %v3585 = vadd.f32 %v3569, %v3450
      %v3586 = vadd.f32 %v3570, %v3456
      %3587 = vst.msk [vmem:[#allocation4] sm:$0xff] %vm390, %v3571
      %3588 = vst.msk [vmem:[#allocation4 + $0x8] sm:$0xff] %vm390, %v3572
      %3589 = vst.msk [vmem:[#allocation4 + $0x10] sm:$0xff] %vm390, %v3573
      %3590 = vst.msk [vmem:[#allocation4 + $0x18] sm:$0xff] %vm390, %v3574
      %3591 = vst.msk [vmem:[#allocation4 + $0x20] sm:$0xff] %vm390, %v3575
      %3592 = vst.msk [vmem:[#allocation4 + $0x28] sm:$0xff] %vm390, %v3576
      %3593 = vst.msk [vmem:[#allocation4 + $0x30] sm:$0xff] %vm390, %v3577
      %3594 = vst.msk [vmem:[#allocation4 + $0x38] sm:$0xff] %vm390, %v3578
      %3595 = vst.msk [vmem:[#allocation4 + $0x40] sm:$0xff] %vm390, %v3579
      %3596 = vst.msk [vmem:[#allocation4 + $0x48] sm:$0xff] %vm390, %v3580
      %3597 = vst.msk [vmem:[#allocation4 + $0x50] sm:$0xff] %vm390, %v3581
      %3598 = vst.msk [vmem:[#allocation4 + $0x58] sm:$0xff] %vm390, %v3582
      %3599 = vst.msk [vmem:[#allocation4 + $0x60] sm:$0xff] %vm390, %v3583
      %3600 = vst.msk [vmem:[#allocation4 + $0x68] sm:$0xff] %vm390, %v3584
      %3601 = vst.msk [vmem:[#allocation4 + $0x70] sm:$0xff] %vm390, %v3585
      %3602 = vst.msk [vmem:[#allocation4 + $0x78] sm:$0xff] %vm390, %v3586
      %3603 = vst [vmem:[#allocation2] sm:$0xff] %v1904
      %3604 = vst [vmem:[#allocation2 + $0x8] sm:$0xff] %v1909
      %3605 = vst [vmem:[#allocation2 + $0x10] sm:$0xff] %v1914
      %3606 = vst [vmem:[#allocation2 + $0x18] sm:$0xff] %v1919
      %3607 = vst [vmem:[#allocation2 + $0x20] sm:$0xff] %v1924
      %3608 = vst [vmem:[#allocation2 + $0x28] sm:$0xff] %v1929
      %3609 = vst [vmem:[#allocation2 + $0x30] sm:$0xff] %v1934
      %3610 = vst [vmem:[#allocation2 + $0x38] sm:$0xff] %v1939
      %3611 = vst [vmem:[#allocation2 + $0x40] sm:$0xff] %v1944
      %3612 = vst [vmem:[#allocation2 + $0x48] sm:$0xff] %v1949
      %3613 = vst [vmem:[#allocation2 + $0x50] sm:$0xff] %v1954
      %3614 = vst [vmem:[#allocation2 + $0x58] sm:$0xff] %v1959
      %3615 = vst [vmem:[#allocation2 + $0x60] sm:$0xff] %v1964
      %3616 = vst [vmem:[#allocation2 + $0x68] sm:$0xff] %v1969
      %3617 = vst [vmem:[#allocation2 + $0x70] sm:$0xff] %v1974
      %3618 = vst [vmem:[#allocation2 + $0x78] sm:$0xff] %v1979
      %3620 = vset.pattern.permute.xlu0 0
      %3621 = vperm.xlu0 %3620, %v2157
      %v3622 = vpop.permute.xlu0 %3621
      %3625 = vset.pattern.permute.xlu0 0
      %3626 = vperm.xlu0 %3625, %v2158
      %v3627 = vpop.permute.xlu0 %3626
      %3630 = vset.pattern.permute.xlu0 0
      %3631 = vperm.xlu0 %3630, %v2159
      %v3632 = vpop.permute.xlu0 %3631
      %3635 = vset.pattern.permute.xlu0 0
      %3636 = vperm.xlu0 %3635, %v2160
      %v3637 = vpop.permute.xlu0 %3636
      %3640 = vset.pattern.permute.xlu0 0
      %3641 = vperm.xlu0 %3640, %v2161
      %v3642 = vpop.permute.xlu0 %3641
      %3645 = vset.pattern.permute.xlu0 0
      %3646 = vperm.xlu0 %3645, %v2162
      %v3647 = vpop.permute.xlu0 %3646
      %3650 = vset.pattern.permute.xlu0 0
      %3651 = vperm.xlu0 %3650, %v2163
      %v3652 = vpop.permute.xlu0 %3651
      %3655 = vset.pattern.permute.xlu0 0
      %3656 = vperm.xlu0 %3655, %v2164
      %v3657 = vpop.permute.xlu0 %3656
      %3660 = vset.pattern.permute.xlu0 0
      %3661 = vperm.xlu0 %3660, %v2165
      %v3662 = vpop.permute.xlu0 %3661
      %3665 = vset.pattern.permute.xlu0 0
      %3666 = vperm.xlu0 %3665, %v2166
      %v3667 = vpop.permute.xlu0 %3666
      %3670 = vset.pattern.permute.xlu0 0
      %3671 = vperm.xlu0 %3670, %v2167
      %v3672 = vpop.permute.xlu0 %3671
      %3675 = vset.pattern.permute.xlu0 0
      %3676 = vperm.xlu0 %3675, %v2168
      %v3677 = vpop.permute.xlu0 %3676
      %3680 = vset.pattern.permute.xlu0 0
      %3681 = vperm.xlu0 %3680, %v2169
      %v3682 = vpop.permute.xlu0 %3681
      %3685 = vset.pattern.permute.xlu0 0
      %3686 = vperm.xlu0 %3685, %v2170
      %v3687 = vpop.permute.xlu0 %3686
      %3690 = vset.pattern.permute.xlu0 0
      %3691 = vperm.xlu0 %3690, %v2171
      %v3692 = vpop.permute.xlu0 %3691
      %3695 = vset.pattern.permute.xlu0 0
      %3696 = vperm.xlu0 %3695, %v2172
      %v3697 = vpop.permute.xlu0 %3696
      %3699 = vst [vmem:[#allocation3] sm:$0xff] %v3622
      %3700 = vst [vmem:[#allocation3 + $0x8] sm:$0xff] %v3627
      %3701 = vst [vmem:[#allocation3 + $0x10] sm:$0xff] %v3632
      %3702 = vst [vmem:[#allocation3 + $0x18] sm:$0xff] %v3637
      %3703 = vst [vmem:[#allocation3 + $0x20] sm:$0xff] %v3642
      %3704 = vst [vmem:[#allocation3 + $0x28] sm:$0xff] %v3647
      %3705 = vst [vmem:[#allocation3 + $0x30] sm:$0xff] %v3652
      %3706 = vst [vmem:[#allocation3 + $0x38] sm:$0xff] %v3657
      %3707 = vst [vmem:[#allocation3 + $0x40] sm:$0xff] %v3662
      %3708 = vst [vmem:[#allocation3 + $0x48] sm:$0xff] %v3667
      %3709 = vst [vmem:[#allocation3 + $0x50] sm:$0xff] %v3672
      %3710 = vst [vmem:[#allocation3 + $0x58] sm:$0xff] %v3677
      %3711 = vst [vmem:[#allocation3 + $0x60] sm:$0xff] %v3682
      %3712 = vst [vmem:[#allocation3 + $0x68] sm:$0xff] %v3687
      %3713 = vst [vmem:[#allocation3 + $0x70] sm:$0xff] %v3692
      %3714 = vst [vmem:[#allocation3 + $0x78] sm:$0xff] %v3697
      // Predicated region
      $region37: #{tpu_custom_call.1} parent=31 // pred_check
        %p3715 = pneg %p289
      $region38: #{tpu_custom_call.1} parent=31 // pred_check_branch
        %3717 = sbr.rel (%p3715) target = $region40
      $region39: #{tpu_custom_call.1} parent=31 // pred_region
        %v3718 = vld [vmem:[#allocation3] sm:$0xff]
        %v3719 = vld [vmem:[#allocation3 + $0x8] sm:$0xff]
        %v3720 = vld [vmem:[#allocation3 + $0x10] sm:$0xff]
        %v3721 = vld [vmem:[#allocation3 + $0x18] sm:$0xff]
        %v3722 = vld [vmem:[#allocation3 + $0x20] sm:$0xff]
        %v3723 = vld [vmem:[#allocation3 + $0x28] sm:$0xff]
        %v3724 = vld [vmem:[#allocation3 + $0x30] sm:$0xff]
        %v3725 = vld [vmem:[#allocation3 + $0x38] sm:$0xff]
        %v3726 = vld [vmem:[#allocation3 + $0x40] sm:$0xff]
        %v3727 = vld [vmem:[#allocation3 + $0x48] sm:$0xff]
        %v3728 = vld [vmem:[#allocation3 + $0x50] sm:$0xff]
        %v3729 = vld [vmem:[#allocation3 + $0x58] sm:$0xff]
        %v3730 = vld [vmem:[#allocation3 + $0x60] sm:$0xff]
        %v3731 = vld [vmem:[#allocation3 + $0x68] sm:$0xff]
        %v3732 = vld [vmem:[#allocation3 + $0x70] sm:$0xff]
        %v3733 = vld [vmem:[#allocation3 + $0x78] sm:$0xff]
        %v3734 = vrcp.pop %v3718
        %v3735 = vrcp.pop %v3719
        %v3736 = vrcp.pop %v3720
        %v3737 = vrcp.pop %v3721
        %v3738 = vrcp.pop %v3722
        %v3739 = vrcp.pop %v3723
        %v3740 = vrcp.pop %v3724
        %v3741 = vrcp.pop %v3725
        %v3742 = vrcp.pop %v3726
        %v3743 = vrcp.pop %v3727
        %v3744 = vrcp.pop %v3728
        %v3745 = vrcp.pop %v3729
        %v3746 = vrcp.pop %v3730
        %v3747 = vrcp.pop %v3731
        %v3748 = vrcp.pop %v3732
        %v3749 = vrcp.pop %v3733
        %v3750 = vld [vmem:[#allocation4] sm:$0xff]
        %v3751 = vld [vmem:[#allocation4 + $0x8] sm:$0xff]
        %v3752 = vld [vmem:[#allocation4 + $0x10] sm:$0xff]
        %v3753 = vld [vmem:[#allocation4 + $0x18] sm:$0xff]
        %v3754 = vld [vmem:[#allocation4 + $0x20] sm:$0xff]
        %v3755 = vld [vmem:[#allocation4 + $0x28] sm:$0xff]
        %v3756 = vld [vmem:[#allocation4 + $0x30] sm:$0xff]
        %v3757 = vld [vmem:[#allocation4 + $0x38] sm:$0xff]
        %v3758 = vld [vmem:[#allocation4 + $0x40] sm:$0xff]
        %v3759 = vld [vmem:[#allocation4 + $0x48] sm:$0xff]
        %v3760 = vld [vmem:[#allocation4 + $0x50] sm:$0xff]
        %v3761 = vld [vmem:[#allocation4 + $0x58] sm:$0xff]
        %v3762 = vld [vmem:[#allocation4 + $0x60] sm:$0xff]
        %v3763 = vld [vmem:[#allocation4 + $0x68] sm:$0xff]
        %v3764 = vld [vmem:[#allocation4 + $0x70] sm:$0xff]
        %v3765 = vld [vmem:[#allocation4 + $0x78] sm:$0xff]
        %3767 = vset.pattern.permute.xlu0 0
        %3768 = vperm.xlu0 %3767, %v3734
        %v3769 = vpop.permute.xlu0 %3768
        %3772 = vset.pattern.permute.xlu0 0
        %3773 = vperm.xlu0 %3772, %v3735
        %v3774 = vpop.permute.xlu0 %3773
        %3777 = vset.pattern.permute.xlu0 0
        %3778 = vperm.xlu0 %3777, %v3736
        %v3779 = vpop.permute.xlu0 %3778
        %3782 = vset.pattern.permute.xlu0 0
        %3783 = vperm.xlu0 %3782, %v3737
        %v3784 = vpop.permute.xlu0 %3783
        %3787 = vset.pattern.permute.xlu0 0
        %3788 = vperm.xlu0 %3787, %v3738
        %v3789 = vpop.permute.xlu0 %3788
        %3792 = vset.pattern.permute.xlu0 0
        %3793 = vperm.xlu0 %3792, %v3739
        %v3794 = vpop.permute.xlu0 %3793
        %3797 = vset.pattern.permute.xlu0 0
        %3798 = vperm.xlu0 %3797, %v3740
        %v3799 = vpop.permute.xlu0 %3798
        %3802 = vset.pattern.permute.xlu0 0
        %3803 = vperm.xlu0 %3802, %v3741
        %v3804 = vpop.permute.xlu0 %3803
        %3807 = vset.pattern.permute.xlu0 0
        %3808 = vperm.xlu0 %3807, %v3742
        %v3809 = vpop.permute.xlu0 %3808
        %3812 = vset.pattern.permute.xlu0 0
        %3813 = vperm.xlu0 %3812, %v3743
        %v3814 = vpop.permute.xlu0 %3813
        %3817 = vset.pattern.permute.xlu0 0
        %3818 = vperm.xlu0 %3817, %v3744
        %v3819 = vpop.permute.xlu0 %3818
        %3822 = vset.pattern.permute.xlu0 0
        %3823 = vperm.xlu0 %3822, %v3745
        %v3824 = vpop.permute.xlu0 %3823
        %3827 = vset.pattern.permute.xlu0 0
        %3828 = vperm.xlu0 %3827, %v3746
        %v3829 = vpop.permute.xlu0 %3828
        %3832 = vset.pattern.permute.xlu0 0
        %3833 = vperm.xlu0 %3832, %v3747
        %v3834 = vpop.permute.xlu0 %3833
        %3837 = vset.pattern.permute.xlu0 0
        %3838 = vperm.xlu0 %3837, %v3748
        %v3839 = vpop.permute.xlu0 %3838
        %3842 = vset.pattern.permute.xlu0 0
        %3843 = vperm.xlu0 %3842, %v3749
        %v3844 = vpop.permute.xlu0 %3843
        %v3846 = vmul.f32 %v3750, %v3769
        %v3847 = vmul.f32 %v3751, %v3774
        %v3848 = vmul.f32 %v3752, %v3779
        %v3849 = vmul.f32 %v3753, %v3784
        %v3850 = vmul.f32 %v3754, %v3789
        %v3851 = vmul.f32 %v3755, %v3794
        %v3852 = vmul.f32 %v3756, %v3799
        %v3853 = vmul.f32 %v3757, %v3804
        %v3854 = vmul.f32 %v3758, %v3809
        %v3855 = vmul.f32 %v3759, %v3814
        %v3856 = vmul.f32 %v3760, %v3819
        %v3857 = vmul.f32 %v3761, %v3824
        %v3858 = vmul.f32 %v3762, %v3829
        %v3859 = vmul.f32 %v3763, %v3834
        %v3860 = vmul.f32 %v3764, %v3839
        %v3861 = vmul.f32 %v3765, %v3844
        %3862 = vst.msk [vmem:[%s287] sm:$0xff] %vm390, %v3846
        %3863 = vst.msk [vmem:[%s287 + $0x8] sm:$0xff] %vm390, %v3847
        %3864 = vst.msk [vmem:[%s287 + $0x10] sm:$0xff] %vm390, %v3848
        %3865 = vst.msk [vmem:[%s287 + $0x18] sm:$0xff] %vm390, %v3849
        %3866 = vst.msk [vmem:[%s287 + $0x20] sm:$0xff] %vm390, %v3850
        %3867 = vst.msk [vmem:[%s287 + $0x28] sm:$0xff] %vm390, %v3851
        %3868 = vst.msk [vmem:[%s287 + $0x30] sm:$0xff] %vm390, %v3852
        %3869 = vst.msk [vmem:[%s287 + $0x38] sm:$0xff] %vm390, %v3853
        %3870 = vst.msk [vmem:[%s287 + $0x40] sm:$0xff] %vm390, %v3854
        %3871 = vst.msk [vmem:[%s287 + $0x48] sm:$0xff] %vm390, %v3855
        %3872 = vst.msk [vmem:[%s287 + $0x50] sm:$0xff] %vm390, %v3856
        %3873 = vst.msk [vmem:[%s287 + $0x58] sm:$0xff] %vm390, %v3857
        %3874 = vst.msk [vmem:[%s287 + $0x60] sm:$0xff] %vm390, %v3858
        %3875 = vst.msk [vmem:[%s287 + $0x68] sm:$0xff] %vm390, %v3859
        %3876 = vst.msk [vmem:[%s287 + $0x70] sm:$0xff] %vm390, %v3860
        %3877 = vst.msk [vmem:[%s287 + $0x78] sm:$0xff] %vm390, %v3861
      $region40: #{tpu_custom_call.1} parent=31 // pred_fallthru
        _
      %s3878 = smul.u32 16, %s20
      %p3879 = scmp.lt.s32.totalorder %s19, 3
      %s3880 = scalar_select %p3879, %s19, 3
      %p3881 = scmp.lt.s32.totalorder %s3878, 15
      %s3882 = scalar_select %p3881, %s3878, 15
      %s3883 = smul.addr %s3880, 16
      %s3884 = sadd.s32 %s3882, %s3883
      %s3885 = smul.addr %s3884, 8
      %s3886 = scalar_lea.vmem %s3, %s3885
      // Predicated region
      $region41: #{tpu_custom_call.1} parent=31 // pred_check
        %p3887 = pneg %p137
      $region42: #{tpu_custom_call.1} parent=31 // pred_check_branch
        %3889 = sbr.rel (%p3887) target = $region44
      $region43: #{tpu_custom_call.1} parent=31 // pred_region
        %s3890 = smul.u32 16, %s20
      $region44: #{tpu_custom_call.1} parent=31 // pred_fallthru
        _
    $region32: #{tpu_custom_call.1} parent=5 // pred_fallthru
      _
    %p3891 = scmp.le.s32.totalorder 2, %s9
    // Predicated region
    $region45: #{tpu_custom_call.1} parent=5 // pred_check
      %p3892 = pneg %p3891
    $region46: #{tpu_custom_call.1} parent=5 // pred_check_branch
      %3894 = sbr.rel (%p3892) target = $region48
    $region47: #{tpu_custom_call.1} parent=5 // pred_region
      %s3895 = ssub.s32 %s9, 2
      // Predicated region
      $region49: #{tpu_custom_call.1} parent=47 // pred_check
        %p3896 = pneg %p143
      $region50: #{tpu_custom_call.1} parent=47 // pred_check_branch
        %3898 = sbr.rel (%p3896) target = $region52
      $region51: #{tpu_custom_call.1} parent=47 // pred_region
        %s3899 = smul.u32 16, %s23
        %p3900 = scmp.lt.s32.totalorder %s22, 3
        %s3901 = scalar_select %p3900, %s22, 3
        %p3902 = scmp.lt.s32.totalorder %s3899, 15
        %s3903 = scalar_select %p3902, %s3899, 15
        %s3904 = smul.addr %s3901, 16
        %s3905 = sadd.s32 %s3903, %s3904
        %s3906 = smul.addr %s3905, 8
        %s3907 = scalar_lea.vmem %s3, %s3906
      $region52: #{tpu_custom_call.1} parent=47 // pred_fallthru
        _
    $region48: #{tpu_custom_call.1} parent=5 // pred_fallthru
      _
  $region6: #{tpu_custom_call.1} parent=0 // loop_footer
    %s13 = sadd.s32 1, %s9
  $region7: #{tpu_custom_call.1} parent=0 // loop_footer_branch
    %8 = sbr.rel target = $region3
  $region8: #{tpu_custom_call.1} parent=0 // loop_exit
    _

</llo_original>
